<compile_context>
chip_gen: v6e
topology: v6e:2x2x1
jax: 0.10.0
libtpu: 0.0.40
codegen_flags: <defaults>
</compile_context>

<pallas_src>
import functools

import jax
import jax.numpy as jnp
from jax import lax
from jax.experimental import pallas as pl
from jax.experimental.pallas import tpu as pltpu


# ---------------------------------------------------------------------------
# Pallas kernel: x -> [ (x @ W_i + b_i) (+ReLU) ]  for a static chain of stages
# ---------------------------------------------------------------------------
def _stages_kernel(*refs, relus):
    a_ref = refs[0]
    o_ref = refs[-1]
    x = a_ref[...]
    for s, relu in enumerate(relus):
        w_ref = refs[1 + 2 * s]
        b_ref = refs[2 + 2 * s]
        x = jnp.dot(x, w_ref[...], preferred_element_type=jnp.float32) + b_ref[...]
        if relu:
            x = jnp.maximum(x, 0.0)
    o_ref[...] = x.astype(o_ref.dtype)


def _pad_cols(x, mult=128):
    n = x.shape[-1]
    n_pad = -(-n // mult) * mult
    if n_pad != n:
        x = jnp.pad(x, [(0, 0)] * (x.ndim - 1) + [(0, n_pad - n)])
    return x


def pallas_matmul_stages(a, stages, tile_m_max=1024):
    """a: [M, K] f32.  stages: list of (w [K_i, N_i], b [N_i], relu: bool).

    Computes x = a; then for each stage x = x @ w + b (optionally ReLU), all
    inside one fused Pallas kernel.  Weight/bias lane dims are zero-padded to
    multiples of 128 (lane-dense stores); returns [M, N_last] (valid columns).
    """
    M, K = a.shape
    n_final = stages[-1][0].shape[1]

    # Prepare lane-dense weights; chain padded widths between stages.
    ws, bs, relus = [], [], []
    prev_n = K
    for si, (w, b, relu) in enumerate(stages):
        k_i, n_i = w.shape
        if si == 0:
            assert k_i == prev_n
        else:
            assert k_i <= prev_n
            if k_i < prev_n:                       # rows matching padded cols of prev stage
                w = jnp.pad(w, ((0, prev_n - k_i), (0, 0)))
        w = _pad_cols(w.astype(jnp.float32))
        b = _pad_cols(b.astype(jnp.float32).reshape(1, -1))
        ws.append(w)
        bs.append(b)
        relus.append(bool(relu))
        prev_n = w.shape[1]
    n_out_pad = prev_n

    # Tile over M.  For these shapes M is 32/128/512/2048 -> no padding needed;
    # keep a generic fallback for other sizes.
    if M <= tile_m_max:
        tile_m = M
    else:
        tile_m = tile_m_max
    grid_m = -(-M // tile_m)
    M_pad = grid_m * tile_m
    if M_pad != M:
        a = jnp.pad(a, ((0, M_pad - M), (0, 0)))

    in_specs = [pl.BlockSpec((tile_m, K), lambda i: (i, 0))]
    operands = [a]
    for w, b in zip(ws, bs):
        in_specs.append(pl.BlockSpec(w.shape, lambda i: (0, 0)))
        in_specs.append(pl.BlockSpec(b.shape, lambda i: (0, 0)))
        operands += [w, b]

    out = pl.pallas_call(
        functools.partial(_stages_kernel, relus=tuple(relus)),
        out_shape=jax.ShapeDtypeStruct((M_pad, n_out_pad), jnp.float32),
        grid_spec=pltpu.PrefetchScalarGridSpec(
            num_scalar_prefetch=0,
            grid=(grid_m,),
            in_specs=in_specs,
            out_specs=pl.BlockSpec((tile_m, n_out_pad), lambda i: (i, 0)),
        ),
        compiler_params=pltpu.CompilerParams(
            dimension_semantics=("parallel",)),
    )(*operands)
    return out[:M, :n_final]


# ---------------------------------------------------------------------------
# ConvTranspose2d, stride 1 (covers k=4,p=0 head and k=1,p=0 tail)
# ---------------------------------------------------------------------------
def conv_transpose2d_s1(x, w, b, padding, relu):
    """x: [N,H,W,Cin]; w: [Cin,Cout,kH,kW] (PyTorch ConvTranspose2d layout)."""
    N, H, W, C_in = x.shape
    _, C_out, kH, kW = w.shape

    H_out = H + kH - 1 - 2 * padding
    W_out = W + kW - 1 - 2 * padding

    if kH == 1 and kW == 1 and padding == 0:
        a = x.reshape(N * H * W, C_in)
        w_mat = w[:, :, 0, 0]
    else:
        ph, pw = kH - 1 - padding, kW - 1 - padding
        xp = jnp.pad(x, ((0, 0), (ph, ph), (pw, pw), (0, 0)))
        patches = jnp.concatenate(
            [xp[:, ky:ky + H_out, kx:kx + W_out, :]
             for ky in range(kH) for kx in range(kW)], axis=-1)
        a = patches.reshape(N * H_out * W_out, kH * kW * C_in)
        w_mat = jnp.transpose(jnp.flip(w, axis=(2, 3)), (2, 3, 0, 1)
                              ).reshape(kH * kW * C_in, C_out)

    out = pallas_matmul_stages(a, [(w_mat, b, relu)])
    return out.reshape(N, H_out, W_out, C_out)


# ---------------------------------------------------------------------------
# ConvTranspose2d, stride 2, k=4, p=1  (sub-pixel / phase decomposition)
# ---------------------------------------------------------------------------
def _subpixel_weight_s2(w):
    """w: [Cin, Cout, 4, 4] -> [9*Cin, 4*Cout] phase weight matrix.

    Per output phase p in {0,1} (each spatial dim) and 3-tap window t on the
    1-padded input:  p=0 uses taps {0->k3, 1->k1},  p=1 uses taps {1->k2, 2->k0}.
    """
    C_in, C_out = w.shape[0], w.shape[1]
    S = jnp.zeros((2, 3, 4), w.dtype)
    S = S.at[0, 0, 3].set(1.0).at[0, 1, 1].set(1.0)
    S = S.at[1, 1, 2].set(1.0).at[1, 2, 0].set(1.0)
    # [ty, tx, ci, py, px, co]
    w_eff = jnp.einsum('pik,qjl,cokl->ijcpqo', S, S, w)
    return w_eff.reshape(9 * C_in, 4 * C_out)


def conv_transpose2d_s2_k4_p1(x, w, b, relu, extra_1x1=None):
    """ConvTranspose2d(Cin,Cout,4,stride=2,padding=1) (+ optional fused 1x1
    ConvTranspose2d applied after the ReLU).  x: [N,H,W,Cin] -> [N,2H,2W,*]."""
    N, H, W, C_in = x.shape
    _, C_out, kH, kW = w.shape
    assert (kH, kW) == (4, 4)

    # 3x3 patches on the undilated, 1-padded input (no structural-zero MACs).
    xp = jnp.pad(x, ((0, 0), (1, 1), (1, 1), (0, 0)))
    patches = jnp.concatenate(
        [xp[:, ty:ty + H, tx:tx + W, :] for ty in range(3) for tx in range(3)],
        axis=-1)
    a = patches.reshape(N * H * W, 9 * C_in)

    w_mat = _subpixel_weight_s2(w)          # [9*Cin, 4*Cout]
    b_mat = jnp.tile(b, 4)                  # per-phase bias
    stages = [(w_mat, b_mat, relu)]
    C_last = C_out

    if extra_1x1 is not None:               # fuse trailing 1x1 ConvTranspose2d
        w5, b5 = extra_1x1                  # w5: [Cout, C5, 1, 1]
        assert w5.shape[0] == C_out and w5.shape[2] == 1 and w5.shape[3] == 1
        C5 = w5.shape[1]
        w5_mat = w5[:, :, 0, 0]
        w5_block = jnp.zeros((4 * C_out, 4 * C5), w5.dtype)
        for p in range(4):                  # block-diagonal: 1x1 acts per phase
            w5_block = w5_block.at[p * C_out:(p + 1) * C_out,
                                   p * C5:(p + 1) * C5].set(w5_mat)
        stages.append((w5_block, jnp.tile(b5, 4), False))
        C_last = C5

    out = pallas_matmul_stages(a, stages)   # [N*H*W, 4*C_last]
    out = out.reshape(N, H, W, 2, 2, C_last)
    out = jnp.transpose(out, (0, 1, 3, 2, 4, 5)).reshape(N, 2 * H, 2 * W, C_last)
    return out


# ---------------------------------------------------------------------------
# XLA reference (same math as PyTorch ConvTranspose2d) for validation
# ---------------------------------------------------------------------------
def _conv_transpose2d_ref(x_nhwc, w, b, stride, padding, apply_relu):
    C_in, C_out, kH, kW = w.shape
    w_hwio = jnp.transpose(jnp.flip(w, axis=(2, 3)), (2, 3, 0, 1))
    y = lax.conv_general_dilated(
        x_nhwc, w_hwio, window_strides=(1, 1),
        padding=[(kH - 1 - padding,) * 2, (kW - 1 - padding,) * 2],
        lhs_dilation=(stride, stride),
        dimension_numbers=('NHWC', 'HWIO', 'NHWC'))
    y = y + b.reshape(1, 1, 1, -1)
    return jnp.maximum(y, 0.0) if apply_relu else y


# ---------------------------------------------------------------------------
# Generator
# ---------------------------------------------------------------------------
_LAYER_CFG = [  # (kernel, stride, padding, relu) — mirrors the nn.Sequential
    (4, 1, 0, True),
    (4, 2, 1, True),
    (4, 2, 1, True),
    (4, 2, 1, True),
    (4, 2, 1, True),
    (1, 1, 0, False),
]


def init_generator_params(key, input_channel, channels, output_channel):
    chans = [input_channel] + list(channels) + [output_channel]
    params = []
    for i, (k, _, _, _) in enumerate(_LAYER_CFG):
        c_in, c_out = chans[i], chans[i + 1]
        key, kw_, kb_ = jax.random.split(key, 3)
        fan_in = c_out * k * k  # PyTorch ConvTranspose2d default init fan
        bound = 1.0 / (fan_in ** 0.5)
        w = jax.random.uniform(kw_, (c_in, c_out, k, k), jnp.float32, -bound, bound)
        b = jax.random.uniform(kb_, (c_out,), jnp.float32, -bound, bound)
        params.append((w, b))
    return params


def generator_forward(x_nchw, params):
    x = jnp.transpose(x_nchw, (0, 2, 3, 1))           # NCHW -> NHWC

    # layer 0: ConvTranspose2d(k=4, s=1, p=0) + ReLU
    w0, b0 = params[0]
    x = conv_transpose2d_s1(x, w0, b0, padding=0, relu=True)

    # layers 1..3: ConvTranspose2d(k=4, s=2, p=1) + ReLU
    for idx in (1, 2, 3):
        w, b = params[idx]
        x = conv_transpose2d_s2_k4_p1(x, w, b, relu=True)

    # layer 4 (k=4, s=2, p=1) + ReLU, fused with layer 5 (1x1 ConvTranspose2d)
    w4, b4 = params[4]
    w5, b5 = params[5]
    x = conv_transpose2d_s2_k4_p1(x, w4, b4, relu=True, extra_1x1=(w5, b5))

    return jnp.transpose(x, (0, 3, 1, 2))             # NHWC -> NCHW


def generator_forward_ref(x_nchw, params):
    x = jnp.transpose(x_nchw, (0, 2, 3, 1))
    for (w, b), (_, s, p, relu) in zip(params, _LAYER_CFG):
        x = _conv_transpose2d_ref(x, w, b, s, p, relu)
    return jnp.transpose(x, (0, 3, 1, 2))


if __name__ == "__main__":
    key = jax.random.PRNGKey(0)

    input_channel = 8
    channels = [16, 16, 8, 8, 8]
    output_channel = 3

    key, kx, kp = jax.random.split(key, 3)
    # typical GAN latent: [N, z, 1, 1]
    x = jax.random.normal(kx, (2, input_channel, 1, 1), jnp.float32)
    params = init_generator_params(kp, input_channel, channels, output_channel)

    fwd = jax.jit(generator_forward)
    y = jax.block_until_ready(fwd(x, params))

    # sanity check vs XLA lhs-dilated conv (== PyTorch ConvTranspose2d math)
    y_ref = jax.block_until_ready(generator_forward_ref(x, params))
    assert y.shape == (2, output_channel, 64, 64), y.shape
    max_err = float(jnp.max(jnp.abs(y - y_ref)))
    assert jnp.allclose(y, y_ref, atol=5e-4, rtol=5e-4), max_err

    print("KERNEL_OK")
</pallas_src>

<mosaic_0001>
module attributes {stable_mosaic.version = 11 : i64} {
  func.func @_stages_kernel(%arg0: i32, %arg1: memref<32x128xf32, #tpu.memory_space<vmem>>, %arg2: memref<128x128xf32, #tpu.memory_space<vmem>>, %arg3: memref<1x128xf32, #tpu.memory_space<vmem>>, %arg4: memref<32x128xf32, #tpu.memory_space<vmem>>) attributes {dimension_semantics = [#tpu.dimension_semantics<parallel>], iteration_bounds = array<i64: 1>, scalar_prefetch = 0 : i64, scratch_operands = 0 : i64, tpu.core_type = #tpu.core_type<tc>, window_params = [{transform_indices = @transform_0, window_bounds = array<i64: 32, 128>}, {pipeline_mode = #tpu.pipeline_mode<synchronous>, transform_indices = @transform_1, window_bounds = array<i64: 128, 128>}, {pipeline_mode = #tpu.pipeline_mode<synchronous>, transform_indices = @transform_2, window_bounds = array<i64: 1, 128>}, {transform_indices = @transform_3, window_bounds = array<i64: 32, 128>}]} {
    %c0 = arith.constant 0 : index
    %c0_0 = arith.constant 0 : index
    %0 = vector.load %arg1[%c0, %c0_0] : memref<32x128xf32, #tpu.memory_space<vmem>>, vector<32x128xf32>
    %c0_1 = arith.constant 0 : index
    %c0_2 = arith.constant 0 : index
    %1 = vector.load %arg2[%c0_1, %c0_2] : memref<128x128xf32, #tpu.memory_space<vmem>>, vector<128x128xf32>
    %cst = arith.constant dense<0.000000e+00> : vector<32x128xf32>
    %2 = tpu.matmul %0, %1, %cst {dimension_numbers = #tpu.dot_dimension_numbers<[1], [0], [0], [1], [0, 0, 1, 1], [], []>} : vector<32x128xf32>, vector<128x128xf32>, vector<32x128xf32> -> vector<32x128xf32>
    %c0_3 = arith.constant 0 : index
    %c0_4 = arith.constant 0 : index
    %3 = vector.load %arg3[%c0_3, %c0_4] : memref<1x128xf32, #tpu.memory_space<vmem>>, vector<1x128xf32>
    %4 = vector.broadcast %3 : vector<1x128xf32> to vector<32x128xf32>
    %5 = arith.addf %2, %4 : vector<32x128xf32>
    %cst_5 = arith.constant 0.000000e+00 : f32
    %6 = vector.broadcast %cst_5 : f32 to vector<32x128xf32>
    %7 = arith.maximumf %5, %6 : vector<32x128xf32>
    %c0_6 = arith.constant 0 : index
    %c0_7 = arith.constant 0 : index
    %8 = vector.load %arg4[%c0_6, %c0_7] : memref<32x128xf32, #tpu.memory_space<vmem>>, vector<32x128xf32>
    tpu.vector_store %arg4[%c0_6, %c0_7], %7 {strides = array<i32>} : memref<32x128xf32, #tpu.memory_space<vmem>>, vector<32x128xf32>,
    return
  }
  func.func @transform_0(%arg0: i32) -> (i32, i32) {
    %c0_i32 = arith.constant 0 : i32
    %c0_i32_0 = arith.constant 0 : i32
    return %arg0, %c0_i32 : i32, i32
  }
  func.func @transform_1(%arg0: i32) -> (i32, i32) {
    %c0_i32 = arith.constant 0 : i32
    %c0_i32_0 = arith.constant 0 : i32
    %c0_i32_1 = arith.constant 0 : i32
    return %c0_i32, %c0_i32_0 : i32, i32
  }
  func.func @transform_2(%arg0: i32) -> (i32, i32) {
    %c0_i32 = arith.constant 0 : i32
    %c0_i32_0 = arith.constant 0 : i32
    %c0_i32_1 = arith.constant 0 : i32
    return %c0_i32, %c0_i32_0 : i32, i32
  }
  func.func @transform_3(%arg0: i32) -> (i32, i32) {
    %c0_i32 = arith.constant 0 : i32
    %c0_i32_0 = arith.constant 0 : i32
    return %arg0, %c0_i32 : i32, i32
  }
}

module attributes {stable_mosaic.version = 11 : i64} {
  func.func @_stages_kernel(%arg0: i32, %arg1: memref<32x144xf32, #tpu.memory_space<vmem>>, %arg2: memref<144x128xf32, #tpu.memory_space<vmem>>, %arg3: memref<1x128xf32, #tpu.memory_space<vmem>>, %arg4: memref<32x128xf32, #tpu.memory_space<vmem>>) attributes {dimension_semantics = [#tpu.dimension_semantics<parallel>], iteration_bounds = array<i64: 1>, scalar_prefetch = 0 : i64, scratch_operands = 0 : i64, tpu.core_type = #tpu.core_type<tc>, window_params = [{transform_indices = @transform_0, window_bounds = array<i64: 32, 144>}, {pipeline_mode = #tpu.pipeline_mode<synchronous>, transform_indices = @transform_1, window_bounds = array<i64: 144, 128>}, {pipeline_mode = #tpu.pipeline_mode<synchronous>, transform_indices = @transform_2, window_bounds = array<i64: 1, 128>}, {transform_indices = @transform_3, window_bounds = array<i64: 32, 128>}]} {
    %c0 = arith.constant 0 : index
    %c0_0 = arith.constant 0 : index
    %0 = vector.load %arg1[%c0, %c0_0] : memref<32x144xf32, #tpu.memory_space<vmem>>, vector<32x144xf32>
    %c0_1 = arith.constant 0 : index
    %c0_2 = arith.constant 0 : index
    %1 = vector.load %arg2[%c0_1, %c0_2] : memref<144x128xf32, #tpu.memory_space<vmem>>, vector<144x128xf32>
    %cst = arith.constant dense<0.000000e+00> : vector<32x128xf32>
    %2 = tpu.matmul %0, %1, %cst {dimension_numbers = #tpu.dot_dimension_numbers<[1], [0], [0], [1], [0, 0, 1, 1], [], []>} : vector<32x144xf32>, vector<144x128xf32>, vector<32x128xf32> -> vector<32x128xf32>
    %c0_3 = arith.constant 0 : index
    %c0_4 = arith.constant 0 : index
    %3 = vector.load %arg3[%c0_3, %c0_4] : memref<1x128xf32, #tpu.memory_space<vmem>>, vector<1x128xf32>
    %4 = vector.broadcast %3 : vector<1x128xf32> to vector<32x128xf32>
    %5 = arith.addf %2, %4 : vector<32x128xf32>
    %cst_5 = arith.constant 0.000000e+00 : f32
    %6 = vector.broadcast %cst_5 : f32 to vector<32x128xf32>
    %7 = arith.maximumf %5, %6 : vector<32x128xf32>
    %c0_6 = arith.constant 0 : index
    %c0_7 = arith.constant 0 : index
    %8 = vector.load %arg4[%c0_6, %c0_7] : memref<32x128xf32, #tpu.memory_space<vmem>>, vector<32x128xf32>
    tpu.vector_store %arg4[%c0_6, %c0_7], %7 {strides = array<i32>} : memref<32x128xf32, #tpu.memory_space<vmem>>, vector<32x128xf32>,
    return
  }
  func.func @transform_0(%arg0: i32) -> (i32, i32) {
    %c0_i32 = arith.constant 0 : i32
    %c0_i32_0 = arith.constant 0 : i32
    return %arg0, %c0_i32 : i32, i32
  }
  func.func @transform_1(%arg0: i32) -> (i32, i32) {
    %c0_i32 = arith.constant 0 : i32
    %c0_i32_0 = arith.constant 0 : i32
    %c0_i32_1 = arith.constant 0 : i32
    return %c0_i32, %c0_i32_0 : i32, i32
  }
  func.func @transform_2(%arg0: i32) -> (i32, i32) {
    %c0_i32 = arith.constant 0 : i32
    %c0_i32_0 = arith.constant 0 : i32
    %c0_i32_1 = arith.constant 0 : i32
    return %c0_i32, %c0_i32_0 : i32, i32
  }
  func.func @transform_3(%arg0: i32) -> (i32, i32) {
    %c0_i32 = arith.constant 0 : i32
    %c0_i32_0 = arith.constant 0 : i32
    return %arg0, %c0_i32 : i32, i32
  }
}

module attributes {stable_mosaic.version = 11 : i64} {
  func.func @_stages_kernel(%arg0: i32, %arg1: memref<128x144xf32, #tpu.memory_space<vmem>>, %arg2: memref<144x128xf32, #tpu.memory_space<vmem>>, %arg3: memref<1x128xf32, #tpu.memory_space<vmem>>, %arg4: memref<128x128xf32, #tpu.memory_space<vmem>>) attributes {dimension_semantics = [#tpu.dimension_semantics<parallel>], iteration_bounds = array<i64: 1>, scalar_prefetch = 0 : i64, scratch_operands = 0 : i64, tpu.core_type = #tpu.core_type<tc>, window_params = [{transform_indices = @transform_0, window_bounds = array<i64: 128, 144>}, {pipeline_mode = #tpu.pipeline_mode<synchronous>, transform_indices = @transform_1, window_bounds = array<i64: 144, 128>}, {pipeline_mode = #tpu.pipeline_mode<synchronous>, transform_indices = @transform_2, window_bounds = array<i64: 1, 128>}, {transform_indices = @transform_3, window_bounds = array<i64: 128, 128>}]} {
    %c0 = arith.constant 0 : index
    %c0_0 = arith.constant 0 : index
    %0 = vector.load %arg1[%c0, %c0_0] : memref<128x144xf32, #tpu.memory_space<vmem>>, vector<128x144xf32>
    %c0_1 = arith.constant 0 : index
    %c0_2 = arith.constant 0 : index
    %1 = vector.load %arg2[%c0_1, %c0_2] : memref<144x128xf32, #tpu.memory_space<vmem>>, vector<144x128xf32>
    %cst = arith.constant dense<0.000000e+00> : vector<128x128xf32>
    %2 = tpu.matmul %0, %1, %cst {dimension_numbers = #tpu.dot_dimension_numbers<[1], [0], [0], [1], [0, 0, 1, 1], [], []>} : vector<128x144xf32>, vector<144x128xf32>, vector<128x128xf32> -> vector<128x128xf32>
    %c0_3 = arith.constant 0 : index
    %c0_4 = arith.constant 0 : index
    %3 = vector.load %arg3[%c0_3, %c0_4] : memref<1x128xf32, #tpu.memory_space<vmem>>, vector<1x128xf32>
    %4 = vector.broadcast %3 : vector<1x128xf32> to vector<128x128xf32>
    %5 = arith.addf %2, %4 : vector<128x128xf32>
    %cst_5 = arith.constant 0.000000e+00 : f32
    %6 = vector.broadcast %cst_5 : f32 to vector<128x128xf32>
    %7 = arith.maximumf %5, %6 : vector<128x128xf32>
    %c0_6 = arith.constant 0 : index
    %c0_7 = arith.constant 0 : index
    %8 = vector.load %arg4[%c0_6, %c0_7] : memref<128x128xf32, #tpu.memory_space<vmem>>, vector<128x128xf32>
    tpu.vector_store %arg4[%c0_6, %c0_7], %7 {strides = array<i32>} : memref<128x128xf32, #tpu.memory_space<vmem>>, vector<128x128xf32>,
    return
  }
  func.func @transform_0(%arg0: i32) -> (i32, i32) {
    %c0_i32 = arith.constant 0 : i32
    %c0_i32_0 = arith.constant 0 : i32
    return %arg0, %c0_i32 : i32, i32
  }
  func.func @transform_1(%arg0: i32) -> (i32, i32) {
    %c0_i32 = arith.constant 0 : i32
    %c0_i32_0 = arith.constant 0 : i32
    %c0_i32_1 = arith.constant 0 : i32
    return %c0_i32, %c0_i32_0 : i32, i32
  }
  func.func @transform_2(%arg0: i32) -> (i32, i32) {
    %c0_i32 = arith.constant 0 : i32
    %c0_i32_0 = arith.constant 0 : i32
    %c0_i32_1 = arith.constant 0 : i32
    return %c0_i32, %c0_i32_0 : i32, i32
  }
  func.func @transform_3(%arg0: i32) -> (i32, i32) {
    %c0_i32 = arith.constant 0 : i32
    %c0_i32_0 = arith.constant 0 : i32
    return %arg0, %c0_i32 : i32, i32
  }
}

module attributes {stable_mosaic.version = 11 : i64} {
  func.func @_stages_kernel(%arg0: i32, %arg1: memref<512x72xf32, #tpu.memory_space<vmem>>, %arg2: memref<72x128xf32, #tpu.memory_space<vmem>>, %arg3: memref<1x128xf32, #tpu.memory_space<vmem>>, %arg4: memref<512x128xf32, #tpu.memory_space<vmem>>) attributes {dimension_semantics = [#tpu.dimension_semantics<parallel>], iteration_bounds = array<i64: 1>, scalar_prefetch = 0 : i64, scratch_operands = 0 : i64, tpu.core_type = #tpu.core_type<tc>, window_params = [{transform_indices = @transform_0, window_bounds = array<i64: 512, 72>}, {pipeline_mode = #tpu.pipeline_mode<synchronous>, transform_indices = @transform_1, window_bounds = array<i64: 72, 128>}, {pipeline_mode = #tpu.pipeline_mode<synchronous>, transform_indices = @transform_2, window_bounds = array<i64: 1, 128>}, {transform_indices = @transform_3, window_bounds = array<i64: 512, 128>}]} {
    %c0 = arith.constant 0 : index
    %c0_0 = arith.constant 0 : index
    %0 = vector.load %arg1[%c0, %c0_0] : memref<512x72xf32, #tpu.memory_space<vmem>>, vector<512x72xf32>
    %c0_1 = arith.constant 0 : index
    %c0_2 = arith.constant 0 : index
    %1 = vector.load %arg2[%c0_1, %c0_2] : memref<72x128xf32, #tpu.memory_space<vmem>>, vector<72x128xf32>
    %cst = arith.constant dense<0.000000e+00> : vector<512x128xf32>
    %2 = tpu.matmul %0, %1, %cst {dimension_numbers = #tpu.dot_dimension_numbers<[1], [0], [0], [1], [0, 0, 1, 1], [], []>} : vector<512x72xf32>, vector<72x128xf32>, vector<512x128xf32> -> vector<512x128xf32>
    %c0_3 = arith.constant 0 : index
    %c0_4 = arith.constant 0 : index
    %3 = vector.load %arg3[%c0_3, %c0_4] : memref<1x128xf32, #tpu.memory_space<vmem>>, vector<1x128xf32>
    %4 = vector.broadcast %3 : vector<1x128xf32> to vector<512x128xf32>
    %5 = arith.addf %2, %4 : vector<512x128xf32>
    %cst_5 = arith.constant 0.000000e+00 : f32
    %6 = vector.broadcast %cst_5 : f32 to vector<512x128xf32>
    %7 = arith.maximumf %5, %6 : vector<512x128xf32>
    %c0_6 = arith.constant 0 : index
    %c0_7 = arith.constant 0 : index
    %8 = vector.load %arg4[%c0_6, %c0_7] : memref<512x128xf32, #tpu.memory_space<vmem>>, vector<512x128xf32>
    tpu.vector_store %arg4[%c0_6, %c0_7], %7 {strides = array<i32>} : memref<512x128xf32, #tpu.memory_space<vmem>>, vector<512x128xf32>,
    return
  }
  func.func @transform_0(%arg0: i32) -> (i32, i32) {
    %c0_i32 = arith.constant 0 : i32
    %c0_i32_0 = arith.constant 0 : i32
    return %arg0, %c0_i32 : i32, i32
  }
  func.func @transform_1(%arg0: i32) -> (i32, i32) {
    %c0_i32 = arith.constant 0 : i32
    %c0_i32_0 = arith.constant 0 : i32
    %c0_i32_1 = arith.constant 0 : i32
    return %c0_i32, %c0_i32_0 : i32, i32
  }
  func.func @transform_2(%arg0: i32) -> (i32, i32) {
    %c0_i32 = arith.constant 0 : i32
    %c0_i32_0 = arith.constant 0 : i32
    %c0_i32_1 = arith.constant 0 : i32
    return %c0_i32, %c0_i32_0 : i32, i32
  }
  func.func @transform_3(%arg0: i32) -> (i32, i32) {
    %c0_i32 = arith.constant 0 : i32
    %c0_i32_0 = arith.constant 0 : i32
    return %arg0, %c0_i32 : i32, i32
  }
}

module attributes {stable_mosaic.version = 11 : i64} {
  func.func @_stages_kernel(%arg0: i32, %arg1: memref<1024x72xf32, #tpu.memory_space<vmem>>, %arg2: memref<72x128xf32, #tpu.memory_space<vmem>>, %arg3: memref<1x128xf32, #tpu.memory_space<vmem>>, %arg4: memref<128x128xf32, #tpu.memory_space<vmem>>, %arg5: memref<1x128xf32, #tpu.memory_space<vmem>>, %arg6: memref<1024x128xf32, #tpu.memory_space<vmem>>) attributes {dimension_semantics = [#tpu.dimension_semantics<parallel>], iteration_bounds = array<i64: 2>, scalar_prefetch = 0 : i64, scratch_operands = 0 : i64, tpu.core_type = #tpu.core_type<tc>, window_params = [{transform_indices = @transform_0, window_bounds = array<i64: 1024, 72>}, {pipeline_mode = #tpu.pipeline_mode<synchronous>, transform_indices = @transform_1, window_bounds = array<i64: 72, 128>}, {pipeline_mode = #tpu.pipeline_mode<synchronous>, transform_indices = @transform_2, window_bounds = array<i64: 1, 128>}, {pipeline_mode = #tpu.pipeline_mode<synchronous>, transform_indices = @transform_3, window_bounds = array<i64: 128, 128>}, {pipeline_mode = #tpu.pipeline_mode<synchronous>, transform_indices = @transform_4, window_bounds = array<i64: 1, 128>}, {transform_indices = @transform_5, window_bounds = array<i64: 1024, 128>}]} {
    %c0 = arith.constant 0 : index
    %c0_0 = arith.constant 0 : index
    %0 = vector.load %arg1[%c0, %c0_0] : memref<1024x72xf32, #tpu.memory_space<vmem>>, vector<1024x72xf32>
    %c0_1 = arith.constant 0 : index
    %c0_2 = arith.constant 0 : index
    %1 = vector.load %arg2[%c0_1, %c0_2] : memref<72x128xf32, #tpu.memory_space<vmem>>, vector<72x128xf32>
    %cst = arith.constant dense<0.000000e+00> : vector<1024x128xf32>
    %2 = tpu.matmul %0, %1, %cst {dimension_numbers = #tpu.dot_dimension_numbers<[1], [0], [0], [1], [0, 0, 1, 1], [], []>} : vector<1024x72xf32>, vector<72x128xf32>, vector<1024x128xf32> -> vector<1024x128xf32>
    %c0_3 = arith.constant 0 : index
    %c0_4 = arith.constant 0 : index
    %3 = vector.load %arg3[%c0_3, %c0_4] : memref<1x128xf32, #tpu.memory_space<vmem>>, vector<1x128xf32>
    %4 = vector.broadcast %3 : vector<1x128xf32> to vector<1024x128xf32>
    %5 = arith.addf %2, %4 : vector<1024x128xf32>
    %cst_5 = arith.constant 0.000000e+00 : f32
    %6 = vector.broadcast %cst_5 : f32 to vector<1024x128xf32>
    %7 = arith.maximumf %5, %6 : vector<1024x128xf32>
    %c0_6 = arith.constant 0 : index
    %c0_7 = arith.constant 0 : index
    %8 = vector.load %arg4[%c0_6, %c0_7] : memref<128x128xf32, #tpu.memory_space<vmem>>, vector<128x128xf32>
    %cst_8 = arith.constant dense<0.000000e+00> : vector<1024x128xf32>
    %9 = tpu.matmul %7, %8, %cst_8 {dimension_numbers = #tpu.dot_dimension_numbers<[1], [0], [0], [1], [0, 0, 1, 1], [], []>} : vector<1024x128xf32>, vector<128x128xf32>, vector<1024x128xf32> -> vector<1024x128xf32>
    %c0_9 = arith.constant 0 : index
    %c0_10 = arith.constant 0 : index
    %10 = vector.load %arg5[%c0_9, %c0_10] : memref<1x128xf32, #tpu.memory_space<vmem>>, vector<1x128xf32>
    %11 = vector.broadcast %10 : vector<1x128xf32> to vector<1024x128xf32>
    %12 = arith.addf %9, %11 : vector<1024x128xf32>
    %c0_11 = arith.constant 0 : index
    %c0_12 = arith.constant 0 : index
    %13 = vector.load %arg6[%c0_11, %c0_12] : memref<1024x128xf32, #tpu.memory_space<vmem>>, vector<1024x128xf32>
    tpu.vector_store %arg6[%c0_11, %c0_12], %12 {strides = array<i32>} : memref<1024x128xf32, #tpu.memory_space<vmem>>, vector<1024x128xf32>,
    return
  }
  func.func @transform_0(%arg0: i32) -> (i32, i32) {
    %c0_i32 = arith.constant 0 : i32
    %c0_i32_0 = arith.constant 0 : i32
    return %arg0, %c0_i32 : i32, i32
  }
  func.func @transform_1(%arg0: i32) -> (i32, i32) {
    %c0_i32 = arith.constant 0 : i32
    %c0_i32_0 = arith.constant 0 : i32
    %c0_i32_1 = arith.constant 0 : i32
    return %c0_i32, %c0_i32_0 : i32, i32
  }
  func.func @transform_2(%arg0: i32) -> (i32, i32) {
    %c0_i32 = arith.constant 0 : i32
    %c0_i32_0 = arith.constant 0 : i32
    %c0_i32_1 = arith.constant 0 : i32
    return %c0_i32, %c0_i32_0 : i32, i32
  }
  func.func @transform_3(%arg0: i32) -> (i32, i32) {
    %c0_i32 = arith.constant 0 : i32
    %c0_i32_0 = arith.constant 0 : i32
    %c0_i32_1 = arith.constant 0 : i32
    return %c0_i32, %c0_i32_0 : i32, i32
  }
  func.func @transform_4(%arg0: i32) -> (i32, i32) {
    %c0_i32 = arith.constant 0 : i32
    %c0_i32_0 = arith.constant 0 : i32
    %c0_i32_1 = arith.constant 0 : i32
    return %c0_i32, %c0_i32_0 : i32, i32
  }
  func.func @transform_5(%arg0: i32) -> (i32, i32) {
    %c0_i32 = arith.constant 0 : i32
    %c0_i32_0 = arith.constant 0 : i32
    return %arg0, %c0_i32 : i32, i32
  }
}

</mosaic_0001>

<llo_original>
// kernel: generator_forward.5
$region0: #{generator_forward.5}
  #allocation0 [shape = 'u32[]', space=smem, size = 0x4, offset = 0x4, fixed_abs, tag = 'smem constant byte address 0x4 - core index']
  #allocation1 [shape = 'u32[144,128]{1,0:T(1,128)}', space=vmem, size = 0x12000, scoped, tag = 'internal scratch']
  %s0 = inlined_call_operand.vmem [shape: f32[32,128], index: 0, kind: input, shape index: {}]
  %s1 = inlined_call_operand.vmem [shape: f32[128,128], index: 1, kind: input, shape index: {}]
  %s2 = inlined_call_operand.vmem [shape: f32[1,128], index: 2, kind: input, shape index: {}]
  %s3 = inlined_call_operand.vmem [shape: f32[32,128], index: 3, kind: output, shape index: {}]
  %s4 = sld [smem:[#allocation0]]
  $region22: #{generator_forward.5} parent=0
    _
  %s6 = ssub.s32 1, %s4
  %s7 = scalar_select 0, %s6, %s4
  // Predicated region
  $region2: #{generator_forward.5} parent=0 // pred_check
    _
  $region3: #{generator_forward.5} parent=0 // pred_check_branch
    %9 = sbr.rel (0) target = $region5
  $region4: #{generator_forward.5} parent=0 // pred_region
    _
  $region5: #{generator_forward.5} parent=0 // pred_fallthru
    _
  // Predicated region
  $region6: #{generator_forward.5} parent=0 // pred_check
    _
  $region7: #{generator_forward.5} parent=0 // pred_check_branch
    %11 = sbr.rel (0) target = $region9
  $region8: #{generator_forward.5} parent=0 // pred_region
    _
  $region9: #{generator_forward.5} parent=0 // pred_fallthru
    _
  // Predicated region
  $region10: #{generator_forward.5} parent=0 // pred_check
    _
  $region11: #{generator_forward.5} parent=0 // pred_check_branch
    %13 = sbr.rel (0) target = $region13
  $region12: #{generator_forward.5} parent=0 // pred_region
    _
  $region13: #{generator_forward.5} parent=0 // pred_fallthru
    _
  %v14 = vld [vmem:[%s0] sm:$0xff]
  %v15 = vld [vmem:[%s0 + $0x8] sm:$0xff]
  %v16 = vld [vmem:[%s0 + $0x10] sm:$0xff]
  %v17 = vld [vmem:[%s0 + $0x18] sm:$0xff]
  %v18 = vld [vmem:[%s1] sm:$0xff]
  %v19 = vld [vmem:[%s1 + $0x8] sm:$0xff]
  %v20 = vld [vmem:[%s1 + $0x10] sm:$0xff]
  %v21 = vld [vmem:[%s1 + $0x18] sm:$0xff]
  %v22 = vld [vmem:[%s1 + $0x20] sm:$0xff]
  %v23 = vld [vmem:[%s1 + $0x28] sm:$0xff]
  %v24 = vld [vmem:[%s1 + $0x30] sm:$0xff]
  %v25 = vld [vmem:[%s1 + $0x38] sm:$0xff]
  %v26 = vld [vmem:[%s1 + $0x40] sm:$0xff]
  %v27 = vld [vmem:[%s1 + $0x48] sm:$0xff]
  %v28 = vld [vmem:[%s1 + $0x50] sm:$0xff]
  %v29 = vld [vmem:[%s1 + $0x58] sm:$0xff]
  %v30 = vld [vmem:[%s1 + $0x60] sm:$0xff]
  %v31 = vld [vmem:[%s1 + $0x68] sm:$0xff]
  %v32 = vld [vmem:[%s1 + $0x70] sm:$0xff]
  %v33 = vld [vmem:[%s1 + $0x78] sm:$0xff]
  %v34 = vld [vmem:[%s2] sm:$0x1]
  %v36 = vlaneseq
  %v37 = vshrl.u32 %v36, 7
  %v38 = vsub.s32 0, %v37
  %v39 = vrot.slane %v34, %v38
  %41 = vmatprep.subr.mxu0 0.0
  %42 = vmatpush1.msra.mxu0 %v33
  %43 = vmatprep.subr.mxu0 0.0
  %44 = vmatpush1.msra.mxu0 %v32
  %45 = vmatprep.subr.mxu0 0.0
  %46 = vmatpush1.msra.mxu0 %v31
  %47 = vmatprep.subr.mxu0 0.0
  %48 = vmatpush1.msra.mxu0 %v30
  %49 = vmatprep.subr.mxu0 0.0
  %50 = vmatpush1.msra.mxu0 %v29
  %51 = vmatprep.subr.mxu0 0.0
  %52 = vmatpush1.msra.mxu0 %v28
  %53 = vmatprep.subr.mxu0 0.0
  %54 = vmatpush1.msra.mxu0 %v27
  %55 = vmatprep.subr.mxu0 0.0
  %56 = vmatpush1.msra.mxu0 %v26
  %57 = vmatprep.subr.mxu0 0.0
  %58 = vmatpush1.msra.mxu0 %v25
  %59 = vmatprep.subr.mxu0 0.0
  %60 = vmatpush1.msra.mxu0 %v24
  %61 = vmatprep.subr.mxu0 0.0
  %62 = vmatpush1.msra.mxu0 %v23
  %63 = vmatprep.subr.mxu0 0.0
  %64 = vmatpush1.msra.mxu0 %v22
  %65 = vmatprep.subr.mxu0 0.0
  %66 = vmatpush1.msra.mxu0 %v21
  %67 = vmatprep.subr.mxu0 0.0
  %68 = vmatpush1.msra.mxu0 %v20
  %69 = vmatprep.subr.mxu0 0.0
  %70 = vmatpush1.msra.mxu0 %v19
  %71 = vmatprep.subr.mxu0 0.0
  %72 = vmatpush1.msra.mxu0 %v18
  %73 = vmatprep.subr.mxu0 0.0
  %74 = vmatpush2.msra.mxu0 0.0
  %75 = vmatprep.subr.mxu0 0.0
  %76 = vmatpush2.msra.mxu0 0.0
  %77 = vmatprep.subr.mxu0 0.0
  %78 = vmatpush2.msra.mxu0 0.0
  %79 = vmatprep.subr.mxu0 0.0
  %80 = vmatpush2.msra.mxu0 0.0
  %81 = vmatprep.subr.mxu0 0.0
  %82 = vmatpush2.msra.mxu0 0.0
  %83 = vmatprep.subr.mxu0 0.0
  %84 = vmatpush2.msra.mxu0 0.0
  %85 = vmatprep.subr.mxu0 0.0
  %86 = vmatpush2.msra.mxu0 0.0
  %87 = vmatprep.subr.mxu0 0.0
  %88 = vmatpush2.msra.mxu0 0.0
  %89 = vmatprep.subr.mxu0 0.0
  %90 = vmatpush2.msra.mxu0 0.0
  %91 = vmatprep.subr.mxu0 0.0
  %92 = vmatpush2.msra.mxu0 0.0
  %93 = vmatprep.subr.mxu0 0.0
  %94 = vmatpush2.msra.mxu0 0.0
  %95 = vmatprep.subr.mxu0 0.0
  %96 = vmatpush2.msra.mxu0 0.0
  %97 = vmatprep.subr.mxu0 0.0
  %98 = vmatpush2.msra.mxu0 0.0
  %99 = vmatprep.subr.mxu0 0.0
  %100 = vmatpush2.msra.mxu0 0.0
  %101 = vmatprep.subr.mxu0 0.0
  %102 = vmatpush2.msra.mxu0 0.0
  %103 = vmatprep.subr.mxu0 0.0
  %104 = vmatpush2.msra.mxu0 0.0
  %105 = vmatprep.mubr.f32.mxu0 0.0
  %106 = vmatmul.mubr.f32.gmra.mxu0 %v14
  %v107 = vpop.f32.mrf.mxu0
  %v108 = vadd.f32 %v39, %v107
  %v109 = vpop.f32.mrf.mxu0
  %110 = vmatprep.mubr.f32.mxu0 0.0
  %111 = vmatmul.mubr.f32.gmra.mxu0 %v15
  %v112 = vpop.f32.mrf.mxu0
  %v113 = vadd.f32 %v39, %v112
  %v114 = vpop.f32.mrf.mxu0
  %115 = vmatprep.mubr.f32.mxu0 0.0
  %116 = vmatmul.mubr.f32.gmra.mxu0 %v16
  %v117 = vpop.f32.mrf.mxu0
  %v118 = vadd.f32 %v39, %v117
  %v119 = vpop.f32.mrf.mxu0
  %120 = vmatprep.mubr.f32.mxu0 0.0
  %121 = vmatmul.mubr.f32.gmra.mxu0 %v17
  %v122 = vpop.f32.mrf.mxu0
  %v123 = vadd.f32 %v39, %v122
  %v124 = vpop.f32.mrf.mxu0
  %125 = vdwg.mxu0
  %v126 = vmax.f32 %v108, 0.0
  %v127 = vmax.f32 %v113, 0.0
  %v128 = vmax.f32 %v118, 0.0
  %v129 = vmax.f32 %v123, 0.0
  %130 = vst [vmem:[%s3] sm:$0xff] %v126
  %131 = vst [vmem:[%s3 + $0x8] sm:$0xff] %v127
  %132 = vst [vmem:[%s3 + $0x10] sm:$0xff] %v128
  %133 = vst [vmem:[%s3 + $0x18] sm:$0xff] %v129
  // Predicated region
  $region14: #{generator_forward.5} parent=0 // pred_check
    _
  $region15: #{generator_forward.5} parent=0 // pred_check_branch
    %135 = sbr.rel (0) target = $region17
  $region16: #{generator_forward.5} parent=0 // pred_region
    _
  $region17: #{generator_forward.5} parent=0 // pred_fallthru
    _
  // Predicated region
  $region18: #{generator_forward.5} parent=0 // pred_check
    _
  $region19: #{generator_forward.5} parent=0 // pred_check_branch
    %137 = sbr.rel (0) target = $region21
  $region20: #{generator_forward.5} parent=0 // pred_region
    _
  $region21: #{generator_forward.5} parent=0 // pred_fallthru
    _

// kernel: tile.28
$region0: #{tile.28}
  #allocation0 [shape = 's32[1]{0}', space=sflag, size = 0x4, scoped, tag = 'scoped memory for tile.28']
  %s0 = inlined_call_operand.vmem [shape: f32[16], index: 0, kind: input, shape index: {}]
  %s1 = inlined_call_operand.vmem [shape: f32[4,16], index: 1, kind: output, shape index: {}]
  // Predicated region
  $region2: #{tile.28} parent=0 // pred_check
    _
  $region3: #{tile.28} parent=0 // pred_check_branch
    %3 = sbr.rel (0) target = $region5
  $region4: #{tile.28} parent=0 // pred_region
    _
  $region5: #{tile.28} parent=0 // pred_fallthru
    _
  %v4 = vld [vmem:[%s0] ss:$0 sm:$0xff]
  %5 = vst [vmem:[%s1] sm:$0xf] %v4

// kernel: tile.29
$region0: #{tile.29}
  %s0 = inlined_call_operand.vmem [shape: f32[4,16], index: 0, kind: input, shape index: {}]
  %s1 = inlined_call_operand.vmem [shape: f32[1,64], index: 1, kind: output, shape index: {}]
  $region1: #{tile.29} parent=0
    #allocation0 [shape = 'u8[4096]{0}', space=vmem, size = 0x1000, scoped, tag = 'scoped mem for output reshape']
    #allocation1 [shape = 'u8[4096]{0}', space=vmem, size = 0x1000, scoped, tag = 'scoped mem for input reshape']
    %s3 = sshll.u32 1, 4
    %s4 = ssub.s32 %s3, 1
    %v5 = vld [vmem:[%s0] sm:%s4]
    %6 = vst [vmem:[#allocation1] sm:%s4] %v5
    %v7 = vld [vmem:[#allocation1] sm:$0x1]
    %vm8 = vcmask 130048
    %9 = vst.msk [vmem:[#allocation0] sm:$0x1] %vm8, %v7
    %s10 = scalar_lea.vmem [#allocation1], 3
    %v11 = vld [vmem:[%s10] sm:$0x1]
    %12 = vrot.lane.b32.xlu0 %v11, 48
    %v13 = vpop.permute.xlu0 %12
    %vm14 = vcmask 523648
    %15 = vst.msk [vmem:[#allocation0] sm:$0x1] %vm14, %v13
    %s16 = scalar_lea.vmem [#allocation1], 2
    %v17 = vld [vmem:[%s16] sm:$0x1]
    %18 = vrot.lane.b32.xlu0 %v17, 32
    %v19 = vpop.permute.xlu0 %18
    %vm20 = vcmask 392448
    %21 = vst.msk [vmem:[#allocation0] sm:$0x1] %vm20, %v19
    %s22 = scalar_lea.vmem [#allocation1], 1
    %v23 = vld [vmem:[%s22] sm:$0x1]
    %24 = vrot.lane.b32.xlu0 %v23, 16
    %v25 = vpop.permute.xlu0 %24
    %vm26 = vcmask 261248
    %27 = vst.msk [vmem:[#allocation0] sm:$0x1] %vm26, %v25
    %s29 = sshll.u32 1, 1
    %s30 = ssub.s32 %s29, 1
    %v32 = vld [vmem:[#allocation0] sm:%s30]
    %s33 = sshll.u32 1, 1
    %s34 = ssub.s32 %s33, 1
    %35 = vst [vmem:[%s1] sm:%s34] %v32

// kernel: generator_forward.6
$region0: #{generator_forward.6}
  #allocation0 [shape = 'u32[]', space=smem, size = 0x4, offset = 0x4, fixed_abs, tag = 'smem constant byte address 0x4 - core index']
  #allocation1 [shape = 'u32[144,128]{1,0:T(1,128)}', space=vmem, size = 0x12000, scoped, tag = 'internal scratch']
  %s0 = inlined_call_operand.vmem [shape: f32[32,144], index: 0, kind: input, shape index: {}]
  %s1 = inlined_call_operand.vmem [shape: f32[144,128], index: 1, kind: input, shape index: {}]
  %s2 = inlined_call_operand.vmem [shape: f32[1,128], index: 2, kind: input, shape index: {}]
  %s3 = inlined_call_operand.vmem [shape: f32[32,128], index: 3, kind: output, shape index: {}]
  %s4 = sld [smem:[#allocation0]]
  $region22: #{generator_forward.6} parent=0
    _
  %s6 = ssub.s32 1, %s4
  %s7 = scalar_select 0, %s6, %s4
  // Predicated region
  $region2: #{generator_forward.6} parent=0 // pred_check
    _
  $region3: #{generator_forward.6} parent=0 // pred_check_branch
    %9 = sbr.rel (0) target = $region5
  $region4: #{generator_forward.6} parent=0 // pred_region
    _
  $region5: #{generator_forward.6} parent=0 // pred_fallthru
    _
  // Predicated region
  $region6: #{generator_forward.6} parent=0 // pred_check
    _
  $region7: #{generator_forward.6} parent=0 // pred_check_branch
    %11 = sbr.rel (0) target = $region9
  $region8: #{generator_forward.6} parent=0 // pred_region
    _
  $region9: #{generator_forward.6} parent=0 // pred_fallthru
    _
  // Predicated region
  $region10: #{generator_forward.6} parent=0 // pred_check
    _
  $region11: #{generator_forward.6} parent=0 // pred_check_branch
    %13 = sbr.rel (0) target = $region13
  $region12: #{generator_forward.6} parent=0 // pred_region
    _
  $region13: #{generator_forward.6} parent=0 // pred_fallthru
    _
  %v14 = vld [vmem:[%s0] sm:$0xff]
  %v15 = vld [vmem:[%s0 + $0x8] sm:$0xff]
  %v16 = vld [vmem:[%s0 + $0x10] sm:$0xff]
  %v17 = vld [vmem:[%s0 + $0x18] sm:$0xff]
  %v18 = vld [vmem:[%s0 + $0x20] sm:$0xff]
  %v19 = vld [vmem:[%s0 + $0x28] sm:$0xff]
  %v20 = vld [vmem:[%s0 + $0x30] sm:$0xff]
  %v21 = vld [vmem:[%s0 + $0x38] sm:$0xff]
  %v22 = vld [vmem:[%s1] sm:$0xff]
  %v23 = vld [vmem:[%s1 + $0x8] sm:$0xff]
  %v24 = vld [vmem:[%s1 + $0x10] sm:$0xff]
  %v25 = vld [vmem:[%s1 + $0x18] sm:$0xff]
  %v26 = vld [vmem:[%s1 + $0x20] sm:$0xff]
  %v27 = vld [vmem:[%s1 + $0x28] sm:$0xff]
  %v28 = vld [vmem:[%s1 + $0x30] sm:$0xff]
  %v29 = vld [vmem:[%s1 + $0x38] sm:$0xff]
  %v30 = vld [vmem:[%s1 + $0x40] sm:$0xff]
  %v31 = vld [vmem:[%s1 + $0x48] sm:$0xff]
  %v32 = vld [vmem:[%s1 + $0x50] sm:$0xff]
  %v33 = vld [vmem:[%s1 + $0x58] sm:$0xff]
  %v34 = vld [vmem:[%s1 + $0x60] sm:$0xff]
  %v35 = vld [vmem:[%s1 + $0x68] sm:$0xff]
  %v36 = vld [vmem:[%s1 + $0x70] sm:$0xff]
  %v37 = vld [vmem:[%s1 + $0x78] sm:$0xff]
  %v38 = vld [vmem:[%s1 + $0x80] sm:$0xff]
  %v39 = vld [vmem:[%s1 + $0x88] sm:$0xff]
  %v40 = vld [vmem:[%s2] sm:$0x1]
  %v42 = vlaneseq
  %v43 = vshrl.u32 %v42, 7
  %v44 = vsub.s32 0, %v43
  %v45 = vrot.slane %v40, %v44
  %vm47 = vcmask 130048
  %v49 = vsel %vm47, %v15, 0
  %v52 = vsel %vm47, %v17, 0
  %v55 = vsel %vm47, %v19, 0
  %v58 = vsel %vm47, %v21, 0
  %60 = vmatprep.subr.mxu0 0.0
  %61 = vmatpush1.msra.mxu0 %v37
  %62 = vmatprep.subr.mxu0 0.0
  %63 = vmatpush1.msra.mxu0 %v36
  %64 = vmatprep.subr.mxu0 0.0
  %65 = vmatpush1.msra.mxu0 %v35
  %66 = vmatprep.subr.mxu0 0.0
  %67 = vmatpush1.msra.mxu0 %v34
  %68 = vmatprep.subr.mxu0 0.0
  %69 = vmatpush1.msra.mxu0 %v33
  %70 = vmatprep.subr.mxu0 0.0
  %71 = vmatpush1.msra.mxu0 %v32
  %72 = vmatprep.subr.mxu0 0.0
  %73 = vmatpush1.msra.mxu0 %v31
  %74 = vmatprep.subr.mxu0 0.0
  %75 = vmatpush1.msra.mxu0 %v30
  %76 = vmatprep.subr.mxu0 0.0
  %77 = vmatpush1.msra.mxu0 %v29
  %78 = vmatprep.subr.mxu0 0.0
  %79 = vmatpush1.msra.mxu0 %v28
  %80 = vmatprep.subr.mxu0 0.0
  %81 = vmatpush1.msra.mxu0 %v27
  %82 = vmatprep.subr.mxu0 0.0
  %83 = vmatpush1.msra.mxu0 %v26
  %84 = vmatprep.subr.mxu0 0.0
  %85 = vmatpush1.msra.mxu0 %v25
  %86 = vmatprep.subr.mxu0 0.0
  %87 = vmatpush1.msra.mxu0 %v24
  %88 = vmatprep.subr.mxu0 0.0
  %89 = vmatpush1.msra.mxu0 %v23
  %90 = vmatprep.subr.mxu0 0.0
  %91 = vmatpush1.msra.mxu0 %v22
  %92 = vmatprep.subr.mxu0 0.0
  %93 = vmatpush2.msra.mxu0 0.0
  %94 = vmatprep.subr.mxu0 0.0
  %95 = vmatpush2.msra.mxu0 0.0
  %96 = vmatprep.subr.mxu0 0.0
  %97 = vmatpush2.msra.mxu0 0.0
  %98 = vmatprep.subr.mxu0 0.0
  %99 = vmatpush2.msra.mxu0 0.0
  %100 = vmatprep.subr.mxu0 0.0
  %101 = vmatpush2.msra.mxu0 0.0
  %102 = vmatprep.subr.mxu0 0.0
  %103 = vmatpush2.msra.mxu0 0.0
  %104 = vmatprep.subr.mxu0 0.0
  %105 = vmatpush2.msra.mxu0 0.0
  %106 = vmatprep.subr.mxu0 0.0
  %107 = vmatpush2.msra.mxu0 0.0
  %108 = vmatprep.subr.mxu0 0.0
  %109 = vmatpush2.msra.mxu0 0.0
  %110 = vmatprep.subr.mxu0 0.0
  %111 = vmatpush2.msra.mxu0 0.0
  %112 = vmatprep.subr.mxu0 0.0
  %113 = vmatpush2.msra.mxu0 0.0
  %114 = vmatprep.subr.mxu0 0.0
  %115 = vmatpush2.msra.mxu0 0.0
  %116 = vmatprep.subr.mxu0 0.0
  %117 = vmatpush2.msra.mxu0 0.0
  %118 = vmatprep.subr.mxu0 0.0
  %119 = vmatpush2.msra.mxu0 0.0
  %120 = vmatprep.subr.mxu0 0.0
  %121 = vmatpush2.msra.mxu0 %v39
  %122 = vmatprep.subr.mxu0 0.0
  %123 = vmatpush2.msra.mxu0 %v38
  %124 = vmatprep.mubr.f32.mxu0 %v49
  %125 = vmatmul.mubr.f32.gmra.mxu0 %v14
  %v126 = vpop.f32.mrf.mxu0
  %v127 = vadd.f32 %v45, %v126
  %v128 = vpop.f32.mrf.mxu0
  %129 = vmatprep.mubr.f32.mxu0 %v52
  %130 = vmatmul.mubr.f32.gmra.mxu0 %v16
  %v131 = vpop.f32.mrf.mxu0
  %v132 = vadd.f32 %v45, %v131
  %v133 = vpop.f32.mrf.mxu0
  %134 = vmatprep.mubr.f32.mxu0 %v55
  %135 = vmatmul.mubr.f32.gmra.mxu0 %v18
  %v136 = vpop.f32.mrf.mxu0
  %v137 = vadd.f32 %v45, %v136
  %v138 = vpop.f32.mrf.mxu0
  %139 = vmatprep.mubr.f32.mxu0 %v58
  %140 = vmatmul.mubr.f32.gmra.mxu0 %v20
  %v141 = vpop.f32.mrf.mxu0
  %v142 = vadd.f32 %v45, %v141
  %v143 = vpop.f32.mrf.mxu0
  %144 = vdwg.mxu0
  %v145 = vmax.f32 %v127, 0.0
  %v146 = vmax.f32 %v132, 0.0
  %v147 = vmax.f32 %v137, 0.0
  %v148 = vmax.f32 %v142, 0.0
  %149 = vst [vmem:[%s3] sm:$0xff] %v145
  %150 = vst [vmem:[%s3 + $0x8] sm:$0xff] %v146
  %151 = vst [vmem:[%s3 + $0x10] sm:$0xff] %v147
  %152 = vst [vmem:[%s3 + $0x18] sm:$0xff] %v148
  // Predicated region
  $region14: #{generator_forward.6} parent=0 // pred_check
    _
  $region15: #{generator_forward.6} parent=0 // pred_check_branch
    %154 = sbr.rel (0) target = $region17
  $region16: #{generator_forward.6} parent=0 // pred_region
    _
  $region17: #{generator_forward.6} parent=0 // pred_fallthru
    _
  // Predicated region
  $region18: #{generator_forward.6} parent=0 // pred_check
    _
  $region19: #{generator_forward.6} parent=0 // pred_check_branch
    %156 = sbr.rel (0) target = $region21
  $region20: #{generator_forward.6} parent=0 // pred_region
    _
  $region21: #{generator_forward.6} parent=0 // pred_fallthru
    _

// kernel: tile.33
$region0: #{tile.33}
  #allocation0 [shape = 's32[1]{0}', space=sflag, size = 0x4, scoped, tag = 'scoped memory for tile.33']
  %s0 = inlined_call_operand.vmem [shape: f32[8], index: 0, kind: input, shape index: {}]
  %s1 = inlined_call_operand.vmem [shape: f32[4,8], index: 1, kind: output, shape index: {}]
  // Predicated region
  $region2: #{tile.33} parent=0 // pred_check
    _
  $region3: #{tile.33} parent=0 // pred_check_branch
    %3 = sbr.rel (0) target = $region5
  $region4: #{tile.33} parent=0 // pred_region
    _
  $region5: #{tile.33} parent=0 // pred_fallthru
    _
  %v4 = vld [vmem:[%s0] ss:$0 sm:$0xff]
  %5 = vst [vmem:[%s1] sm:$0xf] %v4

// kernel: tile.34
$region0: #{tile.34}
  %s0 = inlined_call_operand.vmem [shape: f32[4,8], index: 0, kind: input, shape index: {}]
  %s1 = inlined_call_operand.vmem [shape: f32[1,32], index: 1, kind: output, shape index: {}]
  $region1: #{tile.34} parent=0
    #allocation0 [shape = 'u8[4096]{0}', space=vmem, size = 0x1000, scoped, tag = 'scoped mem for output reshape']
    #allocation1 [shape = 'u8[4096]{0}', space=vmem, size = 0x1000, scoped, tag = 'scoped mem for input reshape']
    %s3 = sshll.u32 1, 4
    %s4 = ssub.s32 %s3, 1
    %v5 = vld [vmem:[%s0] sm:%s4]
    %6 = vst [vmem:[#allocation1] sm:%s4] %v5
    %v7 = vld [vmem:[#allocation1] sm:$0x1]
    %vm8 = vcmask 64512
    %9 = vst.msk [vmem:[#allocation0] sm:$0x1] %vm8, %v7
    %s10 = scalar_lea.vmem [#allocation1], 3
    %v11 = vld [vmem:[%s10] sm:$0x1]
    %12 = vrot.lane.b32.xlu0 %v11, 24
    %v13 = vpop.permute.xlu0 %12
    %vm14 = vcmask 261312
    %15 = vst.msk [vmem:[#allocation0] sm:$0x1] %vm14, %v13
    %s16 = scalar_lea.vmem [#allocation1], 2
    %v17 = vld [vmem:[%s16] sm:$0x1]
    %18 = vrot.lane.b32.xlu0 %v17, 16
    %v19 = vpop.permute.xlu0 %18
    %vm20 = vcmask 195712
    %21 = vst.msk [vmem:[#allocation0] sm:$0x1] %vm20, %v19
    %s22 = scalar_lea.vmem [#allocation1], 1
    %v23 = vld [vmem:[%s22] sm:$0x1]
    %24 = vrot.lane.b32.xlu0 %v23, 8
    %v25 = vpop.permute.xlu0 %24
    %vm26 = vcmask 130112
    %27 = vst.msk [vmem:[#allocation0] sm:$0x1] %vm26, %v25
    %s29 = sshll.u32 1, 1
    %s30 = ssub.s32 %s29, 1
    %v32 = vld [vmem:[#allocation0] sm:%s30]
    %s33 = sshll.u32 1, 1
    %s34 = ssub.s32 %s33, 1
    %35 = vst [vmem:[%s1] sm:%s34] %v32

// kernel: generator_forward.7
$region0: #{generator_forward.7}
  #allocation0 [shape = 'u32[]', space=smem, size = 0x4, offset = 0x4, fixed_abs, tag = 'smem constant byte address 0x4 - core index']
  #allocation1 [shape = 'u32[144,128]{1,0:T(1,128)}', space=vmem, size = 0x12000, scoped, tag = 'internal scratch']
  %s0 = inlined_call_operand.vmem [shape: f32[128,144], index: 0, kind: input, shape index: {}]
  %s1 = inlined_call_operand.vmem [shape: f32[144,128], index: 1, kind: input, shape index: {}]
  %s2 = inlined_call_operand.vmem [shape: f32[1,128], index: 2, kind: input, shape index: {}]
  %s3 = inlined_call_operand.vmem [shape: f32[128,128], index: 3, kind: output, shape index: {}]
  %s4 = sld [smem:[#allocation0]]
  $region22: #{generator_forward.7} parent=0
    _
  %s6 = ssub.s32 1, %s4
  %s7 = scalar_select 0, %s6, %s4
  // Predicated region
  $region2: #{generator_forward.7} parent=0 // pred_check
    _
  $region3: #{generator_forward.7} parent=0 // pred_check_branch
    %9 = sbr.rel (0) target = $region5
  $region4: #{generator_forward.7} parent=0 // pred_region
    _
  $region5: #{generator_forward.7} parent=0 // pred_fallthru
    _
  // Predicated region
  $region6: #{generator_forward.7} parent=0 // pred_check
    _
  $region7: #{generator_forward.7} parent=0 // pred_check_branch
    %11 = sbr.rel (0) target = $region9
  $region8: #{generator_forward.7} parent=0 // pred_region
    _
  $region9: #{generator_forward.7} parent=0 // pred_fallthru
    _
  // Predicated region
  $region10: #{generator_forward.7} parent=0 // pred_check
    _
  $region11: #{generator_forward.7} parent=0 // pred_check_branch
    %13 = sbr.rel (0) target = $region13
  $region12: #{generator_forward.7} parent=0 // pred_region
    _
  $region13: #{generator_forward.7} parent=0 // pred_fallthru
    _
  %v14 = vld [vmem:[%s0] sm:$0xff]
  %v15 = vld [vmem:[%s0 + $0x8] sm:$0xff]
  %v16 = vld [vmem:[%s0 + $0x10] sm:$0xff]
  %v17 = vld [vmem:[%s0 + $0x18] sm:$0xff]
  %v18 = vld [vmem:[%s0 + $0x20] sm:$0xff]
  %v19 = vld [vmem:[%s0 + $0x28] sm:$0xff]
  %v20 = vld [vmem:[%s0 + $0x30] sm:$0xff]
  %v21 = vld [vmem:[%s0 + $0x38] sm:$0xff]
  %v22 = vld [vmem:[%s0 + $0x40] sm:$0xff]
  %v23 = vld [vmem:[%s0 + $0x48] sm:$0xff]
  %v24 = vld [vmem:[%s0 + $0x50] sm:$0xff]
  %v25 = vld [vmem:[%s0 + $0x58] sm:$0xff]
  %v26 = vld [vmem:[%s0 + $0x60] sm:$0xff]
  %v27 = vld [vmem:[%s0 + $0x68] sm:$0xff]
  %v28 = vld [vmem:[%s0 + $0x70] sm:$0xff]
  %v29 = vld [vmem:[%s0 + $0x78] sm:$0xff]
  %v30 = vld [vmem:[%s0 + $0x80] sm:$0xff]
  %v31 = vld [vmem:[%s0 + $0x88] sm:$0xff]
  %v32 = vld [vmem:[%s0 + $0x90] sm:$0xff]
  %v33 = vld [vmem:[%s0 + $0x98] sm:$0xff]
  %v34 = vld [vmem:[%s0 + $0xa0] sm:$0xff]
  %v35 = vld [vmem:[%s0 + $0xa8] sm:$0xff]
  %v36 = vld [vmem:[%s0 + $0xb0] sm:$0xff]
  %v37 = vld [vmem:[%s0 + $0xb8] sm:$0xff]
  %v38 = vld [vmem:[%s0 + $0xc0] sm:$0xff]
  %v39 = vld [vmem:[%s0 + $0xc8] sm:$0xff]
  %v40 = vld [vmem:[%s0 + $0xd0] sm:$0xff]
  %v41 = vld [vmem:[%s0 + $0xd8] sm:$0xff]
  %v42 = vld [vmem:[%s0 + $0xe0] sm:$0xff]
  %v43 = vld [vmem:[%s0 + $0xe8] sm:$0xff]
  %v44 = vld [vmem:[%s0 + $0xf0] sm:$0xff]
  %v45 = vld [vmem:[%s0 + $0xf8] sm:$0xff]
  %v46 = vld [vmem:[%s1] sm:$0xff]
  %v47 = vld [vmem:[%s1 + $0x8] sm:$0xff]
  %v48 = vld [vmem:[%s1 + $0x10] sm:$0xff]
  %v49 = vld [vmem:[%s1 + $0x18] sm:$0xff]
  %v50 = vld [vmem:[%s1 + $0x20] sm:$0xff]
  %v51 = vld [vmem:[%s1 + $0x28] sm:$0xff]
  %v52 = vld [vmem:[%s1 + $0x30] sm:$0xff]
  %v53 = vld [vmem:[%s1 + $0x38] sm:$0xff]
  %v54 = vld [vmem:[%s1 + $0x40] sm:$0xff]
  %v55 = vld [vmem:[%s1 + $0x48] sm:$0xff]
  %v56 = vld [vmem:[%s1 + $0x50] sm:$0xff]
  %v57 = vld [vmem:[%s1 + $0x58] sm:$0xff]
  %v58 = vld [vmem:[%s1 + $0x60] sm:$0xff]
  %v59 = vld [vmem:[%s1 + $0x68] sm:$0xff]
  %v60 = vld [vmem:[%s1 + $0x70] sm:$0xff]
  %v61 = vld [vmem:[%s1 + $0x78] sm:$0xff]
  %v62 = vld [vmem:[%s1 + $0x80] sm:$0xff]
  %v63 = vld [vmem:[%s1 + $0x88] sm:$0xff]
  %v64 = vld [vmem:[%s2] sm:$0x1]
  %v66 = vlaneseq
  %v67 = vshrl.u32 %v66, 7
  %v68 = vsub.s32 0, %v67
  %v69 = vrot.slane %v64, %v68
  %vm71 = vcmask 130048
  %v73 = vsel %vm71, %v15, 0
  %v76 = vsel %vm71, %v17, 0
  %v79 = vsel %vm71, %v19, 0
  %v82 = vsel %vm71, %v21, 0
  %v85 = vsel %vm71, %v23, 0
  %v88 = vsel %vm71, %v25, 0
  %v91 = vsel %vm71, %v27, 0
  %v94 = vsel %vm71, %v29, 0
  %v97 = vsel %vm71, %v31, 0
  %v100 = vsel %vm71, %v33, 0
  %v103 = vsel %vm71, %v35, 0
  %v106 = vsel %vm71, %v37, 0
  %v109 = vsel %vm71, %v39, 0
  %v112 = vsel %vm71, %v41, 0
  %v115 = vsel %vm71, %v43, 0
  %v118 = vsel %vm71, %v45, 0
  %120 = vmatprep.subr.mxu0 0.0
  %121 = vmatpush1.msra.mxu0 %v61
  %122 = vmatprep.subr.mxu0 0.0
  %123 = vmatpush1.msra.mxu0 %v60
  %124 = vmatprep.subr.mxu0 0.0
  %125 = vmatpush1.msra.mxu0 %v59
  %126 = vmatprep.subr.mxu0 0.0
  %127 = vmatpush1.msra.mxu0 %v58
  %128 = vmatprep.subr.mxu0 0.0
  %129 = vmatpush1.msra.mxu0 %v57
  %130 = vmatprep.subr.mxu0 0.0
  %131 = vmatpush1.msra.mxu0 %v56
  %132 = vmatprep.subr.mxu0 0.0
  %133 = vmatpush1.msra.mxu0 %v55
  %134 = vmatprep.subr.mxu0 0.0
  %135 = vmatpush1.msra.mxu0 %v54
  %136 = vmatprep.subr.mxu0 0.0
  %137 = vmatpush1.msra.mxu0 %v53
  %138 = vmatprep.subr.mxu0 0.0
  %139 = vmatpush1.msra.mxu0 %v52
  %140 = vmatprep.subr.mxu0 0.0
  %141 = vmatpush1.msra.mxu0 %v51
  %142 = vmatprep.subr.mxu0 0.0
  %143 = vmatpush1.msra.mxu0 %v50
  %144 = vmatprep.subr.mxu0 0.0
  %145 = vmatpush1.msra.mxu0 %v49
  %146 = vmatprep.subr.mxu0 0.0
  %147 = vmatpush1.msra.mxu0 %v48
  %148 = vmatprep.subr.mxu0 0.0
  %149 = vmatpush1.msra.mxu0 %v47
  %150 = vmatprep.subr.mxu0 0.0
  %151 = vmatpush1.msra.mxu0 %v46
  %152 = vmatprep.subr.mxu0 0.0
  %153 = vmatpush2.msra.mxu0 0.0
  %154 = vmatprep.subr.mxu0 0.0
  %155 = vmatpush2.msra.mxu0 0.0
  %156 = vmatprep.subr.mxu0 0.0
  %157 = vmatpush2.msra.mxu0 0.0
  %158 = vmatprep.subr.mxu0 0.0
  %159 = vmatpush2.msra.mxu0 0.0
  %160 = vmatprep.subr.mxu0 0.0
  %161 = vmatpush2.msra.mxu0 0.0
  %162 = vmatprep.subr.mxu0 0.0
  %163 = vmatpush2.msra.mxu0 0.0
  %164 = vmatprep.subr.mxu0 0.0
  %165 = vmatpush2.msra.mxu0 0.0
  %166 = vmatprep.subr.mxu0 0.0
  %167 = vmatpush2.msra.mxu0 0.0
  %168 = vmatprep.subr.mxu0 0.0
  %169 = vmatpush2.msra.mxu0 0.0
  %170 = vmatprep.subr.mxu0 0.0
  %171 = vmatpush2.msra.mxu0 0.0
  %172 = vmatprep.subr.mxu0 0.0
  %173 = vmatpush2.msra.mxu0 0.0
  %174 = vmatprep.subr.mxu0 0.0
  %175 = vmatpush2.msra.mxu0 0.0
  %176 = vmatprep.subr.mxu0 0.0
  %177 = vmatpush2.msra.mxu0 0.0
  %178 = vmatprep.subr.mxu0 0.0
  %179 = vmatpush2.msra.mxu0 0.0
  %180 = vmatprep.subr.mxu0 0.0
  %181 = vmatpush2.msra.mxu0 %v63
  %182 = vmatprep.subr.mxu0 0.0
  %183 = vmatpush2.msra.mxu0 %v62
  %184 = vmatprep.mubr.f32.mxu0 %v73
  %185 = vmatmul.mubr.f32.gmra.mxu0 %v14
  %v186 = vpop.f32.mrf.mxu0
  %v187 = vadd.f32 %v69, %v186
  %v188 = vpop.f32.mrf.mxu0
  %189 = vmatprep.mubr.f32.mxu0 %v76
  %190 = vmatmul.mubr.f32.gmra.mxu0 %v16
  %v191 = vpop.f32.mrf.mxu0
  %v192 = vadd.f32 %v69, %v191
  %v193 = vpop.f32.mrf.mxu0
  %194 = vmatprep.mubr.f32.mxu0 %v79
  %195 = vmatmul.mubr.f32.gmra.mxu0 %v18
  %v196 = vpop.f32.mrf.mxu0
  %v197 = vadd.f32 %v69, %v196
  %v198 = vpop.f32.mrf.mxu0
  %199 = vmatprep.mubr.f32.mxu0 %v82
  %200 = vmatmul.mubr.f32.gmra.mxu0 %v20
  %v201 = vpop.f32.mrf.mxu0
  %v202 = vadd.f32 %v69, %v201
  %v203 = vpop.f32.mrf.mxu0
  %204 = vmatprep.mubr.f32.mxu0 %v85
  %205 = vmatmul.mubr.f32.gmra.mxu0 %v22
  %v206 = vpop.f32.mrf.mxu0
  %v207 = vadd.f32 %v69, %v206
  %v208 = vpop.f32.mrf.mxu0
  %209 = vmatprep.mubr.f32.mxu0 %v88
  %210 = vmatmul.mubr.f32.gmra.mxu0 %v24
  %v211 = vpop.f32.mrf.mxu0
  %v212 = vadd.f32 %v69, %v211
  %v213 = vpop.f32.mrf.mxu0
  %214 = vmatprep.mubr.f32.mxu0 %v91
  %215 = vmatmul.mubr.f32.gmra.mxu0 %v26
  %v216 = vpop.f32.mrf.mxu0
  %v217 = vadd.f32 %v69, %v216
  %v218 = vpop.f32.mrf.mxu0
  %219 = vmatprep.mubr.f32.mxu0 %v94
  %220 = vmatmul.mubr.f32.gmra.mxu0 %v28
  %v221 = vpop.f32.mrf.mxu0
  %v222 = vadd.f32 %v69, %v221
  %v223 = vpop.f32.mrf.mxu0
  %224 = vmatprep.mubr.f32.mxu0 %v97
  %225 = vmatmul.mubr.f32.gmra.mxu0 %v30
  %v226 = vpop.f32.mrf.mxu0
  %v227 = vadd.f32 %v69, %v226
  %v228 = vpop.f32.mrf.mxu0
  %229 = vmatprep.mubr.f32.mxu0 %v100
  %230 = vmatmul.mubr.f32.gmra.mxu0 %v32
  %v231 = vpop.f32.mrf.mxu0
  %v232 = vadd.f32 %v69, %v231
  %v233 = vpop.f32.mrf.mxu0
  %234 = vmatprep.mubr.f32.mxu0 %v103
  %235 = vmatmul.mubr.f32.gmra.mxu0 %v34
  %v236 = vpop.f32.mrf.mxu0
  %v237 = vadd.f32 %v69, %v236
  %v238 = vpop.f32.mrf.mxu0
  %239 = vmatprep.mubr.f32.mxu0 %v106
  %240 = vmatmul.mubr.f32.gmra.mxu0 %v36
  %v241 = vpop.f32.mrf.mxu0
  %v242 = vadd.f32 %v69, %v241
  %v243 = vpop.f32.mrf.mxu0
  %244 = vmatprep.mubr.f32.mxu0 %v109
  %245 = vmatmul.mubr.f32.gmra.mxu0 %v38
  %v246 = vpop.f32.mrf.mxu0
  %v247 = vadd.f32 %v69, %v246
  %v248 = vpop.f32.mrf.mxu0
  %249 = vmatprep.mubr.f32.mxu0 %v112
  %250 = vmatmul.mubr.f32.gmra.mxu0 %v40
  %v251 = vpop.f32.mrf.mxu0
  %v252 = vadd.f32 %v69, %v251
  %v253 = vpop.f32.mrf.mxu0
  %254 = vmatprep.mubr.f32.mxu0 %v115
  %255 = vmatmul.mubr.f32.gmra.mxu0 %v42
  %v256 = vpop.f32.mrf.mxu0
  %v257 = vadd.f32 %v69, %v256
  %v258 = vpop.f32.mrf.mxu0
  %259 = vmatprep.mubr.f32.mxu0 %v118
  %260 = vmatmul.mubr.f32.gmra.mxu0 %v44
  %v261 = vpop.f32.mrf.mxu0
  %v262 = vadd.f32 %v69, %v261
  %v263 = vpop.f32.mrf.mxu0
  %264 = vdwg.mxu0
  %v265 = vmax.f32 %v187, 0.0
  %v266 = vmax.f32 %v192, 0.0
  %v267 = vmax.f32 %v197, 0.0
  %v268 = vmax.f32 %v202, 0.0
  %v269 = vmax.f32 %v207, 0.0
  %v270 = vmax.f32 %v212, 0.0
  %v271 = vmax.f32 %v217, 0.0
  %v272 = vmax.f32 %v222, 0.0
  %v273 = vmax.f32 %v227, 0.0
  %v274 = vmax.f32 %v232, 0.0
  %v275 = vmax.f32 %v237, 0.0
  %v276 = vmax.f32 %v242, 0.0
  %v277 = vmax.f32 %v247, 0.0
  %v278 = vmax.f32 %v252, 0.0
  %v279 = vmax.f32 %v257, 0.0
  %v280 = vmax.f32 %v262, 0.0
  %281 = vst [vmem:[%s3] sm:$0xff] %v265
  %282 = vst [vmem:[%s3 + $0x8] sm:$0xff] %v266
  %283 = vst [vmem:[%s3 + $0x10] sm:$0xff] %v267
  %284 = vst [vmem:[%s3 + $0x18] sm:$0xff] %v268
  %285 = vst [vmem:[%s3 + $0x20] sm:$0xff] %v269
  %286 = vst [vmem:[%s3 + $0x28] sm:$0xff] %v270
  %287 = vst [vmem:[%s3 + $0x30] sm:$0xff] %v271
  %288 = vst [vmem:[%s3 + $0x38] sm:$0xff] %v272
  %289 = vst [vmem:[%s3 + $0x40] sm:$0xff] %v273
  %290 = vst [vmem:[%s3 + $0x48] sm:$0xff] %v274
  %291 = vst [vmem:[%s3 + $0x50] sm:$0xff] %v275
  %292 = vst [vmem:[%s3 + $0x58] sm:$0xff] %v276
  %293 = vst [vmem:[%s3 + $0x60] sm:$0xff] %v277
  %294 = vst [vmem:[%s3 + $0x68] sm:$0xff] %v278
  %295 = vst [vmem:[%s3 + $0x70] sm:$0xff] %v279
  %296 = vst [vmem:[%s3 + $0x78] sm:$0xff] %v280
  // Predicated region
  $region14: #{generator_forward.7} parent=0 // pred_check
    _
  $region15: #{generator_forward.7} parent=0 // pred_check_branch
    %298 = sbr.rel (0) target = $region17
  $region16: #{generator_forward.7} parent=0 // pred_region
    _
  $region17: #{generator_forward.7} parent=0 // pred_fallthru
    _
  // Predicated region
  $region18: #{generator_forward.7} parent=0 // pred_check
    _
  $region19: #{generator_forward.7} parent=0 // pred_check_branch
    %300 = sbr.rel (0) target = $region21
  $region20: #{generator_forward.7} parent=0 // pred_region
    _
  $region21: #{generator_forward.7} parent=0 // pred_fallthru
    _

// kernel: generator_forward.8
$region0: #{generator_forward.8}
  #allocation0 [shape = 'u32[]', space=smem, size = 0x4, offset = 0x4, fixed_abs, tag = 'smem constant byte address 0x4 - core index']
  #allocation1 [shape = 'u32[144,128]{1,0:T(1,128)}', space=vmem, size = 0x12000, scoped, tag = 'internal scratch']
  %s0 = inlined_call_operand.vmem [shape: f32[512,72], index: 0, kind: input, shape index: {}]
  %s1 = inlined_call_operand.vmem [shape: f32[72,128], index: 1, kind: input, shape index: {}]
  %s2 = inlined_call_operand.vmem [shape: f32[1,128], index: 2, kind: input, shape index: {}]
  %s3 = inlined_call_operand.vmem [shape: f32[512,128], index: 3, kind: output, shape index: {}]
  %s4 = sld [smem:[#allocation0]]
  $region22: #{generator_forward.8} parent=0
    _
  %s6 = ssub.s32 1, %s4
  %s7 = scalar_select 0, %s6, %s4
  // Predicated region
  $region2: #{generator_forward.8} parent=0 // pred_check
    _
  $region3: #{generator_forward.8} parent=0 // pred_check_branch
    %9 = sbr.rel (0) target = $region5
  $region4: #{generator_forward.8} parent=0 // pred_region
    _
  $region5: #{generator_forward.8} parent=0 // pred_fallthru
    _
  // Predicated region
  $region6: #{generator_forward.8} parent=0 // pred_check
    _
  $region7: #{generator_forward.8} parent=0 // pred_check_branch
    %11 = sbr.rel (0) target = $region9
  $region8: #{generator_forward.8} parent=0 // pred_region
    _
  $region9: #{generator_forward.8} parent=0 // pred_fallthru
    _
  // Predicated region
  $region10: #{generator_forward.8} parent=0 // pred_check
    _
  $region11: #{generator_forward.8} parent=0 // pred_check_branch
    %13 = sbr.rel (0) target = $region13
  $region12: #{generator_forward.8} parent=0 // pred_region
    _
  $region13: #{generator_forward.8} parent=0 // pred_fallthru
    _
  %v14 = vld [vmem:[%s0] sm:$0xff]
  %v15 = vld [vmem:[%s0 + $0x8] sm:$0xff]
  %v16 = vld [vmem:[%s0 + $0x10] sm:$0xff]
  %v17 = vld [vmem:[%s0 + $0x18] sm:$0xff]
  %v18 = vld [vmem:[%s0 + $0x20] sm:$0xff]
  %v19 = vld [vmem:[%s0 + $0x28] sm:$0xff]
  %v20 = vld [vmem:[%s0 + $0x30] sm:$0xff]
  %v21 = vld [vmem:[%s0 + $0x38] sm:$0xff]
  %v22 = vld [vmem:[%s0 + $0x40] sm:$0xff]
  %v23 = vld [vmem:[%s0 + $0x48] sm:$0xff]
  %v24 = vld [vmem:[%s0 + $0x50] sm:$0xff]
  %v25 = vld [vmem:[%s0 + $0x58] sm:$0xff]
  %v26 = vld [vmem:[%s0 + $0x60] sm:$0xff]
  %v27 = vld [vmem:[%s0 + $0x68] sm:$0xff]
  %v28 = vld [vmem:[%s0 + $0x70] sm:$0xff]
  %v29 = vld [vmem:[%s0 + $0x78] sm:$0xff]
  %v30 = vld [vmem:[%s0 + $0x80] sm:$0xff]
  %v31 = vld [vmem:[%s0 + $0x88] sm:$0xff]
  %v32 = vld [vmem:[%s0 + $0x90] sm:$0xff]
  %v33 = vld [vmem:[%s0 + $0x98] sm:$0xff]
  %v34 = vld [vmem:[%s0 + $0xa0] sm:$0xff]
  %v35 = vld [vmem:[%s0 + $0xa8] sm:$0xff]
  %v36 = vld [vmem:[%s0 + $0xb0] sm:$0xff]
  %v37 = vld [vmem:[%s0 + $0xb8] sm:$0xff]
  %v38 = vld [vmem:[%s0 + $0xc0] sm:$0xff]
  %v39 = vld [vmem:[%s0 + $0xc8] sm:$0xff]
  %v40 = vld [vmem:[%s0 + $0xd0] sm:$0xff]
  %v41 = vld [vmem:[%s0 + $0xd8] sm:$0xff]
  %v42 = vld [vmem:[%s0 + $0xe0] sm:$0xff]
  %v43 = vld [vmem:[%s0 + $0xe8] sm:$0xff]
  %v44 = vld [vmem:[%s0 + $0xf0] sm:$0xff]
  %v45 = vld [vmem:[%s0 + $0xf8] sm:$0xff]
  %v46 = vld [vmem:[%s0 + $0x100] sm:$0xff]
  %v47 = vld [vmem:[%s0 + $0x108] sm:$0xff]
  %v48 = vld [vmem:[%s0 + $0x110] sm:$0xff]
  %v49 = vld [vmem:[%s0 + $0x118] sm:$0xff]
  %v50 = vld [vmem:[%s0 + $0x120] sm:$0xff]
  %v51 = vld [vmem:[%s0 + $0x128] sm:$0xff]
  %v52 = vld [vmem:[%s0 + $0x130] sm:$0xff]
  %v53 = vld [vmem:[%s0 + $0x138] sm:$0xff]
  %v54 = vld [vmem:[%s0 + $0x140] sm:$0xff]
  %v55 = vld [vmem:[%s0 + $0x148] sm:$0xff]
  %v56 = vld [vmem:[%s0 + $0x150] sm:$0xff]
  %v57 = vld [vmem:[%s0 + $0x158] sm:$0xff]
  %v58 = vld [vmem:[%s0 + $0x160] sm:$0xff]
  %v59 = vld [vmem:[%s0 + $0x168] sm:$0xff]
  %v60 = vld [vmem:[%s0 + $0x170] sm:$0xff]
  %v61 = vld [vmem:[%s0 + $0x178] sm:$0xff]
  %v62 = vld [vmem:[%s0 + $0x180] sm:$0xff]
  %v63 = vld [vmem:[%s0 + $0x188] sm:$0xff]
  %v64 = vld [vmem:[%s0 + $0x190] sm:$0xff]
  %v65 = vld [vmem:[%s0 + $0x198] sm:$0xff]
  %v66 = vld [vmem:[%s0 + $0x1a0] sm:$0xff]
  %v67 = vld [vmem:[%s0 + $0x1a8] sm:$0xff]
  %v68 = vld [vmem:[%s0 + $0x1b0] sm:$0xff]
  %v69 = vld [vmem:[%s0 + $0x1b8] sm:$0xff]
  %v70 = vld [vmem:[%s0 + $0x1c0] sm:$0xff]
  %v71 = vld [vmem:[%s0 + $0x1c8] sm:$0xff]
  %v72 = vld [vmem:[%s0 + $0x1d0] sm:$0xff]
  %v73 = vld [vmem:[%s0 + $0x1d8] sm:$0xff]
  %v74 = vld [vmem:[%s0 + $0x1e0] sm:$0xff]
  %v75 = vld [vmem:[%s0 + $0x1e8] sm:$0xff]
  %v76 = vld [vmem:[%s0 + $0x1f0] sm:$0xff]
  %v77 = vld [vmem:[%s0 + $0x1f8] sm:$0xff]
  %v78 = vld [vmem:[%s1] sm:$0xff]
  %v79 = vld [vmem:[%s1 + $0x8] sm:$0xff]
  %v80 = vld [vmem:[%s1 + $0x10] sm:$0xff]
  %v81 = vld [vmem:[%s1 + $0x18] sm:$0xff]
  %v82 = vld [vmem:[%s1 + $0x20] sm:$0xff]
  %v83 = vld [vmem:[%s1 + $0x28] sm:$0xff]
  %v84 = vld [vmem:[%s1 + $0x30] sm:$0xff]
  %v85 = vld [vmem:[%s1 + $0x38] sm:$0xff]
  %v86 = vld [vmem:[%s1 + $0x40] sm:$0xff]
  %v87 = vld [vmem:[%s2] sm:$0x1]
  %v89 = vlaneseq
  %v90 = vshrl.u32 %v89, 7
  %v91 = vsub.s32 0, %v90
  %v92 = vrot.slane %v87, %v91
  %vm94 = vcmask 588800
  %v96 = vsel %vm94, %v14, 0
  %v99 = vsel %vm94, %v15, 0
  %v102 = vsel %vm94, %v16, 0
  %v105 = vsel %vm94, %v17, 0
  %v108 = vsel %vm94, %v18, 0
  %v111 = vsel %vm94, %v19, 0
  %v114 = vsel %vm94, %v20, 0
  %v117 = vsel %vm94, %v21, 0
  %v120 = vsel %vm94, %v22, 0
  %v123 = vsel %vm94, %v23, 0
  %v126 = vsel %vm94, %v24, 0
  %v129 = vsel %vm94, %v25, 0
  %v132 = vsel %vm94, %v26, 0
  %v135 = vsel %vm94, %v27, 0
  %v138 = vsel %vm94, %v28, 0
  %v141 = vsel %vm94, %v29, 0
  %v144 = vsel %vm94, %v30, 0
  %v147 = vsel %vm94, %v31, 0
  %v150 = vsel %vm94, %v32, 0
  %v153 = vsel %vm94, %v33, 0
  %v156 = vsel %vm94, %v34, 0
  %v159 = vsel %vm94, %v35, 0
  %v162 = vsel %vm94, %v36, 0
  %v165 = vsel %vm94, %v37, 0
  %v168 = vsel %vm94, %v38, 0
  %v171 = vsel %vm94, %v39, 0
  %v174 = vsel %vm94, %v40, 0
  %v177 = vsel %vm94, %v41, 0
  %v180 = vsel %vm94, %v42, 0
  %v183 = vsel %vm94, %v43, 0
  %v186 = vsel %vm94, %v44, 0
  %v189 = vsel %vm94, %v45, 0
  %v192 = vsel %vm94, %v46, 0
  %v195 = vsel %vm94, %v47, 0
  %v198 = vsel %vm94, %v48, 0
  %v201 = vsel %vm94, %v49, 0
  %v204 = vsel %vm94, %v50, 0
  %v207 = vsel %vm94, %v51, 0
  %v210 = vsel %vm94, %v52, 0
  %v213 = vsel %vm94, %v53, 0
  %v216 = vsel %vm94, %v54, 0
  %v219 = vsel %vm94, %v55, 0
  %v222 = vsel %vm94, %v56, 0
  %v225 = vsel %vm94, %v57, 0
  %v228 = vsel %vm94, %v58, 0
  %v231 = vsel %vm94, %v59, 0
  %v234 = vsel %vm94, %v60, 0
  %v237 = vsel %vm94, %v61, 0
  %v240 = vsel %vm94, %v62, 0
  %v243 = vsel %vm94, %v63, 0
  %v246 = vsel %vm94, %v64, 0
  %v249 = vsel %vm94, %v65, 0
  %v252 = vsel %vm94, %v66, 0
  %v255 = vsel %vm94, %v67, 0
  %v258 = vsel %vm94, %v68, 0
  %v261 = vsel %vm94, %v69, 0
  %v264 = vsel %vm94, %v70, 0
  %v267 = vsel %vm94, %v71, 0
  %v270 = vsel %vm94, %v72, 0
  %v273 = vsel %vm94, %v73, 0
  %v276 = vsel %vm94, %v74, 0
  %v279 = vsel %vm94, %v75, 0
  %v282 = vsel %vm94, %v76, 0
  %v285 = vsel %vm94, %v77, 0
  %287 = vmatprep.subr.mxu0 0.0
  %288 = vmatpush1.msra.mxu0 0.0
  %289 = vmatprep.subr.mxu0 0.0
  %290 = vmatpush1.msra.mxu0 0.0
  %291 = vmatprep.subr.mxu0 0.0
  %292 = vmatpush1.msra.mxu0 0.0
  %293 = vmatprep.subr.mxu0 0.0
  %294 = vmatpush1.msra.mxu0 0.0
  %295 = vmatprep.subr.mxu0 0.0
  %296 = vmatpush1.msra.mxu0 0.0
  %297 = vmatprep.subr.mxu0 0.0
  %298 = vmatpush1.msra.mxu0 0.0
  %299 = vmatprep.subr.mxu0 0.0
  %300 = vmatpush1.msra.mxu0 0.0
  %301 = vmatprep.subr.mxu0 0.0
  %302 = vmatpush1.msra.mxu0 %v86
  %303 = vmatprep.subr.mxu0 0.0
  %304 = vmatpush1.msra.mxu0 %v85
  %305 = vmatprep.subr.mxu0 0.0
  %306 = vmatpush1.msra.mxu0 %v84
  %307 = vmatprep.subr.mxu0 0.0
  %308 = vmatpush1.msra.mxu0 %v83
  %309 = vmatprep.subr.mxu0 0.0
  %310 = vmatpush1.msra.mxu0 %v82
  %311 = vmatprep.subr.mxu0 0.0
  %312 = vmatpush1.msra.mxu0 %v81
  %313 = vmatprep.subr.mxu0 0.0
  %314 = vmatpush1.msra.mxu0 %v80
  %315 = vmatprep.subr.mxu0 0.0
  %316 = vmatpush1.msra.mxu0 %v79
  %317 = vmatprep.subr.mxu0 0.0
  %318 = vmatpush1.msra.mxu0 %v78
  %319 = vmatprep.subr.mxu0 0.0
  %320 = vmatpush2.msra.mxu0 0.0
  %321 = vmatprep.subr.mxu0 0.0
  %322 = vmatpush2.msra.mxu0 0.0
  %323 = vmatprep.subr.mxu0 0.0
  %324 = vmatpush2.msra.mxu0 0.0
  %325 = vmatprep.subr.mxu0 0.0
  %326 = vmatpush2.msra.mxu0 0.0
  %327 = vmatprep.subr.mxu0 0.0
  %328 = vmatpush2.msra.mxu0 0.0
  %329 = vmatprep.subr.mxu0 0.0
  %330 = vmatpush2.msra.mxu0 0.0
  %331 = vmatprep.subr.mxu0 0.0
  %332 = vmatpush2.msra.mxu0 0.0
  %333 = vmatprep.subr.mxu0 0.0
  %334 = vmatpush2.msra.mxu0 0.0
  %335 = vmatprep.subr.mxu0 0.0
  %336 = vmatpush2.msra.mxu0 0.0
  %337 = vmatprep.subr.mxu0 0.0
  %338 = vmatpush2.msra.mxu0 0.0
  %339 = vmatprep.subr.mxu0 0.0
  %340 = vmatpush2.msra.mxu0 0.0
  %341 = vmatprep.subr.mxu0 0.0
  %342 = vmatpush2.msra.mxu0 0.0
  %343 = vmatprep.subr.mxu0 0.0
  %344 = vmatpush2.msra.mxu0 0.0
  %345 = vmatprep.subr.mxu0 0.0
  %346 = vmatpush2.msra.mxu0 0.0
  %347 = vmatprep.subr.mxu0 0.0
  %348 = vmatpush2.msra.mxu0 0.0
  %349 = vmatprep.subr.mxu0 0.0
  %350 = vmatpush2.msra.mxu0 0.0
  %351 = vmatprep.mubr.f32.mxu0 0.0
  %352 = vmatmul.mubr.f32.gmra.mxu0 %v96
  %v353 = vpop.f32.mrf.mxu0
  %v354 = vadd.f32 %v92, %v353
  %v355 = vpop.f32.mrf.mxu0
  %356 = vmatprep.mubr.f32.mxu0 0.0
  %357 = vmatmul.mubr.f32.gmra.mxu0 %v99
  %v358 = vpop.f32.mrf.mxu0
  %v359 = vadd.f32 %v92, %v358
  %v360 = vpop.f32.mrf.mxu0
  %361 = vmatprep.mubr.f32.mxu0 0.0
  %362 = vmatmul.mubr.f32.gmra.mxu0 %v102
  %v363 = vpop.f32.mrf.mxu0
  %v364 = vadd.f32 %v92, %v363
  %v365 = vpop.f32.mrf.mxu0
  %366 = vmatprep.mubr.f32.mxu0 0.0
  %367 = vmatmul.mubr.f32.gmra.mxu0 %v105
  %v368 = vpop.f32.mrf.mxu0
  %v369 = vadd.f32 %v92, %v368
  %v370 = vpop.f32.mrf.mxu0
  %371 = vmatprep.mubr.f32.mxu0 0.0
  %372 = vmatmul.mubr.f32.gmra.mxu0 %v108
  %v373 = vpop.f32.mrf.mxu0
  %v374 = vadd.f32 %v92, %v373
  %v375 = vpop.f32.mrf.mxu0
  %376 = vmatprep.mubr.f32.mxu0 0.0
  %377 = vmatmul.mubr.f32.gmra.mxu0 %v111
  %v378 = vpop.f32.mrf.mxu0
  %v379 = vadd.f32 %v92, %v378
  %v380 = vpop.f32.mrf.mxu0
  %381 = vmatprep.mubr.f32.mxu0 0.0
  %382 = vmatmul.mubr.f32.gmra.mxu0 %v114
  %v383 = vpop.f32.mrf.mxu0
  %v384 = vadd.f32 %v92, %v383
  %v385 = vpop.f32.mrf.mxu0
  %386 = vmatprep.mubr.f32.mxu0 0.0
  %387 = vmatmul.mubr.f32.gmra.mxu0 %v117
  %v388 = vpop.f32.mrf.mxu0
  %v389 = vadd.f32 %v92, %v388
  %v390 = vpop.f32.mrf.mxu0
  %391 = vmatprep.mubr.f32.mxu0 0.0
  %392 = vmatmul.mubr.f32.gmra.mxu0 %v120
  %v393 = vpop.f32.mrf.mxu0
  %v394 = vadd.f32 %v92, %v393
  %v395 = vpop.f32.mrf.mxu0
  %396 = vmatprep.mubr.f32.mxu0 0.0
  %397 = vmatmul.mubr.f32.gmra.mxu0 %v123
  %v398 = vpop.f32.mrf.mxu0
  %v399 = vadd.f32 %v92, %v398
  %v400 = vpop.f32.mrf.mxu0
  %401 = vmatprep.mubr.f32.mxu0 0.0
  %402 = vmatmul.mubr.f32.gmra.mxu0 %v126
  %v403 = vpop.f32.mrf.mxu0
  %v404 = vadd.f32 %v92, %v403
  %v405 = vpop.f32.mrf.mxu0
  %406 = vmatprep.mubr.f32.mxu0 0.0
  %407 = vmatmul.mubr.f32.gmra.mxu0 %v129
  %v408 = vpop.f32.mrf.mxu0
  %v409 = vadd.f32 %v92, %v408
  %v410 = vpop.f32.mrf.mxu0
  %411 = vmatprep.mubr.f32.mxu0 0.0
  %412 = vmatmul.mubr.f32.gmra.mxu0 %v132
  %v413 = vpop.f32.mrf.mxu0
  %v414 = vadd.f32 %v92, %v413
  %v415 = vpop.f32.mrf.mxu0
  %416 = vmatprep.mubr.f32.mxu0 0.0
  %417 = vmatmul.mubr.f32.gmra.mxu0 %v135
  %v418 = vpop.f32.mrf.mxu0
  %v419 = vadd.f32 %v92, %v418
  %v420 = vpop.f32.mrf.mxu0
  %421 = vmatprep.mubr.f32.mxu0 0.0
  %422 = vmatmul.mubr.f32.gmra.mxu0 %v138
  %v423 = vpop.f32.mrf.mxu0
  %v424 = vadd.f32 %v92, %v423
  %v425 = vpop.f32.mrf.mxu0
  %426 = vmatprep.mubr.f32.mxu0 0.0
  %427 = vmatmul.mubr.f32.gmra.mxu0 %v141
  %v428 = vpop.f32.mrf.mxu0
  %v429 = vadd.f32 %v92, %v428
  %v430 = vpop.f32.mrf.mxu0
  %431 = vmatprep.mubr.f32.mxu0 0.0
  %432 = vmatmul.mubr.f32.gmra.mxu0 %v144
  %v433 = vpop.f32.mrf.mxu0
  %v434 = vadd.f32 %v92, %v433
  %v435 = vpop.f32.mrf.mxu0
  %436 = vmatprep.mubr.f32.mxu0 0.0
  %437 = vmatmul.mubr.f32.gmra.mxu0 %v147
  %v438 = vpop.f32.mrf.mxu0
  %v439 = vadd.f32 %v92, %v438
  %v440 = vpop.f32.mrf.mxu0
  %441 = vmatprep.mubr.f32.mxu0 0.0
  %442 = vmatmul.mubr.f32.gmra.mxu0 %v150
  %v443 = vpop.f32.mrf.mxu0
  %v444 = vadd.f32 %v92, %v443
  %v445 = vpop.f32.mrf.mxu0
  %446 = vmatprep.mubr.f32.mxu0 0.0
  %447 = vmatmul.mubr.f32.gmra.mxu0 %v153
  %v448 = vpop.f32.mrf.mxu0
  %v449 = vadd.f32 %v92, %v448
  %v450 = vpop.f32.mrf.mxu0
  %451 = vmatprep.mubr.f32.mxu0 0.0
  %452 = vmatmul.mubr.f32.gmra.mxu0 %v156
  %v453 = vpop.f32.mrf.mxu0
  %v454 = vadd.f32 %v92, %v453
  %v455 = vpop.f32.mrf.mxu0
  %456 = vmatprep.mubr.f32.mxu0 0.0
  %457 = vmatmul.mubr.f32.gmra.mxu0 %v159
  %v458 = vpop.f32.mrf.mxu0
  %v459 = vadd.f32 %v92, %v458
  %v460 = vpop.f32.mrf.mxu0
  %461 = vmatprep.mubr.f32.mxu0 0.0
  %462 = vmatmul.mubr.f32.gmra.mxu0 %v162
  %v463 = vpop.f32.mrf.mxu0
  %v464 = vadd.f32 %v92, %v463
  %v465 = vpop.f32.mrf.mxu0
  %466 = vmatprep.mubr.f32.mxu0 0.0
  %467 = vmatmul.mubr.f32.gmra.mxu0 %v165
  %v468 = vpop.f32.mrf.mxu0
  %v469 = vadd.f32 %v92, %v468
  %v470 = vpop.f32.mrf.mxu0
  %471 = vmatprep.mubr.f32.mxu0 0.0
  %472 = vmatmul.mubr.f32.gmra.mxu0 %v168
  %v473 = vpop.f32.mrf.mxu0
  %v474 = vadd.f32 %v92, %v473
  %v475 = vpop.f32.mrf.mxu0
  %476 = vmatprep.mubr.f32.mxu0 0.0
  %477 = vmatmul.mubr.f32.gmra.mxu0 %v171
  %v478 = vpop.f32.mrf.mxu0
  %v479 = vadd.f32 %v92, %v478
  %v480 = vpop.f32.mrf.mxu0
  %481 = vmatprep.mubr.f32.mxu0 0.0
  %482 = vmatmul.mubr.f32.gmra.mxu0 %v174
  %v483 = vpop.f32.mrf.mxu0
  %v484 = vadd.f32 %v92, %v483
  %v485 = vpop.f32.mrf.mxu0
  %486 = vmatprep.mubr.f32.mxu0 0.0
  %487 = vmatmul.mubr.f32.gmra.mxu0 %v177
  %v488 = vpop.f32.mrf.mxu0
  %v489 = vadd.f32 %v92, %v488
  %v490 = vpop.f32.mrf.mxu0
  %491 = vmatprep.mubr.f32.mxu0 0.0
  %492 = vmatmul.mubr.f32.gmra.mxu0 %v180
  %v493 = vpop.f32.mrf.mxu0
  %v494 = vadd.f32 %v92, %v493
  %v495 = vpop.f32.mrf.mxu0
  %496 = vmatprep.mubr.f32.mxu0 0.0
  %497 = vmatmul.mubr.f32.gmra.mxu0 %v183
  %v498 = vpop.f32.mrf.mxu0
  %v499 = vadd.f32 %v92, %v498
  %v500 = vpop.f32.mrf.mxu0
  %501 = vmatprep.mubr.f32.mxu0 0.0
  %502 = vmatmul.mubr.f32.gmra.mxu0 %v186
  %v503 = vpop.f32.mrf.mxu0
  %v504 = vadd.f32 %v92, %v503
  %v505 = vpop.f32.mrf.mxu0
  %506 = vmatprep.mubr.f32.mxu0 0.0
  %507 = vmatmul.mubr.f32.gmra.mxu0 %v189
  %v508 = vpop.f32.mrf.mxu0
  %v509 = vadd.f32 %v92, %v508
  %v510 = vpop.f32.mrf.mxu0
  %511 = vmatprep.mubr.f32.mxu0 0.0
  %512 = vmatmul.mubr.f32.gmra.mxu0 %v192
  %v513 = vpop.f32.mrf.mxu0
  %v514 = vadd.f32 %v92, %v513
  %v515 = vpop.f32.mrf.mxu0
  %516 = vmatprep.mubr.f32.mxu0 0.0
  %517 = vmatmul.mubr.f32.gmra.mxu0 %v195
  %v518 = vpop.f32.mrf.mxu0
  %v519 = vadd.f32 %v92, %v518
  %v520 = vpop.f32.mrf.mxu0
  %521 = vmatprep.mubr.f32.mxu0 0.0
  %522 = vmatmul.mubr.f32.gmra.mxu0 %v198
  %v523 = vpop.f32.mrf.mxu0
  %v524 = vadd.f32 %v92, %v523
  %v525 = vpop.f32.mrf.mxu0
  %526 = vmatprep.mubr.f32.mxu0 0.0
  %527 = vmatmul.mubr.f32.gmra.mxu0 %v201
  %v528 = vpop.f32.mrf.mxu0
  %v529 = vadd.f32 %v92, %v528
  %v530 = vpop.f32.mrf.mxu0
  %531 = vmatprep.mubr.f32.mxu0 0.0
  %532 = vmatmul.mubr.f32.gmra.mxu0 %v204
  %v533 = vpop.f32.mrf.mxu0
  %v534 = vadd.f32 %v92, %v533
  %v535 = vpop.f32.mrf.mxu0
  %536 = vmatprep.mubr.f32.mxu0 0.0
  %537 = vmatmul.mubr.f32.gmra.mxu0 %v207
  %v538 = vpop.f32.mrf.mxu0
  %v539 = vadd.f32 %v92, %v538
  %v540 = vpop.f32.mrf.mxu0
  %541 = vmatprep.mubr.f32.mxu0 0.0
  %542 = vmatmul.mubr.f32.gmra.mxu0 %v210
  %v543 = vpop.f32.mrf.mxu0
  %v544 = vadd.f32 %v92, %v543
  %v545 = vpop.f32.mrf.mxu0
  %546 = vmatprep.mubr.f32.mxu0 0.0
  %547 = vmatmul.mubr.f32.gmra.mxu0 %v213
  %v548 = vpop.f32.mrf.mxu0
  %v549 = vadd.f32 %v92, %v548
  %v550 = vpop.f32.mrf.mxu0
  %551 = vmatprep.mubr.f32.mxu0 0.0
  %552 = vmatmul.mubr.f32.gmra.mxu0 %v216
  %v553 = vpop.f32.mrf.mxu0
  %v554 = vadd.f32 %v92, %v553
  %v555 = vpop.f32.mrf.mxu0
  %556 = vmatprep.mubr.f32.mxu0 0.0
  %557 = vmatmul.mubr.f32.gmra.mxu0 %v219
  %v558 = vpop.f32.mrf.mxu0
  %v559 = vadd.f32 %v92, %v558
  %v560 = vpop.f32.mrf.mxu0
  %561 = vmatprep.mubr.f32.mxu0 0.0
  %562 = vmatmul.mubr.f32.gmra.mxu0 %v222
  %v563 = vpop.f32.mrf.mxu0
  %v564 = vadd.f32 %v92, %v563
  %v565 = vpop.f32.mrf.mxu0
  %566 = vmatprep.mubr.f32.mxu0 0.0
  %567 = vmatmul.mubr.f32.gmra.mxu0 %v225
  %v568 = vpop.f32.mrf.mxu0
  %v569 = vadd.f32 %v92, %v568
  %v570 = vpop.f32.mrf.mxu0
  %571 = vmatprep.mubr.f32.mxu0 0.0
  %572 = vmatmul.mubr.f32.gmra.mxu0 %v228
  %v573 = vpop.f32.mrf.mxu0
  %v574 = vadd.f32 %v92, %v573
  %v575 = vpop.f32.mrf.mxu0
  %576 = vmatprep.mubr.f32.mxu0 0.0
  %577 = vmatmul.mubr.f32.gmra.mxu0 %v231
  %v578 = vpop.f32.mrf.mxu0
  %v579 = vadd.f32 %v92, %v578
  %v580 = vpop.f32.mrf.mxu0
  %581 = vmatprep.mubr.f32.mxu0 0.0
  %582 = vmatmul.mubr.f32.gmra.mxu0 %v234
  %v583 = vpop.f32.mrf.mxu0
  %v584 = vadd.f32 %v92, %v583
  %v585 = vpop.f32.mrf.mxu0
  %586 = vmatprep.mubr.f32.mxu0 0.0
  %587 = vmatmul.mubr.f32.gmra.mxu0 %v237
  %v588 = vpop.f32.mrf.mxu0
  %v589 = vadd.f32 %v92, %v588
  %v590 = vpop.f32.mrf.mxu0
  %591 = vmatprep.mubr.f32.mxu0 0.0
  %592 = vmatmul.mubr.f32.gmra.mxu0 %v240
  %v593 = vpop.f32.mrf.mxu0
  %v594 = vadd.f32 %v92, %v593
  %v595 = vpop.f32.mrf.mxu0
  %596 = vmatprep.mubr.f32.mxu0 0.0
  %597 = vmatmul.mubr.f32.gmra.mxu0 %v243
  %v598 = vpop.f32.mrf.mxu0
  %v599 = vadd.f32 %v92, %v598
  %v600 = vpop.f32.mrf.mxu0
  %601 = vmatprep.mubr.f32.mxu0 0.0
  %602 = vmatmul.mubr.f32.gmra.mxu0 %v246
  %v603 = vpop.f32.mrf.mxu0
  %v604 = vadd.f32 %v92, %v603
  %v605 = vpop.f32.mrf.mxu0
  %606 = vmatprep.mubr.f32.mxu0 0.0
  %607 = vmatmul.mubr.f32.gmra.mxu0 %v249
  %v608 = vpop.f32.mrf.mxu0
  %v609 = vadd.f32 %v92, %v608
  %v610 = vpop.f32.mrf.mxu0
  %611 = vmatprep.mubr.f32.mxu0 0.0
  %612 = vmatmul.mubr.f32.gmra.mxu0 %v252
  %v613 = vpop.f32.mrf.mxu0
  %v614 = vadd.f32 %v92, %v613
  %v615 = vpop.f32.mrf.mxu0
  %616 = vmatprep.mubr.f32.mxu0 0.0
  %617 = vmatmul.mubr.f32.gmra.mxu0 %v255
  %v618 = vpop.f32.mrf.mxu0
  %v619 = vadd.f32 %v92, %v618
  %v620 = vpop.f32.mrf.mxu0
  %621 = vmatprep.mubr.f32.mxu0 0.0
  %622 = vmatmul.mubr.f32.gmra.mxu0 %v258
  %v623 = vpop.f32.mrf.mxu0
  %v624 = vadd.f32 %v92, %v623
  %v625 = vpop.f32.mrf.mxu0
  %626 = vmatprep.mubr.f32.mxu0 0.0
  %627 = vmatmul.mubr.f32.gmra.mxu0 %v261
  %v628 = vpop.f32.mrf.mxu0
  %v629 = vadd.f32 %v92, %v628
  %v630 = vpop.f32.mrf.mxu0
  %631 = vmatprep.mubr.f32.mxu0 0.0
  %632 = vmatmul.mubr.f32.gmra.mxu0 %v264
  %v633 = vpop.f32.mrf.mxu0
  %v634 = vadd.f32 %v92, %v633
  %v635 = vpop.f32.mrf.mxu0
  %636 = vmatprep.mubr.f32.mxu0 0.0
  %637 = vmatmul.mubr.f32.gmra.mxu0 %v267
  %v638 = vpop.f32.mrf.mxu0
  %v639 = vadd.f32 %v92, %v638
  %v640 = vpop.f32.mrf.mxu0
  %641 = vmatprep.mubr.f32.mxu0 0.0
  %642 = vmatmul.mubr.f32.gmra.mxu0 %v270
  %v643 = vpop.f32.mrf.mxu0
  %v644 = vadd.f32 %v92, %v643
  %v645 = vpop.f32.mrf.mxu0
  %646 = vmatprep.mubr.f32.mxu0 0.0
  %647 = vmatmul.mubr.f32.gmra.mxu0 %v273
  %v648 = vpop.f32.mrf.mxu0
  %v649 = vadd.f32 %v92, %v648
  %v650 = vpop.f32.mrf.mxu0
  %651 = vmatprep.mubr.f32.mxu0 0.0
  %652 = vmatmul.mubr.f32.gmra.mxu0 %v276
  %v653 = vpop.f32.mrf.mxu0
  %v654 = vadd.f32 %v92, %v653
  %v655 = vpop.f32.mrf.mxu0
  %656 = vmatprep.mubr.f32.mxu0 0.0
  %657 = vmatmul.mubr.f32.gmra.mxu0 %v279
  %v658 = vpop.f32.mrf.mxu0
  %v659 = vadd.f32 %v92, %v658
  %v660 = vpop.f32.mrf.mxu0
  %661 = vmatprep.mubr.f32.mxu0 0.0
  %662 = vmatmul.mubr.f32.gmra.mxu0 %v282
  %v663 = vpop.f32.mrf.mxu0
  %v664 = vadd.f32 %v92, %v663
  %v665 = vpop.f32.mrf.mxu0
  %666 = vmatprep.mubr.f32.mxu0 0.0
  %667 = vmatmul.mubr.f32.gmra.mxu0 %v285
  %v668 = vpop.f32.mrf.mxu0
  %v669 = vadd.f32 %v92, %v668
  %v670 = vpop.f32.mrf.mxu0
  %671 = vdwg.mxu0
  %v672 = vmax.f32 %v354, 0.0
  %v673 = vmax.f32 %v359, 0.0
  %v674 = vmax.f32 %v364, 0.0
  %v675 = vmax.f32 %v369, 0.0
  %v676 = vmax.f32 %v374, 0.0
  %v677 = vmax.f32 %v379, 0.0
  %v678 = vmax.f32 %v384, 0.0
  %v679 = vmax.f32 %v389, 0.0
  %v680 = vmax.f32 %v394, 0.0
  %v681 = vmax.f32 %v399, 0.0
  %v682 = vmax.f32 %v404, 0.0
  %v683 = vmax.f32 %v409, 0.0
  %v684 = vmax.f32 %v414, 0.0
  %v685 = vmax.f32 %v419, 0.0
  %v686 = vmax.f32 %v424, 0.0
  %v687 = vmax.f32 %v429, 0.0
  %v688 = vmax.f32 %v434, 0.0
  %v689 = vmax.f32 %v439, 0.0
  %v690 = vmax.f32 %v444, 0.0
  %v691 = vmax.f32 %v449, 0.0
  %v692 = vmax.f32 %v454, 0.0
  %v693 = vmax.f32 %v459, 0.0
  %v694 = vmax.f32 %v464, 0.0
  %v695 = vmax.f32 %v469, 0.0
  %v696 = vmax.f32 %v474, 0.0
  %v697 = vmax.f32 %v479, 0.0
  %v698 = vmax.f32 %v484, 0.0
  %v699 = vmax.f32 %v489, 0.0
  %v700 = vmax.f32 %v494, 0.0
  %v701 = vmax.f32 %v499, 0.0
  %v702 = vmax.f32 %v504, 0.0
  %v703 = vmax.f32 %v509, 0.0
  %v704 = vmax.f32 %v514, 0.0
  %v705 = vmax.f32 %v519, 0.0
  %v706 = vmax.f32 %v524, 0.0
  %v707 = vmax.f32 %v529, 0.0
  %v708 = vmax.f32 %v534, 0.0
  %v709 = vmax.f32 %v539, 0.0
  %v710 = vmax.f32 %v544, 0.0
  %v711 = vmax.f32 %v549, 0.0
  %v712 = vmax.f32 %v554, 0.0
  %v713 = vmax.f32 %v559, 0.0
  %v714 = vmax.f32 %v564, 0.0
  %v715 = vmax.f32 %v569, 0.0
  %v716 = vmax.f32 %v574, 0.0
  %v717 = vmax.f32 %v579, 0.0
  %v718 = vmax.f32 %v584, 0.0
  %v719 = vmax.f32 %v589, 0.0
  %v720 = vmax.f32 %v594, 0.0
  %v721 = vmax.f32 %v599, 0.0
  %v722 = vmax.f32 %v604, 0.0
  %v723 = vmax.f32 %v609, 0.0
  %v724 = vmax.f32 %v614, 0.0
  %v725 = vmax.f32 %v619, 0.0
  %v726 = vmax.f32 %v624, 0.0
  %v727 = vmax.f32 %v629, 0.0
  %v728 = vmax.f32 %v634, 0.0
  %v729 = vmax.f32 %v639, 0.0
  %v730 = vmax.f32 %v644, 0.0
  %v731 = vmax.f32 %v649, 0.0
  %v732 = vmax.f32 %v654, 0.0
  %v733 = vmax.f32 %v659, 0.0
  %v734 = vmax.f32 %v664, 0.0
  %v735 = vmax.f32 %v669, 0.0
  %736 = vst [vmem:[%s3] sm:$0xff] %v672
  %737 = vst [vmem:[%s3 + $0x8] sm:$0xff] %v673
  %738 = vst [vmem:[%s3 + $0x10] sm:$0xff] %v674
  %739 = vst [vmem:[%s3 + $0x18] sm:$0xff] %v675
  %740 = vst [vmem:[%s3 + $0x20] sm:$0xff] %v676
  %741 = vst [vmem:[%s3 + $0x28] sm:$0xff] %v677
  %742 = vst [vmem:[%s3 + $0x30] sm:$0xff] %v678
  %743 = vst [vmem:[%s3 + $0x38] sm:$0xff] %v679
  %744 = vst [vmem:[%s3 + $0x40] sm:$0xff] %v680
  %745 = vst [vmem:[%s3 + $0x48] sm:$0xff] %v681
  %746 = vst [vmem:[%s3 + $0x50] sm:$0xff] %v682
  %747 = vst [vmem:[%s3 + $0x58] sm:$0xff] %v683
  %748 = vst [vmem:[%s3 + $0x60] sm:$0xff] %v684
  %749 = vst [vmem:[%s3 + $0x68] sm:$0xff] %v685
  %750 = vst [vmem:[%s3 + $0x70] sm:$0xff] %v686
  %751 = vst [vmem:[%s3 + $0x78] sm:$0xff] %v687
  %752 = vst [vmem:[%s3 + $0x80] sm:$0xff] %v688
  %753 = vst [vmem:[%s3 + $0x88] sm:$0xff] %v689
  %754 = vst [vmem:[%s3 + $0x90] sm:$0xff] %v690
  %755 = vst [vmem:[%s3 + $0x98] sm:$0xff] %v691
  %756 = vst [vmem:[%s3 + $0xa0] sm:$0xff] %v692
  %757 = vst [vmem:[%s3 + $0xa8] sm:$0xff] %v693
  %758 = vst [vmem:[%s3 + $0xb0] sm:$0xff] %v694
  %759 = vst [vmem:[%s3 + $0xb8] sm:$0xff] %v695
  %760 = vst [vmem:[%s3 + $0xc0] sm:$0xff] %v696
  %761 = vst [vmem:[%s3 + $0xc8] sm:$0xff] %v697
  %762 = vst [vmem:[%s3 + $0xd0] sm:$0xff] %v698
  %763 = vst [vmem:[%s3 + $0xd8] sm:$0xff] %v699
  %764 = vst [vmem:[%s3 + $0xe0] sm:$0xff] %v700
  %765 = vst [vmem:[%s3 + $0xe8] sm:$0xff] %v701
  %766 = vst [vmem:[%s3 + $0xf0] sm:$0xff] %v702
  %767 = vst [vmem:[%s3 + $0xf8] sm:$0xff] %v703
  %768 = vst [vmem:[%s3 + $0x100] sm:$0xff] %v704
  %769 = vst [vmem:[%s3 + $0x108] sm:$0xff] %v705
  %770 = vst [vmem:[%s3 + $0x110] sm:$0xff] %v706
  %771 = vst [vmem:[%s3 + $0x118] sm:$0xff] %v707
  %772 = vst [vmem:[%s3 + $0x120] sm:$0xff] %v708
  %773 = vst [vmem:[%s3 + $0x128] sm:$0xff] %v709
  %774 = vst [vmem:[%s3 + $0x130] sm:$0xff] %v710
  %775 = vst [vmem:[%s3 + $0x138] sm:$0xff] %v711
  %776 = vst [vmem:[%s3 + $0x140] sm:$0xff] %v712
  %777 = vst [vmem:[%s3 + $0x148] sm:$0xff] %v713
  %778 = vst [vmem:[%s3 + $0x150] sm:$0xff] %v714
  %779 = vst [vmem:[%s3 + $0x158] sm:$0xff] %v715
  %780 = vst [vmem:[%s3 + $0x160] sm:$0xff] %v716
  %781 = vst [vmem:[%s3 + $0x168] sm:$0xff] %v717
  %782 = vst [vmem:[%s3 + $0x170] sm:$0xff] %v718
  %783 = vst [vmem:[%s3 + $0x178] sm:$0xff] %v719
  %784 = vst [vmem:[%s3 + $0x180] sm:$0xff] %v720
  %785 = vst [vmem:[%s3 + $0x188] sm:$0xff] %v721
  %786 = vst [vmem:[%s3 + $0x190] sm:$0xff] %v722
  %787 = vst [vmem:[%s3 + $0x198] sm:$0xff] %v723
  %788 = vst [vmem:[%s3 + $0x1a0] sm:$0xff] %v724
  %789 = vst [vmem:[%s3 + $0x1a8] sm:$0xff] %v725
  %790 = vst [vmem:[%s3 + $0x1b0] sm:$0xff] %v726
  %791 = vst [vmem:[%s3 + $0x1b8] sm:$0xff] %v727
  %792 = vst [vmem:[%s3 + $0x1c0] sm:$0xff] %v728
  %793 = vst [vmem:[%s3 + $0x1c8] sm:$0xff] %v729
  %794 = vst [vmem:[%s3 + $0x1d0] sm:$0xff] %v730
  %795 = vst [vmem:[%s3 + $0x1d8] sm:$0xff] %v731
  %796 = vst [vmem:[%s3 + $0x1e0] sm:$0xff] %v732
  %797 = vst [vmem:[%s3 + $0x1e8] sm:$0xff] %v733
  %798 = vst [vmem:[%s3 + $0x1f0] sm:$0xff] %v734
  %799 = vst [vmem:[%s3 + $0x1f8] sm:$0xff] %v735
  // Predicated region
  $region14: #{generator_forward.8} parent=0 // pred_check
    _
  $region15: #{generator_forward.8} parent=0 // pred_check_branch
    %801 = sbr.rel (0) target = $region17
  $region16: #{generator_forward.8} parent=0 // pred_region
    _
  $region17: #{generator_forward.8} parent=0 // pred_fallthru
    _
  // Predicated region
  $region18: #{generator_forward.8} parent=0 // pred_check
    _
  $region19: #{generator_forward.8} parent=0 // pred_check_branch
    %803 = sbr.rel (0) target = $region21
  $region20: #{generator_forward.8} parent=0 // pred_region
    _
  $region21: #{generator_forward.8} parent=0 // pred_fallthru
    _

// kernel: tile.47
$region0: #{tile.47}
  #allocation0 [shape = 's32[1]{0}', space=sflag, size = 0x4, scoped, tag = 'scoped memory for tile.47']
  %s0 = inlined_call_operand.vmem [shape: f32[3], index: 0, kind: input, shape index: {}]
  %s1 = inlined_call_operand.vmem [shape: f32[4,3], index: 1, kind: output, shape index: {}]
  // Predicated region
  $region2: #{tile.47} parent=0 // pred_check
    _
  $region3: #{tile.47} parent=0 // pred_check_branch
    %3 = sbr.rel (0) target = $region5
  $region4: #{tile.47} parent=0 // pred_region
    _
  $region5: #{tile.47} parent=0 // pred_fallthru
    _
  %v4 = vld [vmem:[%s0] ss:$0 sm:$0xff]
  %5 = vst [vmem:[%s1] sm:$0xf] %v4

// kernel: tile.49
$region0: #{tile.49}
  %s0 = inlined_call_operand.vmem [shape: f32[4,3], index: 0, kind: input, shape index: {}]
  %s1 = inlined_call_operand.vmem [shape: f32[1,12], index: 1, kind: output, shape index: {}]
  $region1: #{tile.49} parent=0
    #allocation0 [shape = 'u8[4096]{0}', space=vmem, size = 0x1000, scoped, tag = 'scoped mem for output reshape']
    #allocation1 [shape = 'u8[4096]{0}', space=vmem, size = 0x1000, scoped, tag = 'scoped mem for input reshape']
    %s3 = sshll.u32 1, 4
    %s4 = ssub.s32 %s3, 1
    %v5 = vld [vmem:[%s0] sm:%s4]
    %6 = vst [vmem:[#allocation1] sm:%s4] %v5
    %v7 = vld [vmem:[#allocation1] sm:$0x1]
    %vm8 = vcmask 23552
    %9 = vst.msk [vmem:[#allocation0] sm:$0x1] %vm8, %v7
    %s10 = scalar_lea.vmem [#allocation1], 3
    %v11 = vld [vmem:[%s10] sm:$0x1]
    %12 = vrot.lane.b32.xlu0 %v11, 9
    %v13 = vpop.permute.xlu0 %12
    %vm14 = vcmask 97352
    %15 = vst.msk [vmem:[#allocation0] sm:$0x1] %vm14, %v13
    %s16 = scalar_lea.vmem [#allocation1], 2
    %v17 = vld [vmem:[%s16] sm:$0x1]
    %18 = vrot.lane.b32.xlu0 %v17, 6
    %v19 = vpop.permute.xlu0 %18
    %vm20 = vcmask 72752
    %21 = vst.msk [vmem:[#allocation0] sm:$0x1] %vm20, %v19
    %s22 = scalar_lea.vmem [#allocation1], 1
    %v23 = vld [vmem:[%s22] sm:$0x1]
    %24 = vrot.lane.b32.xlu0 %v23, 3
    %v25 = vpop.permute.xlu0 %24
    %vm26 = vcmask 48152
    %27 = vst.msk [vmem:[#allocation0] sm:$0x1] %vm26, %v25
    %s29 = sshll.u32 1, 1
    %s30 = ssub.s32 %s29, 1
    %v32 = vld [vmem:[#allocation0] sm:%s30]
    %s33 = sshll.u32 1, 1
    %s34 = ssub.s32 %s33, 1
    %35 = vst [vmem:[%s1] sm:%s34] %v32

// kernel: generator_forward.9
$region0: #{generator_forward.9}
  #allocation0 [shape = 'u32[]', space=smem, size = 0x4, offset = 0x4, fixed_abs, tag = 'smem constant byte address 0x4 - core index']
  #allocation1 [shape = 'u32[144,128]{1,0:T(1,128)}', space=vmem, size = 0x12000, scoped, tag = 'internal scratch']
  %s0 = inlined_call_operand.vmem [shape: f32[2048,72], index: 0, kind: input, shape index: {}]
  %s1 = inlined_call_operand.vmem [shape: f32[72,128], index: 1, kind: input, shape index: {}]
  %s2 = inlined_call_operand.vmem [shape: f32[1,128], index: 2, kind: input, shape index: {}]
  %s3 = inlined_call_operand.vmem [shape: f32[128,128], index: 3, kind: input, shape index: {}]
  %s4 = inlined_call_operand.vmem [shape: f32[1,128], index: 4, kind: input, shape index: {}]
  %s5 = inlined_call_operand.vmem [shape: f32[2048,128], index: 5, kind: output, shape index: {}]
  %s6 = sld [smem:[#allocation0]]
  $region53: #{generator_forward.9} parent=0
    _
  %s8 = ssub.s32 1, %s6
  %s9 = scalar_select 0, %s8, %s6
  loop: start=0, step=1, limit=4
  $region2: #{generator_forward.9} parent=0 // loop_pre_header
    _
  $region3: #{generator_forward.9} parent=0 // loop_header
    %s11 = sphi 0, %s15
    %p12 = scmp.ge.s32.totalorder %s11, 4
    %s21 = sphi 0, %s23
    %s24 = sphi 0, %s21
    %s25 = sphi 0, %s24
    %s41 = sphi 0, %s25
    %s45 = sphi 0, %s45
    %s47 = sphi 0, %s45
    %s48 = sphi 0, %s47
    %s62 = sphi 0, %s48
    %s66 = sphi 0, %s66
    %s68 = sphi 0, %s66
    %s69 = sphi 0, %s68
    %s83 = sphi 0, %s69
    %s87 = sphi 0, %s87
    %s89 = sphi 0, %s87
    %s90 = sphi 0, %s89
    %s104 = sphi 0, %s90
    %s108 = sphi 0, %s108
    %s110 = sphi 0, %s108
    %s111 = sphi 0, %s110
    %s125 = sphi 0, %s111
    %s131 = sphi 0, %s133
    %s134 = sphi 0, %s131
    %s135 = sphi 0, %s134
    %s151 = sphi 0, %s135
  $region4: #{generator_forward.9} parent=0 // loop_header_branch
    %14 = sbr.rel (%p12) target = $region8
  $region5: #{generator_forward.9} parent=0 // loop_body
    %s16 = ssub.s32 %s11, 1
    %s17 = ssub.s32 %s11, 2
    %s18 = sadd.s32 %s11, 1
    %s19 = ssub.s32 %s11, %s18
    %p20 = scmp.eq.s32.totalorder %s19, 0
    %s22 = sadd.s32 %s21, 1
    %s23 = scalar_select %p20, %s21, %s22
    %p26 = pneg %p20
    %p27 = scmp.eq.s32.totalorder %s11, 1
    %p28 = por %p26, %p27
    %p29 = scmp.ne.s32.totalorder %s21, %s24
    %p30 = scmp.eq.s32.totalorder %s11, 0
    %p31 = por %p29, %p30
    %p32 = scmp.ne.s32.totalorder %s21, %s24
    %p33 = scmp.eq.s32.totalorder %s16, 1
    %p34 = por %p32, %p33
    %p35 = scmp.ne.s32.totalorder %s24, %s25
    %p36 = scmp.eq.s32.totalorder %s16, 0
    %p37 = por %p35, %p36
    %p38 = scmp.ne.s32.totalorder %s24, %s25
    %p39 = scmp.eq.s32.totalorder %s17, 1
    %p40 = por %p38, %p39
    %p42 = scmp.ne.s32.totalorder %s25, %s41
    %p43 = scmp.eq.s32.totalorder %s17, 0
    %p44 = por %p42, %p43
    %s46 = sadd.s32 %s45, 1
    %p49 = scmp.eq.s32.totalorder %s11, 1
    %p50 = scmp.ne.s32.totalorder %s45, %s47
    %p51 = scmp.eq.s32.totalorder %s11, 0
    %p52 = por %p50, %p51
    %p53 = scmp.ne.s32.totalorder %s45, %s47
    %p54 = scmp.eq.s32.totalorder %s16, 1
    %p55 = por %p53, %p54
    %p56 = scmp.ne.s32.totalorder %s47, %s48
    %p57 = scmp.eq.s32.totalorder %s16, 0
    %p58 = por %p56, %p57
    %p59 = scmp.ne.s32.totalorder %s47, %s48
    %p60 = scmp.eq.s32.totalorder %s17, 1
    %p61 = por %p59, %p60
    %p63 = scmp.ne.s32.totalorder %s48, %s62
    %p64 = scmp.eq.s32.totalorder %s17, 0
    %p65 = por %p63, %p64
    %s67 = sadd.s32 %s66, 1
    %p70 = scmp.eq.s32.totalorder %s11, 1
    %p71 = scmp.ne.s32.totalorder %s66, %s68
    %p72 = scmp.eq.s32.totalorder %s11, 0
    %p73 = por %p71, %p72
    %p74 = scmp.ne.s32.totalorder %s66, %s68
    %p75 = scmp.eq.s32.totalorder %s16, 1
    %p76 = por %p74, %p75
    %p77 = scmp.ne.s32.totalorder %s68, %s69
    %p78 = scmp.eq.s32.totalorder %s16, 0
    %p79 = por %p77, %p78
    %p80 = scmp.ne.s32.totalorder %s68, %s69
    %p81 = scmp.eq.s32.totalorder %s17, 1
    %p82 = por %p80, %p81
    %p84 = scmp.ne.s32.totalorder %s69, %s83
    %p85 = scmp.eq.s32.totalorder %s17, 0
    %p86 = por %p84, %p85
    %s88 = sadd.s32 %s87, 1
    %p91 = scmp.eq.s32.totalorder %s11, 1
    %p92 = scmp.ne.s32.totalorder %s87, %s89
    %p93 = scmp.eq.s32.totalorder %s11, 0
    %p94 = por %p92, %p93
    %p95 = scmp.ne.s32.totalorder %s87, %s89
    %p96 = scmp.eq.s32.totalorder %s16, 1
    %p97 = por %p95, %p96
    %p98 = scmp.ne.s32.totalorder %s89, %s90
    %p99 = scmp.eq.s32.totalorder %s16, 0
    %p100 = por %p98, %p99
    %p101 = scmp.ne.s32.totalorder %s89, %s90
    %p102 = scmp.eq.s32.totalorder %s17, 1
    %p103 = por %p101, %p102
    %p105 = scmp.ne.s32.totalorder %s90, %s104
    %p106 = scmp.eq.s32.totalorder %s17, 0
    %p107 = por %p105, %p106
    %s109 = sadd.s32 %s108, 1
    %p112 = scmp.eq.s32.totalorder %s11, 1
    %p113 = scmp.ne.s32.totalorder %s108, %s110
    %p114 = scmp.eq.s32.totalorder %s11, 0
    %p115 = por %p113, %p114
    %p116 = scmp.ne.s32.totalorder %s108, %s110
    %p117 = scmp.eq.s32.totalorder %s16, 1
    %p118 = por %p116, %p117
    %p119 = scmp.ne.s32.totalorder %s110, %s111
    %p120 = scmp.eq.s32.totalorder %s16, 0
    %p121 = por %p119, %p120
    %p122 = scmp.ne.s32.totalorder %s110, %s111
    %p123 = scmp.eq.s32.totalorder %s17, 1
    %p124 = por %p122, %p123
    %p126 = scmp.ne.s32.totalorder %s111, %s125
    %p127 = scmp.eq.s32.totalorder %s17, 0
    %p128 = por %p126, %p127
    %s129 = ssub.s32 %s11, %s18
    %p130 = scmp.eq.s32.totalorder %s129, 0
    %s132 = sadd.s32 %s131, 1
    %s133 = scalar_select %p130, %s131, %s132
    %p136 = pneg %p130
    %p137 = scmp.eq.s32.totalorder %s11, 1
    %p138 = por %p136, %p137
    %p139 = scmp.ne.s32.totalorder %s131, %s134
    %p140 = scmp.eq.s32.totalorder %s11, 0
    %p141 = por %p139, %p140
    %p142 = scmp.ne.s32.totalorder %s131, %s134
    %p143 = scmp.eq.s32.totalorder %s16, 1
    %p144 = por %p142, %p143
    %p145 = scmp.ne.s32.totalorder %s134, %s135
    %p146 = scmp.eq.s32.totalorder %s16, 0
    %p147 = por %p145, %p146
    %p148 = scmp.ne.s32.totalorder %s134, %s135
    %p149 = scmp.eq.s32.totalorder %s17, 1
    %p150 = por %p148, %p149
    %p152 = scmp.ne.s32.totalorder %s135, %s151
    %p153 = scmp.eq.s32.totalorder %s17, 0
    %p154 = por %p152, %p153
    %p155 = scmp.le.s32.totalorder 1, %s11
    %p156 = scmp.lt.s32.totalorder %s11, 3
    %p157 = pnand %p155, %p156
    %p158 = pneg %p157
    // Predicated region
    $region9: #{generator_forward.9} parent=5 // pred_check
      _
    $region10: #{generator_forward.9} parent=5 // pred_check_branch
      %160 = sbr.rel (%p157) target = $region12
    $region11: #{generator_forward.9} parent=5 // pred_region
      %s161 = ssub.s32 %s11, 1
      // Predicated region
      $region13: #{generator_forward.9} parent=11 // pred_check
        %p162 = pneg %p58
      $region14: #{generator_forward.9} parent=11 // pred_check_branch
        %164 = sbr.rel (%p162) target = $region16
      $region15: #{generator_forward.9} parent=11 // pred_region
        _
      $region16: #{generator_forward.9} parent=11 // pred_fallthru
        _
      // Predicated region
      $region17: #{generator_forward.9} parent=11 // pred_check
        %p165 = pneg %p79
      $region18: #{generator_forward.9} parent=11 // pred_check_branch
        %167 = sbr.rel (%p165) target = $region20
      $region19: #{generator_forward.9} parent=11 // pred_region
        _
      $region20: #{generator_forward.9} parent=11 // pred_fallthru
        _
      // Predicated region
      $region21: #{generator_forward.9} parent=11 // pred_check
        %p168 = pneg %p100
      $region22: #{generator_forward.9} parent=11 // pred_check_branch
        %170 = sbr.rel (%p168) target = $region24
      $region23: #{generator_forward.9} parent=11 // pred_region
        _
      $region24: #{generator_forward.9} parent=11 // pred_fallthru
        _
      // Predicated region
      $region25: #{generator_forward.9} parent=11 // pred_check
        %p171 = pneg %p121
      $region26: #{generator_forward.9} parent=11 // pred_check_branch
        %173 = sbr.rel (%p171) target = $region28
      $region27: #{generator_forward.9} parent=11 // pred_region
        _
      $region28: #{generator_forward.9} parent=11 // pred_fallthru
        _
    $region12: #{generator_forward.9} parent=5 // pred_fallthru
      _
    %p174 = scmp.lt.s32.totalorder %s11, 2
    // Predicated region
    $region29: #{generator_forward.9} parent=5 // pred_check
      %p175 = pneg %p174
    $region30: #{generator_forward.9} parent=5 // pred_check_branch
      %177 = sbr.rel (%p175) target = $region32
    $region31: #{generator_forward.9} parent=5 // pred_region
      // Predicated region
      $region33: #{generator_forward.9} parent=31 // pred_check
        %p178 = pneg %p31
      $region34: #{generator_forward.9} parent=31 // pred_check_branch
        %180 = sbr.rel (%p178) target = $region36
      $region35: #{generator_forward.9} parent=31 // pred_region
        %s181 = smul.u32 128, %s11
        %p182 = scmp.lt.s32.totalorder %s181, 255
        %s183 = scalar_select %p182, %s181, 255
        %s184 = smul.addr %s183, 8
        %s185 = scalar_lea.vmem %s0, %s184
        %s186 = smul.u32 128, %s11
      $region36: #{generator_forward.9} parent=31 // pred_fallthru
        _
    $region32: #{generator_forward.9} parent=5 // pred_fallthru
      _
    %p187 = scmp.le.s32.totalorder 1, %s11
    %p188 = scmp.lt.s32.totalorder %s11, 3
    %p189 = pnand %p187, %p188
    %p190 = pneg %p189
    // Predicated region
    $region37: #{generator_forward.9} parent=5 // pred_check
      _
    $region38: #{generator_forward.9} parent=5 // pred_check_branch
      %192 = sbr.rel (%p189) target = $region40
    $region39: #{generator_forward.9} parent=5 // pred_region
      %s193 = ssub.s32 %s11, 1
      %s194 = smul.u32 128, %s16
      %p195 = scmp.lt.s32.totalorder %s194, 255
      %s196 = scalar_select %p195, %s194, 255
      %s197 = smul.addr %s196, 8
      %s198 = scalar_lea.vmem %s0, %s197
      %p199 = pneg %p37
      %p200 = pneg %p34
      %p201 = pneg %p58
      %p202 = pneg %p55
      %p203 = pneg %p79
      %p204 = pneg %p76
      %p205 = pneg %p100
      %p206 = pneg %p97
      %p207 = pneg %p121
      %p208 = pneg %p118
      %p209 = pneg %p147
      %p210 = pneg %p144
      %s211 = smul.u32 128, %s16
      %p212 = scmp.lt.s32.totalorder %s211, 255
      %s213 = scalar_select %p212, %s211, 255
      %s214 = smul.addr %s213, 8
      %s215 = scalar_lea.vmem %s5, %s214
      %s216 = smul.u32 128, %s16
      %p217 = scmp.lt.s32.totalorder %s216, 255
      %s218 = scalar_select %p217, %s216, 255
      %s219 = smul.addr %s218, 8
      %s220 = scalar_lea.vmem %s0, %s219
      %s221 = smul.u32 128, %s16
      %s222 = smul.u32 128, %s16
      %p223 = scmp.lt.s32.totalorder %s222, 255
      %s224 = scalar_select %p223, %s222, 255
      %s225 = smul.addr %s224, 8
      %s226 = scalar_lea.vmem %s5, %s225
      %s227 = smul.u32 128, %s16
      %v228 = vld [vmem:[%s220] sm:$0xff]
      %v229 = vld [vmem:[%s220 + $0x8] sm:$0xff]
      %v230 = vld [vmem:[%s220 + $0x10] sm:$0xff]
      %v231 = vld [vmem:[%s220 + $0x18] sm:$0xff]
      %v232 = vld [vmem:[%s220 + $0x20] sm:$0xff]
      %v233 = vld [vmem:[%s220 + $0x28] sm:$0xff]
      %v234 = vld [vmem:[%s220 + $0x30] sm:$0xff]
      %v235 = vld [vmem:[%s220 + $0x38] sm:$0xff]
      %v236 = vld [vmem:[%s220 + $0x40] sm:$0xff]
      %v237 = vld [vmem:[%s220 + $0x48] sm:$0xff]
      %v238 = vld [vmem:[%s220 + $0x50] sm:$0xff]
      %v239 = vld [vmem:[%s220 + $0x58] sm:$0xff]
      %v240 = vld [vmem:[%s220 + $0x60] sm:$0xff]
      %v241 = vld [vmem:[%s220 + $0x68] sm:$0xff]
      %v242 = vld [vmem:[%s220 + $0x70] sm:$0xff]
      %v243 = vld [vmem:[%s220 + $0x78] sm:$0xff]
      %v244 = vld [vmem:[%s220 + $0x80] sm:$0xff]
      %v245 = vld [vmem:[%s220 + $0x88] sm:$0xff]
      %v246 = vld [vmem:[%s220 + $0x90] sm:$0xff]
      %v247 = vld [vmem:[%s220 + $0x98] sm:$0xff]
      %v248 = vld [vmem:[%s220 + $0xa0] sm:$0xff]
      %v249 = vld [vmem:[%s220 + $0xa8] sm:$0xff]
      %v250 = vld [vmem:[%s220 + $0xb0] sm:$0xff]
      %v251 = vld [vmem:[%s220 + $0xb8] sm:$0xff]
      %v252 = vld [vmem:[%s220 + $0xc0] sm:$0xff]
      %v253 = vld [vmem:[%s220 + $0xc8] sm:$0xff]
      %v254 = vld [vmem:[%s220 + $0xd0] sm:$0xff]
      %v255 = vld [vmem:[%s220 + $0xd8] sm:$0xff]
      %v256 = vld [vmem:[%s220 + $0xe0] sm:$0xff]
      %v257 = vld [vmem:[%s220 + $0xe8] sm:$0xff]
      %v258 = vld [vmem:[%s220 + $0xf0] sm:$0xff]
      %v259 = vld [vmem:[%s220 + $0xf8] sm:$0xff]
      %v260 = vld [vmem:[%s220 + $0x100] sm:$0xff]
      %v261 = vld [vmem:[%s220 + $0x108] sm:$0xff]
      %v262 = vld [vmem:[%s220 + $0x110] sm:$0xff]
      %v263 = vld [vmem:[%s220 + $0x118] sm:$0xff]
      %v264 = vld [vmem:[%s220 + $0x120] sm:$0xff]
      %v265 = vld [vmem:[%s220 + $0x128] sm:$0xff]
      %v266 = vld [vmem:[%s220 + $0x130] sm:$0xff]
      %v267 = vld [vmem:[%s220 + $0x138] sm:$0xff]
      %v268 = vld [vmem:[%s220 + $0x140] sm:$0xff]
      %v269 = vld [vmem:[%s220 + $0x148] sm:$0xff]
      %v270 = vld [vmem:[%s220 + $0x150] sm:$0xff]
      %v271 = vld [vmem:[%s220 + $0x158] sm:$0xff]
      %v272 = vld [vmem:[%s220 + $0x160] sm:$0xff]
      %v273 = vld [vmem:[%s220 + $0x168] sm:$0xff]
      %v274 = vld [vmem:[%s220 + $0x170] sm:$0xff]
      %v275 = vld [vmem:[%s220 + $0x178] sm:$0xff]
      %v276 = vld [vmem:[%s220 + $0x180] sm:$0xff]
      %v277 = vld [vmem:[%s220 + $0x188] sm:$0xff]
      %v278 = vld [vmem:[%s220 + $0x190] sm:$0xff]
      %v279 = vld [vmem:[%s220 + $0x198] sm:$0xff]
      %v280 = vld [vmem:[%s220 + $0x1a0] sm:$0xff]
      %v281 = vld [vmem:[%s220 + $0x1a8] sm:$0xff]
      %v282 = vld [vmem:[%s220 + $0x1b0] sm:$0xff]
      %v283 = vld [vmem:[%s220 + $0x1b8] sm:$0xff]
      %v284 = vld [vmem:[%s220 + $0x1c0] sm:$0xff]
      %v285 = vld [vmem:[%s220 + $0x1c8] sm:$0xff]
      %v286 = vld [vmem:[%s220 + $0x1d0] sm:$0xff]
      %v287 = vld [vmem:[%s220 + $0x1d8] sm:$0xff]
      %v288 = vld [vmem:[%s220 + $0x1e0] sm:$0xff]
      %v289 = vld [vmem:[%s220 + $0x1e8] sm:$0xff]
      %v290 = vld [vmem:[%s220 + $0x1f0] sm:$0xff]
      %v291 = vld [vmem:[%s220 + $0x1f8] sm:$0xff]
      %v292 = vld [vmem:[%s220 + $0x200] sm:$0xff]
      %v293 = vld [vmem:[%s220 + $0x208] sm:$0xff]
      %v294 = vld [vmem:[%s220 + $0x210] sm:$0xff]
      %v295 = vld [vmem:[%s220 + $0x218] sm:$0xff]
      %v296 = vld [vmem:[%s220 + $0x220] sm:$0xff]
      %v297 = vld [vmem:[%s220 + $0x228] sm:$0xff]
      %v298 = vld [vmem:[%s220 + $0x230] sm:$0xff]
      %v299 = vld [vmem:[%s220 + $0x238] sm:$0xff]
      %v300 = vld [vmem:[%s220 + $0x240] sm:$0xff]
      %v301 = vld [vmem:[%s220 + $0x248] sm:$0xff]
      %v302 = vld [vmem:[%s220 + $0x250] sm:$0xff]
      %v303 = vld [vmem:[%s220 + $0x258] sm:$0xff]
      %v304 = vld [vmem:[%s220 + $0x260] sm:$0xff]
      %v305 = vld [vmem:[%s220 + $0x268] sm:$0xff]
      %v306 = vld [vmem:[%s220 + $0x270] sm:$0xff]
      %v307 = vld [vmem:[%s220 + $0x278] sm:$0xff]
      %v308 = vld [vmem:[%s220 + $0x280] sm:$0xff]
      %v309 = vld [vmem:[%s220 + $0x288] sm:$0xff]
      %v310 = vld [vmem:[%s220 + $0x290] sm:$0xff]
      %v311 = vld [vmem:[%s220 + $0x298] sm:$0xff]
      %v312 = vld [vmem:[%s220 + $0x2a0] sm:$0xff]
      %v313 = vld [vmem:[%s220 + $0x2a8] sm:$0xff]
      %v314 = vld [vmem:[%s220 + $0x2b0] sm:$0xff]
      %v315 = vld [vmem:[%s220 + $0x2b8] sm:$0xff]
      %v316 = vld [vmem:[%s220 + $0x2c0] sm:$0xff]
      %v317 = vld [vmem:[%s220 + $0x2c8] sm:$0xff]
      %v318 = vld [vmem:[%s220 + $0x2d0] sm:$0xff]
      %v319 = vld [vmem:[%s220 + $0x2d8] sm:$0xff]
      %v320 = vld [vmem:[%s220 + $0x2e0] sm:$0xff]
      %v321 = vld [vmem:[%s220 + $0x2e8] sm:$0xff]
      %v322 = vld [vmem:[%s220 + $0x2f0] sm:$0xff]
      %v323 = vld [vmem:[%s220 + $0x2f8] sm:$0xff]
      %v324 = vld [vmem:[%s220 + $0x300] sm:$0xff]
      %v325 = vld [vmem:[%s220 + $0x308] sm:$0xff]
      %v326 = vld [vmem:[%s220 + $0x310] sm:$0xff]
      %v327 = vld [vmem:[%s220 + $0x318] sm:$0xff]
      %v328 = vld [vmem:[%s220 + $0x320] sm:$0xff]
      %v329 = vld [vmem:[%s220 + $0x328] sm:$0xff]
      %v330 = vld [vmem:[%s220 + $0x330] sm:$0xff]
      %v331 = vld [vmem:[%s220 + $0x338] sm:$0xff]
      %v332 = vld [vmem:[%s220 + $0x340] sm:$0xff]
      %v333 = vld [vmem:[%s220 + $0x348] sm:$0xff]
      %v334 = vld [vmem:[%s220 + $0x350] sm:$0xff]
      %v335 = vld [vmem:[%s220 + $0x358] sm:$0xff]
      %v336 = vld [vmem:[%s220 + $0x360] sm:$0xff]
      %v337 = vld [vmem:[%s220 + $0x368] sm:$0xff]
      %v338 = vld [vmem:[%s220 + $0x370] sm:$0xff]
      %v339 = vld [vmem:[%s220 + $0x378] sm:$0xff]
      %v340 = vld [vmem:[%s220 + $0x380] sm:$0xff]
      %v341 = vld [vmem:[%s220 + $0x388] sm:$0xff]
      %v342 = vld [vmem:[%s220 + $0x390] sm:$0xff]
      %v343 = vld [vmem:[%s220 + $0x398] sm:$0xff]
      %v344 = vld [vmem:[%s220 + $0x3a0] sm:$0xff]
      %v345 = vld [vmem:[%s220 + $0x3a8] sm:$0xff]
      %v346 = vld [vmem:[%s220 + $0x3b0] sm:$0xff]
      %v347 = vld [vmem:[%s220 + $0x3b8] sm:$0xff]
      %v348 = vld [vmem:[%s220 + $0x3c0] sm:$0xff]
      %v349 = vld [vmem:[%s220 + $0x3c8] sm:$0xff]
      %v350 = vld [vmem:[%s220 + $0x3d0] sm:$0xff]
      %v351 = vld [vmem:[%s220 + $0x3d8] sm:$0xff]
      %v352 = vld [vmem:[%s220 + $0x3e0] sm:$0xff]
      %v353 = vld [vmem:[%s220 + $0x3e8] sm:$0xff]
      %v354 = vld [vmem:[%s220 + $0x3f0] sm:$0xff]
      %v355 = vld [vmem:[%s220 + $0x3f8] sm:$0xff]
      %v356 = vld [vmem:[%s1] sm:$0xff]
      %v357 = vld [vmem:[%s1 + $0x8] sm:$0xff]
      %v358 = vld [vmem:[%s1 + $0x10] sm:$0xff]
      %v359 = vld [vmem:[%s1 + $0x18] sm:$0xff]
      %v360 = vld [vmem:[%s1 + $0x20] sm:$0xff]
      %v361 = vld [vmem:[%s1 + $0x28] sm:$0xff]
      %v362 = vld [vmem:[%s1 + $0x30] sm:$0xff]
      %v363 = vld [vmem:[%s1 + $0x38] sm:$0xff]
      %v364 = vld [vmem:[%s1 + $0x40] sm:$0xff]
      %v365 = vld [vmem:[%s2] sm:$0x1]
      %v367 = vlaneseq
      %v368 = vshrl.u32 %v367, 7
      %v369 = vsub.s32 0, %v368
      %v370 = vrot.slane %v365, %v369
      %vm372 = vcmask 588800
      %v374 = vsel %vm372, %v228, 0
      %v377 = vsel %vm372, %v229, 0
      %v380 = vsel %vm372, %v230, 0
      %v383 = vsel %vm372, %v231, 0
      %v386 = vsel %vm372, %v232, 0
      %v389 = vsel %vm372, %v233, 0
      %v392 = vsel %vm372, %v234, 0
      %v395 = vsel %vm372, %v235, 0
      %v398 = vsel %vm372, %v236, 0
      %v401 = vsel %vm372, %v237, 0
      %v404 = vsel %vm372, %v238, 0
      %v407 = vsel %vm372, %v239, 0
      %v410 = vsel %vm372, %v240, 0
      %v413 = vsel %vm372, %v241, 0
      %v416 = vsel %vm372, %v242, 0
      %v419 = vsel %vm372, %v243, 0
      %v422 = vsel %vm372, %v244, 0
      %v425 = vsel %vm372, %v245, 0
      %v428 = vsel %vm372, %v246, 0
      %v431 = vsel %vm372, %v247, 0
      %v434 = vsel %vm372, %v248, 0
      %v437 = vsel %vm372, %v249, 0
      %v440 = vsel %vm372, %v250, 0
      %v443 = vsel %vm372, %v251, 0
      %v446 = vsel %vm372, %v252, 0
      %v449 = vsel %vm372, %v253, 0
      %v452 = vsel %vm372, %v254, 0
      %v455 = vsel %vm372, %v255, 0
      %v458 = vsel %vm372, %v256, 0
      %v461 = vsel %vm372, %v257, 0
      %v464 = vsel %vm372, %v258, 0
      %v467 = vsel %vm372, %v259, 0
      %v470 = vsel %vm372, %v260, 0
      %v473 = vsel %vm372, %v261, 0
      %v476 = vsel %vm372, %v262, 0
      %v479 = vsel %vm372, %v263, 0
      %v482 = vsel %vm372, %v264, 0
      %v485 = vsel %vm372, %v265, 0
      %v488 = vsel %vm372, %v266, 0
      %v491 = vsel %vm372, %v267, 0
      %v494 = vsel %vm372, %v268, 0
      %v497 = vsel %vm372, %v269, 0
      %v500 = vsel %vm372, %v270, 0
      %v503 = vsel %vm372, %v271, 0
      %v506 = vsel %vm372, %v272, 0
      %v509 = vsel %vm372, %v273, 0
      %v512 = vsel %vm372, %v274, 0
      %v515 = vsel %vm372, %v275, 0
      %v518 = vsel %vm372, %v276, 0
      %v521 = vsel %vm372, %v277, 0
      %v524 = vsel %vm372, %v278, 0
      %v527 = vsel %vm372, %v279, 0
      %v530 = vsel %vm372, %v280, 0
      %v533 = vsel %vm372, %v281, 0
      %v536 = vsel %vm372, %v282, 0
      %v539 = vsel %vm372, %v283, 0
      %v542 = vsel %vm372, %v284, 0
      %v545 = vsel %vm372, %v285, 0
      %v548 = vsel %vm372, %v286, 0
      %v551 = vsel %vm372, %v287, 0
      %v554 = vsel %vm372, %v288, 0
      %v557 = vsel %vm372, %v289, 0
      %v560 = vsel %vm372, %v290, 0
      %v563 = vsel %vm372, %v291, 0
      %v566 = vsel %vm372, %v292, 0
      %v569 = vsel %vm372, %v293, 0
      %v572 = vsel %vm372, %v294, 0
      %v575 = vsel %vm372, %v295, 0
      %v578 = vsel %vm372, %v296, 0
      %v581 = vsel %vm372, %v297, 0
      %v584 = vsel %vm372, %v298, 0
      %v587 = vsel %vm372, %v299, 0
      %v590 = vsel %vm372, %v300, 0
      %v593 = vsel %vm372, %v301, 0
      %v596 = vsel %vm372, %v302, 0
      %v599 = vsel %vm372, %v303, 0
      %v602 = vsel %vm372, %v304, 0
      %v605 = vsel %vm372, %v305, 0
      %v608 = vsel %vm372, %v306, 0
      %v611 = vsel %vm372, %v307, 0
      %v614 = vsel %vm372, %v308, 0
      %v617 = vsel %vm372, %v309, 0
      %v620 = vsel %vm372, %v310, 0
      %v623 = vsel %vm372, %v311, 0
      %v626 = vsel %vm372, %v312, 0
      %v629 = vsel %vm372, %v313, 0
      %v632 = vsel %vm372, %v314, 0
      %v635 = vsel %vm372, %v315, 0
      %v638 = vsel %vm372, %v316, 0
      %v641 = vsel %vm372, %v317, 0
      %v644 = vsel %vm372, %v318, 0
      %v647 = vsel %vm372, %v319, 0
      %v650 = vsel %vm372, %v320, 0
      %v653 = vsel %vm372, %v321, 0
      %v656 = vsel %vm372, %v322, 0
      %v659 = vsel %vm372, %v323, 0
      %v662 = vsel %vm372, %v324, 0
      %v665 = vsel %vm372, %v325, 0
      %v668 = vsel %vm372, %v326, 0
      %v671 = vsel %vm372, %v327, 0
      %v674 = vsel %vm372, %v328, 0
      %v677 = vsel %vm372, %v329, 0
      %v680 = vsel %vm372, %v330, 0
      %v683 = vsel %vm372, %v331, 0
      %v686 = vsel %vm372, %v332, 0
      %v689 = vsel %vm372, %v333, 0
      %v692 = vsel %vm372, %v334, 0
      %v695 = vsel %vm372, %v335, 0
      %v698 = vsel %vm372, %v336, 0
      %v701 = vsel %vm372, %v337, 0
      %v704 = vsel %vm372, %v338, 0
      %v707 = vsel %vm372, %v339, 0
      %v710 = vsel %vm372, %v340, 0
      %v713 = vsel %vm372, %v341, 0
      %v716 = vsel %vm372, %v342, 0
      %v719 = vsel %vm372, %v343, 0
      %v722 = vsel %vm372, %v344, 0
      %v725 = vsel %vm372, %v345, 0
      %v728 = vsel %vm372, %v346, 0
      %v731 = vsel %vm372, %v347, 0
      %v734 = vsel %vm372, %v348, 0
      %v737 = vsel %vm372, %v349, 0
      %v740 = vsel %vm372, %v350, 0
      %v743 = vsel %vm372, %v351, 0
      %v746 = vsel %vm372, %v352, 0
      %v749 = vsel %vm372, %v353, 0
      %v752 = vsel %vm372, %v354, 0
      %v755 = vsel %vm372, %v355, 0
      %757 = vmatprep.subr.mxu0 0.0
      %758 = vmatpush1.msra.mxu0 0.0
      %759 = vmatprep.subr.mxu0 0.0
      %760 = vmatpush1.msra.mxu0 0.0
      %761 = vmatprep.subr.mxu0 0.0
      %762 = vmatpush1.msra.mxu0 0.0
      %763 = vmatprep.subr.mxu0 0.0
      %764 = vmatpush1.msra.mxu0 0.0
      %765 = vmatprep.subr.mxu0 0.0
      %766 = vmatpush1.msra.mxu0 0.0
      %767 = vmatprep.subr.mxu0 0.0
      %768 = vmatpush1.msra.mxu0 0.0
      %769 = vmatprep.subr.mxu0 0.0
      %770 = vmatpush1.msra.mxu0 0.0
      %771 = vmatprep.subr.mxu0 0.0
      %772 = vmatpush1.msra.mxu0 %v364
      %773 = vmatprep.subr.mxu0 0.0
      %774 = vmatpush1.msra.mxu0 %v363
      %775 = vmatprep.subr.mxu0 0.0
      %776 = vmatpush1.msra.mxu0 %v362
      %777 = vmatprep.subr.mxu0 0.0
      %778 = vmatpush1.msra.mxu0 %v361
      %779 = vmatprep.subr.mxu0 0.0
      %780 = vmatpush1.msra.mxu0 %v360
      %781 = vmatprep.subr.mxu0 0.0
      %782 = vmatpush1.msra.mxu0 %v359
      %783 = vmatprep.subr.mxu0 0.0
      %784 = vmatpush1.msra.mxu0 %v358
      %785 = vmatprep.subr.mxu0 0.0
      %786 = vmatpush1.msra.mxu0 %v357
      %787 = vmatprep.subr.mxu0 0.0
      %788 = vmatpush1.msra.mxu0 %v356
      %789 = vmatprep.subr.mxu0 0.0
      %790 = vmatpush2.msra.mxu0 0.0
      %791 = vmatprep.subr.mxu0 0.0
      %792 = vmatpush2.msra.mxu0 0.0
      %793 = vmatprep.subr.mxu0 0.0
      %794 = vmatpush2.msra.mxu0 0.0
      %795 = vmatprep.subr.mxu0 0.0
      %796 = vmatpush2.msra.mxu0 0.0
      %797 = vmatprep.subr.mxu0 0.0
      %798 = vmatpush2.msra.mxu0 0.0
      %799 = vmatprep.subr.mxu0 0.0
      %800 = vmatpush2.msra.mxu0 0.0
      %801 = vmatprep.subr.mxu0 0.0
      %802 = vmatpush2.msra.mxu0 0.0
      %803 = vmatprep.subr.mxu0 0.0
      %804 = vmatpush2.msra.mxu0 0.0
      %805 = vmatprep.subr.mxu0 0.0
      %806 = vmatpush2.msra.mxu0 0.0
      %807 = vmatprep.subr.mxu0 0.0
      %808 = vmatpush2.msra.mxu0 0.0
      %809 = vmatprep.subr.mxu0 0.0
      %810 = vmatpush2.msra.mxu0 0.0
      %811 = vmatprep.subr.mxu0 0.0
      %812 = vmatpush2.msra.mxu0 0.0
      %813 = vmatprep.subr.mxu0 0.0
      %814 = vmatpush2.msra.mxu0 0.0
      %815 = vmatprep.subr.mxu0 0.0
      %816 = vmatpush2.msra.mxu0 0.0
      %817 = vmatprep.subr.mxu0 0.0
      %818 = vmatpush2.msra.mxu0 0.0
      %819 = vmatprep.subr.mxu0 0.0
      %820 = vmatpush2.msra.mxu0 0.0
      %821 = vmatprep.mubr.f32.mxu0 0.0
      %822 = vmatmul.mubr.f32.gmra.mxu0 %v374
      %v823 = vpop.f32.mrf.mxu0
      %v824 = vadd.f32 %v370, %v823
      %v825 = vpop.f32.mrf.mxu0
      %826 = vmatprep.mubr.f32.mxu0 0.0
      %827 = vmatmul.mubr.f32.gmra.mxu0 %v377
      %v828 = vpop.f32.mrf.mxu0
      %v829 = vadd.f32 %v370, %v828
      %v830 = vpop.f32.mrf.mxu0
      %831 = vmatprep.mubr.f32.mxu0 0.0
      %832 = vmatmul.mubr.f32.gmra.mxu0 %v380
      %v833 = vpop.f32.mrf.mxu0
      %v834 = vadd.f32 %v370, %v833
      %v835 = vpop.f32.mrf.mxu0
      %836 = vmatprep.mubr.f32.mxu0 0.0
      %837 = vmatmul.mubr.f32.gmra.mxu0 %v383
      %v838 = vpop.f32.mrf.mxu0
      %v839 = vadd.f32 %v370, %v838
      %v840 = vpop.f32.mrf.mxu0
      %841 = vmatprep.mubr.f32.mxu0 0.0
      %842 = vmatmul.mubr.f32.gmra.mxu0 %v386
      %v843 = vpop.f32.mrf.mxu0
      %v844 = vadd.f32 %v370, %v843
      %v845 = vpop.f32.mrf.mxu0
      %846 = vmatprep.mubr.f32.mxu0 0.0
      %847 = vmatmul.mubr.f32.gmra.mxu0 %v389
      %v848 = vpop.f32.mrf.mxu0
      %v849 = vadd.f32 %v370, %v848
      %v850 = vpop.f32.mrf.mxu0
      %851 = vmatprep.mubr.f32.mxu0 0.0
      %852 = vmatmul.mubr.f32.gmra.mxu0 %v392
      %v853 = vpop.f32.mrf.mxu0
      %v854 = vadd.f32 %v370, %v853
      %v855 = vpop.f32.mrf.mxu0
      %856 = vmatprep.mubr.f32.mxu0 0.0
      %857 = vmatmul.mubr.f32.gmra.mxu0 %v395
      %v858 = vpop.f32.mrf.mxu0
      %v859 = vadd.f32 %v370, %v858
      %v860 = vpop.f32.mrf.mxu0
      %861 = vmatprep.mubr.f32.mxu0 0.0
      %862 = vmatmul.mubr.f32.gmra.mxu0 %v398
      %v863 = vpop.f32.mrf.mxu0
      %v864 = vadd.f32 %v370, %v863
      %v865 = vpop.f32.mrf.mxu0
      %866 = vmatprep.mubr.f32.mxu0 0.0
      %867 = vmatmul.mubr.f32.gmra.mxu0 %v401
      %v868 = vpop.f32.mrf.mxu0
      %v869 = vadd.f32 %v370, %v868
      %v870 = vpop.f32.mrf.mxu0
      %871 = vmatprep.mubr.f32.mxu0 0.0
      %872 = vmatmul.mubr.f32.gmra.mxu0 %v404
      %v873 = vpop.f32.mrf.mxu0
      %v874 = vadd.f32 %v370, %v873
      %v875 = vpop.f32.mrf.mxu0
      %876 = vmatprep.mubr.f32.mxu0 0.0
      %877 = vmatmul.mubr.f32.gmra.mxu0 %v407
      %v878 = vpop.f32.mrf.mxu0
      %v879 = vadd.f32 %v370, %v878
      %v880 = vpop.f32.mrf.mxu0
      %881 = vmatprep.mubr.f32.mxu0 0.0
      %882 = vmatmul.mubr.f32.gmra.mxu0 %v410
      %v883 = vpop.f32.mrf.mxu0
      %v884 = vadd.f32 %v370, %v883
      %v885 = vpop.f32.mrf.mxu0
      %886 = vmatprep.mubr.f32.mxu0 0.0
      %887 = vmatmul.mubr.f32.gmra.mxu0 %v413
      %v888 = vpop.f32.mrf.mxu0
      %v889 = vadd.f32 %v370, %v888
      %v890 = vpop.f32.mrf.mxu0
      %891 = vmatprep.mubr.f32.mxu0 0.0
      %892 = vmatmul.mubr.f32.gmra.mxu0 %v416
      %v893 = vpop.f32.mrf.mxu0
      %v894 = vadd.f32 %v370, %v893
      %v895 = vpop.f32.mrf.mxu0
      %896 = vmatprep.mubr.f32.mxu0 0.0
      %897 = vmatmul.mubr.f32.gmra.mxu0 %v419
      %v898 = vpop.f32.mrf.mxu0
      %v899 = vadd.f32 %v370, %v898
      %v900 = vpop.f32.mrf.mxu0
      %901 = vmatprep.mubr.f32.mxu0 0.0
      %902 = vmatmul.mubr.f32.gmra.mxu0 %v422
      %v903 = vpop.f32.mrf.mxu0
      %v904 = vadd.f32 %v370, %v903
      %v905 = vpop.f32.mrf.mxu0
      %906 = vmatprep.mubr.f32.mxu0 0.0
      %907 = vmatmul.mubr.f32.gmra.mxu0 %v425
      %v908 = vpop.f32.mrf.mxu0
      %v909 = vadd.f32 %v370, %v908
      %v910 = vpop.f32.mrf.mxu0
      %911 = vmatprep.mubr.f32.mxu0 0.0
      %912 = vmatmul.mubr.f32.gmra.mxu0 %v428
      %v913 = vpop.f32.mrf.mxu0
      %v914 = vadd.f32 %v370, %v913
      %v915 = vpop.f32.mrf.mxu0
      %916 = vmatprep.mubr.f32.mxu0 0.0
      %917 = vmatmul.mubr.f32.gmra.mxu0 %v431
      %v918 = vpop.f32.mrf.mxu0
      %v919 = vadd.f32 %v370, %v918
      %v920 = vpop.f32.mrf.mxu0
      %921 = vmatprep.mubr.f32.mxu0 0.0
      %922 = vmatmul.mubr.f32.gmra.mxu0 %v434
      %v923 = vpop.f32.mrf.mxu0
      %v924 = vadd.f32 %v370, %v923
      %v925 = vpop.f32.mrf.mxu0
      %926 = vmatprep.mubr.f32.mxu0 0.0
      %927 = vmatmul.mubr.f32.gmra.mxu0 %v437
      %v928 = vpop.f32.mrf.mxu0
      %v929 = vadd.f32 %v370, %v928
      %v930 = vpop.f32.mrf.mxu0
      %931 = vmatprep.mubr.f32.mxu0 0.0
      %932 = vmatmul.mubr.f32.gmra.mxu0 %v440
      %v933 = vpop.f32.mrf.mxu0
      %v934 = vadd.f32 %v370, %v933
      %v935 = vpop.f32.mrf.mxu0
      %936 = vmatprep.mubr.f32.mxu0 0.0
      %937 = vmatmul.mubr.f32.gmra.mxu0 %v443
      %v938 = vpop.f32.mrf.mxu0
      %v939 = vadd.f32 %v370, %v938
      %v940 = vpop.f32.mrf.mxu0
      %941 = vmatprep.mubr.f32.mxu0 0.0
      %942 = vmatmul.mubr.f32.gmra.mxu0 %v446
      %v943 = vpop.f32.mrf.mxu0
      %v944 = vadd.f32 %v370, %v943
      %v945 = vpop.f32.mrf.mxu0
      %946 = vmatprep.mubr.f32.mxu0 0.0
      %947 = vmatmul.mubr.f32.gmra.mxu0 %v449
      %v948 = vpop.f32.mrf.mxu0
      %v949 = vadd.f32 %v370, %v948
      %v950 = vpop.f32.mrf.mxu0
      %951 = vmatprep.mubr.f32.mxu0 0.0
      %952 = vmatmul.mubr.f32.gmra.mxu0 %v452
      %v953 = vpop.f32.mrf.mxu0
      %v954 = vadd.f32 %v370, %v953
      %v955 = vpop.f32.mrf.mxu0
      %956 = vmatprep.mubr.f32.mxu0 0.0
      %957 = vmatmul.mubr.f32.gmra.mxu0 %v455
      %v958 = vpop.f32.mrf.mxu0
      %v959 = vadd.f32 %v370, %v958
      %v960 = vpop.f32.mrf.mxu0
      %961 = vmatprep.mubr.f32.mxu0 0.0
      %962 = vmatmul.mubr.f32.gmra.mxu0 %v458
      %v963 = vpop.f32.mrf.mxu0
      %v964 = vadd.f32 %v370, %v963
      %v965 = vpop.f32.mrf.mxu0
      %966 = vmatprep.mubr.f32.mxu0 0.0
      %967 = vmatmul.mubr.f32.gmra.mxu0 %v461
      %v968 = vpop.f32.mrf.mxu0
      %v969 = vadd.f32 %v370, %v968
      %v970 = vpop.f32.mrf.mxu0
      %971 = vmatprep.mubr.f32.mxu0 0.0
      %972 = vmatmul.mubr.f32.gmra.mxu0 %v464
      %v973 = vpop.f32.mrf.mxu0
      %v974 = vadd.f32 %v370, %v973
      %v975 = vpop.f32.mrf.mxu0
      %976 = vmatprep.mubr.f32.mxu0 0.0
      %977 = vmatmul.mubr.f32.gmra.mxu0 %v467
      %v978 = vpop.f32.mrf.mxu0
      %v979 = vadd.f32 %v370, %v978
      %v980 = vpop.f32.mrf.mxu0
      %981 = vmatprep.mubr.f32.mxu0 0.0
      %982 = vmatmul.mubr.f32.gmra.mxu0 %v470
      %v983 = vpop.f32.mrf.mxu0
      %v984 = vadd.f32 %v370, %v983
      %v985 = vpop.f32.mrf.mxu0
      %986 = vmatprep.mubr.f32.mxu0 0.0
      %987 = vmatmul.mubr.f32.gmra.mxu0 %v473
      %v988 = vpop.f32.mrf.mxu0
      %v989 = vadd.f32 %v370, %v988
      %v990 = vpop.f32.mrf.mxu0
      %991 = vmatprep.mubr.f32.mxu0 0.0
      %992 = vmatmul.mubr.f32.gmra.mxu0 %v476
      %v993 = vpop.f32.mrf.mxu0
      %v994 = vadd.f32 %v370, %v993
      %v995 = vpop.f32.mrf.mxu0
      %996 = vmatprep.mubr.f32.mxu0 0.0
      %997 = vmatmul.mubr.f32.gmra.mxu0 %v479
      %v998 = vpop.f32.mrf.mxu0
      %v999 = vadd.f32 %v370, %v998
      %v1000 = vpop.f32.mrf.mxu0
      %1001 = vmatprep.mubr.f32.mxu0 0.0
      %1002 = vmatmul.mubr.f32.gmra.mxu0 %v482
      %v1003 = vpop.f32.mrf.mxu0
      %v1004 = vadd.f32 %v370, %v1003
      %v1005 = vpop.f32.mrf.mxu0
      %1006 = vmatprep.mubr.f32.mxu0 0.0
      %1007 = vmatmul.mubr.f32.gmra.mxu0 %v485
      %v1008 = vpop.f32.mrf.mxu0
      %v1009 = vadd.f32 %v370, %v1008
      %v1010 = vpop.f32.mrf.mxu0
      %1011 = vmatprep.mubr.f32.mxu0 0.0
      %1012 = vmatmul.mubr.f32.gmra.mxu0 %v488
      %v1013 = vpop.f32.mrf.mxu0
      %v1014 = vadd.f32 %v370, %v1013
      %v1015 = vpop.f32.mrf.mxu0
      %1016 = vmatprep.mubr.f32.mxu0 0.0
      %1017 = vmatmul.mubr.f32.gmra.mxu0 %v491
      %v1018 = vpop.f32.mrf.mxu0
      %v1019 = vadd.f32 %v370, %v1018
      %v1020 = vpop.f32.mrf.mxu0
      %1021 = vmatprep.mubr.f32.mxu0 0.0
      %1022 = vmatmul.mubr.f32.gmra.mxu0 %v494
      %v1023 = vpop.f32.mrf.mxu0
      %v1024 = vadd.f32 %v370, %v1023
      %v1025 = vpop.f32.mrf.mxu0
      %1026 = vmatprep.mubr.f32.mxu0 0.0
      %1027 = vmatmul.mubr.f32.gmra.mxu0 %v497
      %v1028 = vpop.f32.mrf.mxu0
      %v1029 = vadd.f32 %v370, %v1028
      %v1030 = vpop.f32.mrf.mxu0
      %1031 = vmatprep.mubr.f32.mxu0 0.0
      %1032 = vmatmul.mubr.f32.gmra.mxu0 %v500
      %v1033 = vpop.f32.mrf.mxu0
      %v1034 = vadd.f32 %v370, %v1033
      %v1035 = vpop.f32.mrf.mxu0
      %1036 = vmatprep.mubr.f32.mxu0 0.0
      %1037 = vmatmul.mubr.f32.gmra.mxu0 %v503
      %v1038 = vpop.f32.mrf.mxu0
      %v1039 = vadd.f32 %v370, %v1038
      %v1040 = vpop.f32.mrf.mxu0
      %1041 = vmatprep.mubr.f32.mxu0 0.0
      %1042 = vmatmul.mubr.f32.gmra.mxu0 %v506
      %v1043 = vpop.f32.mrf.mxu0
      %v1044 = vadd.f32 %v370, %v1043
      %v1045 = vpop.f32.mrf.mxu0
      %1046 = vmatprep.mubr.f32.mxu0 0.0
      %1047 = vmatmul.mubr.f32.gmra.mxu0 %v509
      %v1048 = vpop.f32.mrf.mxu0
      %v1049 = vadd.f32 %v370, %v1048
      %v1050 = vpop.f32.mrf.mxu0
      %1051 = vmatprep.mubr.f32.mxu0 0.0
      %1052 = vmatmul.mubr.f32.gmra.mxu0 %v512
      %v1053 = vpop.f32.mrf.mxu0
      %v1054 = vadd.f32 %v370, %v1053
      %v1055 = vpop.f32.mrf.mxu0
      %1056 = vmatprep.mubr.f32.mxu0 0.0
      %1057 = vmatmul.mubr.f32.gmra.mxu0 %v515
      %v1058 = vpop.f32.mrf.mxu0
      %v1059 = vadd.f32 %v370, %v1058
      %v1060 = vpop.f32.mrf.mxu0
      %1061 = vmatprep.mubr.f32.mxu0 0.0
      %1062 = vmatmul.mubr.f32.gmra.mxu0 %v518
      %v1063 = vpop.f32.mrf.mxu0
      %v1064 = vadd.f32 %v370, %v1063
      %v1065 = vpop.f32.mrf.mxu0
      %1066 = vmatprep.mubr.f32.mxu0 0.0
      %1067 = vmatmul.mubr.f32.gmra.mxu0 %v521
      %v1068 = vpop.f32.mrf.mxu0
      %v1069 = vadd.f32 %v370, %v1068
      %v1070 = vpop.f32.mrf.mxu0
      %1071 = vmatprep.mubr.f32.mxu0 0.0
      %1072 = vmatmul.mubr.f32.gmra.mxu0 %v524
      %v1073 = vpop.f32.mrf.mxu0
      %v1074 = vadd.f32 %v370, %v1073
      %v1075 = vpop.f32.mrf.mxu0
      %1076 = vmatprep.mubr.f32.mxu0 0.0
      %1077 = vmatmul.mubr.f32.gmra.mxu0 %v527
      %v1078 = vpop.f32.mrf.mxu0
      %v1079 = vadd.f32 %v370, %v1078
      %v1080 = vpop.f32.mrf.mxu0
      %1081 = vmatprep.mubr.f32.mxu0 0.0
      %1082 = vmatmul.mubr.f32.gmra.mxu0 %v530
      %v1083 = vpop.f32.mrf.mxu0
      %v1084 = vadd.f32 %v370, %v1083
      %v1085 = vpop.f32.mrf.mxu0
      %1086 = vmatprep.mubr.f32.mxu0 0.0
      %1087 = vmatmul.mubr.f32.gmra.mxu0 %v533
      %v1088 = vpop.f32.mrf.mxu0
      %v1089 = vadd.f32 %v370, %v1088
      %v1090 = vpop.f32.mrf.mxu0
      %1091 = vmatprep.mubr.f32.mxu0 0.0
      %1092 = vmatmul.mubr.f32.gmra.mxu0 %v536
      %v1093 = vpop.f32.mrf.mxu0
      %v1094 = vadd.f32 %v370, %v1093
      %v1095 = vpop.f32.mrf.mxu0
      %1096 = vmatprep.mubr.f32.mxu0 0.0
      %1097 = vmatmul.mubr.f32.gmra.mxu0 %v539
      %v1098 = vpop.f32.mrf.mxu0
      %v1099 = vadd.f32 %v370, %v1098
      %v1100 = vpop.f32.mrf.mxu0
      %1101 = vmatprep.mubr.f32.mxu0 0.0
      %1102 = vmatmul.mubr.f32.gmra.mxu0 %v542
      %v1103 = vpop.f32.mrf.mxu0
      %v1104 = vadd.f32 %v370, %v1103
      %v1105 = vpop.f32.mrf.mxu0
      %1106 = vmatprep.mubr.f32.mxu0 0.0
      %1107 = vmatmul.mubr.f32.gmra.mxu0 %v545
      %v1108 = vpop.f32.mrf.mxu0
      %v1109 = vadd.f32 %v370, %v1108
      %v1110 = vpop.f32.mrf.mxu0
      %1111 = vmatprep.mubr.f32.mxu0 0.0
      %1112 = vmatmul.mubr.f32.gmra.mxu0 %v548
      %v1113 = vpop.f32.mrf.mxu0
      %v1114 = vadd.f32 %v370, %v1113
      %v1115 = vpop.f32.mrf.mxu0
      %1116 = vmatprep.mubr.f32.mxu0 0.0
      %1117 = vmatmul.mubr.f32.gmra.mxu0 %v551
      %v1118 = vpop.f32.mrf.mxu0
      %v1119 = vadd.f32 %v370, %v1118
      %v1120 = vpop.f32.mrf.mxu0
      %1121 = vmatprep.mubr.f32.mxu0 0.0
      %1122 = vmatmul.mubr.f32.gmra.mxu0 %v554
      %v1123 = vpop.f32.mrf.mxu0
      %v1124 = vadd.f32 %v370, %v1123
      %v1125 = vpop.f32.mrf.mxu0
      %1126 = vmatprep.mubr.f32.mxu0 0.0
      %1127 = vmatmul.mubr.f32.gmra.mxu0 %v557
      %v1128 = vpop.f32.mrf.mxu0
      %v1129 = vadd.f32 %v370, %v1128
      %v1130 = vpop.f32.mrf.mxu0
      %1131 = vmatprep.mubr.f32.mxu0 0.0
      %1132 = vmatmul.mubr.f32.gmra.mxu0 %v560
      %v1133 = vpop.f32.mrf.mxu0
      %v1134 = vadd.f32 %v370, %v1133
      %v1135 = vpop.f32.mrf.mxu0
      %1136 = vmatprep.mubr.f32.mxu0 0.0
      %1137 = vmatmul.mubr.f32.gmra.mxu0 %v563
      %v1138 = vpop.f32.mrf.mxu0
      %v1139 = vadd.f32 %v370, %v1138
      %v1140 = vpop.f32.mrf.mxu0
      %1141 = vmatprep.mubr.f32.mxu0 0.0
      %1142 = vmatmul.mubr.f32.gmra.mxu0 %v566
      %v1143 = vpop.f32.mrf.mxu0
      %v1144 = vadd.f32 %v370, %v1143
      %v1145 = vpop.f32.mrf.mxu0
      %1146 = vmatprep.mubr.f32.mxu0 0.0
      %1147 = vmatmul.mubr.f32.gmra.mxu0 %v569
      %v1148 = vpop.f32.mrf.mxu0
      %v1149 = vadd.f32 %v370, %v1148
      %v1150 = vpop.f32.mrf.mxu0
      %1151 = vmatprep.mubr.f32.mxu0 0.0
      %1152 = vmatmul.mubr.f32.gmra.mxu0 %v572
      %v1153 = vpop.f32.mrf.mxu0
      %v1154 = vadd.f32 %v370, %v1153
      %v1155 = vpop.f32.mrf.mxu0
      %1156 = vmatprep.mubr.f32.mxu0 0.0
      %1157 = vmatmul.mubr.f32.gmra.mxu0 %v575
      %v1158 = vpop.f32.mrf.mxu0
      %v1159 = vadd.f32 %v370, %v1158
      %v1160 = vpop.f32.mrf.mxu0
      %1161 = vmatprep.mubr.f32.mxu0 0.0
      %1162 = vmatmul.mubr.f32.gmra.mxu0 %v578
      %v1163 = vpop.f32.mrf.mxu0
      %v1164 = vadd.f32 %v370, %v1163
      %v1165 = vpop.f32.mrf.mxu0
      %1166 = vmatprep.mubr.f32.mxu0 0.0
      %1167 = vmatmul.mubr.f32.gmra.mxu0 %v581
      %v1168 = vpop.f32.mrf.mxu0
      %v1169 = vadd.f32 %v370, %v1168
      %v1170 = vpop.f32.mrf.mxu0
      %1171 = vmatprep.mubr.f32.mxu0 0.0
      %1172 = vmatmul.mubr.f32.gmra.mxu0 %v584
      %v1173 = vpop.f32.mrf.mxu0
      %v1174 = vadd.f32 %v370, %v1173
      %v1175 = vpop.f32.mrf.mxu0
      %1176 = vmatprep.mubr.f32.mxu0 0.0
      %1177 = vmatmul.mubr.f32.gmra.mxu0 %v587
      %v1178 = vpop.f32.mrf.mxu0
      %v1179 = vadd.f32 %v370, %v1178
      %v1180 = vpop.f32.mrf.mxu0
      %1181 = vmatprep.mubr.f32.mxu0 0.0
      %1182 = vmatmul.mubr.f32.gmra.mxu0 %v590
      %v1183 = vpop.f32.mrf.mxu0
      %v1184 = vadd.f32 %v370, %v1183
      %v1185 = vpop.f32.mrf.mxu0
      %1186 = vmatprep.mubr.f32.mxu0 0.0
      %1187 = vmatmul.mubr.f32.gmra.mxu0 %v593
      %v1188 = vpop.f32.mrf.mxu0
      %v1189 = vadd.f32 %v370, %v1188
      %v1190 = vpop.f32.mrf.mxu0
      %1191 = vmatprep.mubr.f32.mxu0 0.0
      %1192 = vmatmul.mubr.f32.gmra.mxu0 %v596
      %v1193 = vpop.f32.mrf.mxu0
      %v1194 = vadd.f32 %v370, %v1193
      %v1195 = vpop.f32.mrf.mxu0
      %1196 = vmatprep.mubr.f32.mxu0 0.0
      %1197 = vmatmul.mubr.f32.gmra.mxu0 %v599
      %v1198 = vpop.f32.mrf.mxu0
      %v1199 = vadd.f32 %v370, %v1198
      %v1200 = vpop.f32.mrf.mxu0
      %1201 = vmatprep.mubr.f32.mxu0 0.0
      %1202 = vmatmul.mubr.f32.gmra.mxu0 %v602
      %v1203 = vpop.f32.mrf.mxu0
      %v1204 = vadd.f32 %v370, %v1203
      %v1205 = vpop.f32.mrf.mxu0
      %1206 = vmatprep.mubr.f32.mxu0 0.0
      %1207 = vmatmul.mubr.f32.gmra.mxu0 %v605
      %v1208 = vpop.f32.mrf.mxu0
      %v1209 = vadd.f32 %v370, %v1208
      %v1210 = vpop.f32.mrf.mxu0
      %1211 = vmatprep.mubr.f32.mxu0 0.0
      %1212 = vmatmul.mubr.f32.gmra.mxu0 %v608
      %v1213 = vpop.f32.mrf.mxu0
      %v1214 = vadd.f32 %v370, %v1213
      %v1215 = vpop.f32.mrf.mxu0
      %1216 = vmatprep.mubr.f32.mxu0 0.0
      %1217 = vmatmul.mubr.f32.gmra.mxu0 %v611
      %v1218 = vpop.f32.mrf.mxu0
      %v1219 = vadd.f32 %v370, %v1218
      %v1220 = vpop.f32.mrf.mxu0
      %1221 = vmatprep.mubr.f32.mxu0 0.0
      %1222 = vmatmul.mubr.f32.gmra.mxu0 %v614
      %v1223 = vpop.f32.mrf.mxu0
      %v1224 = vadd.f32 %v370, %v1223
      %v1225 = vpop.f32.mrf.mxu0
      %1226 = vmatprep.mubr.f32.mxu0 0.0
      %1227 = vmatmul.mubr.f32.gmra.mxu0 %v617
      %v1228 = vpop.f32.mrf.mxu0
      %v1229 = vadd.f32 %v370, %v1228
      %v1230 = vpop.f32.mrf.mxu0
      %1231 = vmatprep.mubr.f32.mxu0 0.0
      %1232 = vmatmul.mubr.f32.gmra.mxu0 %v620
      %v1233 = vpop.f32.mrf.mxu0
      %v1234 = vadd.f32 %v370, %v1233
      %v1235 = vpop.f32.mrf.mxu0
      %1236 = vmatprep.mubr.f32.mxu0 0.0
      %1237 = vmatmul.mubr.f32.gmra.mxu0 %v623
      %v1238 = vpop.f32.mrf.mxu0
      %v1239 = vadd.f32 %v370, %v1238
      %v1240 = vpop.f32.mrf.mxu0
      %1241 = vmatprep.mubr.f32.mxu0 0.0
      %1242 = vmatmul.mubr.f32.gmra.mxu0 %v626
      %v1243 = vpop.f32.mrf.mxu0
      %v1244 = vadd.f32 %v370, %v1243
      %v1245 = vpop.f32.mrf.mxu0
      %1246 = vmatprep.mubr.f32.mxu0 0.0
      %1247 = vmatmul.mubr.f32.gmra.mxu0 %v629
      %v1248 = vpop.f32.mrf.mxu0
      %v1249 = vadd.f32 %v370, %v1248
      %v1250 = vpop.f32.mrf.mxu0
      %1251 = vmatprep.mubr.f32.mxu0 0.0
      %1252 = vmatmul.mubr.f32.gmra.mxu0 %v632
      %v1253 = vpop.f32.mrf.mxu0
      %v1254 = vadd.f32 %v370, %v1253
      %v1255 = vpop.f32.mrf.mxu0
      %1256 = vmatprep.mubr.f32.mxu0 0.0
      %1257 = vmatmul.mubr.f32.gmra.mxu0 %v635
      %v1258 = vpop.f32.mrf.mxu0
      %v1259 = vadd.f32 %v370, %v1258
      %v1260 = vpop.f32.mrf.mxu0
      %1261 = vmatprep.mubr.f32.mxu0 0.0
      %1262 = vmatmul.mubr.f32.gmra.mxu0 %v638
      %v1263 = vpop.f32.mrf.mxu0
      %v1264 = vadd.f32 %v370, %v1263
      %v1265 = vpop.f32.mrf.mxu0
      %1266 = vmatprep.mubr.f32.mxu0 0.0
      %1267 = vmatmul.mubr.f32.gmra.mxu0 %v641
      %v1268 = vpop.f32.mrf.mxu0
      %v1269 = vadd.f32 %v370, %v1268
      %v1270 = vpop.f32.mrf.mxu0
      %1271 = vmatprep.mubr.f32.mxu0 0.0
      %1272 = vmatmul.mubr.f32.gmra.mxu0 %v644
      %v1273 = vpop.f32.mrf.mxu0
      %v1274 = vadd.f32 %v370, %v1273
      %v1275 = vpop.f32.mrf.mxu0
      %1276 = vmatprep.mubr.f32.mxu0 0.0
      %1277 = vmatmul.mubr.f32.gmra.mxu0 %v647
      %v1278 = vpop.f32.mrf.mxu0
      %v1279 = vadd.f32 %v370, %v1278
      %v1280 = vpop.f32.mrf.mxu0
      %1281 = vmatprep.mubr.f32.mxu0 0.0
      %1282 = vmatmul.mubr.f32.gmra.mxu0 %v650
      %v1283 = vpop.f32.mrf.mxu0
      %v1284 = vadd.f32 %v370, %v1283
      %v1285 = vpop.f32.mrf.mxu0
      %1286 = vmatprep.mubr.f32.mxu0 0.0
      %1287 = vmatmul.mubr.f32.gmra.mxu0 %v653
      %v1288 = vpop.f32.mrf.mxu0
      %v1289 = vadd.f32 %v370, %v1288
      %v1290 = vpop.f32.mrf.mxu0
      %1291 = vmatprep.mubr.f32.mxu0 0.0
      %1292 = vmatmul.mubr.f32.gmra.mxu0 %v656
      %v1293 = vpop.f32.mrf.mxu0
      %v1294 = vadd.f32 %v370, %v1293
      %v1295 = vpop.f32.mrf.mxu0
      %1296 = vmatprep.mubr.f32.mxu0 0.0
      %1297 = vmatmul.mubr.f32.gmra.mxu0 %v659
      %v1298 = vpop.f32.mrf.mxu0
      %v1299 = vadd.f32 %v370, %v1298
      %v1300 = vpop.f32.mrf.mxu0
      %1301 = vmatprep.mubr.f32.mxu0 0.0
      %1302 = vmatmul.mubr.f32.gmra.mxu0 %v662
      %v1303 = vpop.f32.mrf.mxu0
      %v1304 = vadd.f32 %v370, %v1303
      %v1305 = vpop.f32.mrf.mxu0
      %1306 = vmatprep.mubr.f32.mxu0 0.0
      %1307 = vmatmul.mubr.f32.gmra.mxu0 %v665
      %v1308 = vpop.f32.mrf.mxu0
      %v1309 = vadd.f32 %v370, %v1308
      %v1310 = vpop.f32.mrf.mxu0
      %1311 = vmatprep.mubr.f32.mxu0 0.0
      %1312 = vmatmul.mubr.f32.gmra.mxu0 %v668
      %v1313 = vpop.f32.mrf.mxu0
      %v1314 = vadd.f32 %v370, %v1313
      %v1315 = vpop.f32.mrf.mxu0
      %1316 = vmatprep.mubr.f32.mxu0 0.0
      %1317 = vmatmul.mubr.f32.gmra.mxu0 %v671
      %v1318 = vpop.f32.mrf.mxu0
      %v1319 = vadd.f32 %v370, %v1318
      %v1320 = vpop.f32.mrf.mxu0
      %1321 = vmatprep.mubr.f32.mxu0 0.0
      %1322 = vmatmul.mubr.f32.gmra.mxu0 %v674
      %v1323 = vpop.f32.mrf.mxu0
      %v1324 = vadd.f32 %v370, %v1323
      %v1325 = vpop.f32.mrf.mxu0
      %1326 = vmatprep.mubr.f32.mxu0 0.0
      %1327 = vmatmul.mubr.f32.gmra.mxu0 %v677
      %v1328 = vpop.f32.mrf.mxu0
      %v1329 = vadd.f32 %v370, %v1328
      %v1330 = vpop.f32.mrf.mxu0
      %1331 = vmatprep.mubr.f32.mxu0 0.0
      %1332 = vmatmul.mubr.f32.gmra.mxu0 %v680
      %v1333 = vpop.f32.mrf.mxu0
      %v1334 = vadd.f32 %v370, %v1333
      %v1335 = vpop.f32.mrf.mxu0
      %1336 = vmatprep.mubr.f32.mxu0 0.0
      %1337 = vmatmul.mubr.f32.gmra.mxu0 %v683
      %v1338 = vpop.f32.mrf.mxu0
      %v1339 = vadd.f32 %v370, %v1338
      %v1340 = vpop.f32.mrf.mxu0
      %1341 = vmatprep.mubr.f32.mxu0 0.0
      %1342 = vmatmul.mubr.f32.gmra.mxu0 %v686
      %v1343 = vpop.f32.mrf.mxu0
      %v1344 = vadd.f32 %v370, %v1343
      %v1345 = vpop.f32.mrf.mxu0
      %1346 = vmatprep.mubr.f32.mxu0 0.0
      %1347 = vmatmul.mubr.f32.gmra.mxu0 %v689
      %v1348 = vpop.f32.mrf.mxu0
      %v1349 = vadd.f32 %v370, %v1348
      %v1350 = vpop.f32.mrf.mxu0
      %1351 = vmatprep.mubr.f32.mxu0 0.0
      %1352 = vmatmul.mubr.f32.gmra.mxu0 %v692
      %v1353 = vpop.f32.mrf.mxu0
      %v1354 = vadd.f32 %v370, %v1353
      %v1355 = vpop.f32.mrf.mxu0
      %1356 = vmatprep.mubr.f32.mxu0 0.0
      %1357 = vmatmul.mubr.f32.gmra.mxu0 %v695
      %v1358 = vpop.f32.mrf.mxu0
      %v1359 = vadd.f32 %v370, %v1358
      %v1360 = vpop.f32.mrf.mxu0
      %1361 = vmatprep.mubr.f32.mxu0 0.0
      %1362 = vmatmul.mubr.f32.gmra.mxu0 %v698
      %v1363 = vpop.f32.mrf.mxu0
      %v1364 = vadd.f32 %v370, %v1363
      %v1365 = vpop.f32.mrf.mxu0
      %1366 = vmatprep.mubr.f32.mxu0 0.0
      %1367 = vmatmul.mubr.f32.gmra.mxu0 %v701
      %v1368 = vpop.f32.mrf.mxu0
      %v1369 = vadd.f32 %v370, %v1368
      %v1370 = vpop.f32.mrf.mxu0
      %1371 = vmatprep.mubr.f32.mxu0 0.0
      %1372 = vmatmul.mubr.f32.gmra.mxu0 %v704
      %v1373 = vpop.f32.mrf.mxu0
      %v1374 = vadd.f32 %v370, %v1373
      %v1375 = vpop.f32.mrf.mxu0
      %1376 = vmatprep.mubr.f32.mxu0 0.0
      %1377 = vmatmul.mubr.f32.gmra.mxu0 %v707
      %v1378 = vpop.f32.mrf.mxu0
      %v1379 = vadd.f32 %v370, %v1378
      %v1380 = vpop.f32.mrf.mxu0
      %1381 = vmatprep.mubr.f32.mxu0 0.0
      %1382 = vmatmul.mubr.f32.gmra.mxu0 %v710
      %v1383 = vpop.f32.mrf.mxu0
      %v1384 = vadd.f32 %v370, %v1383
      %v1385 = vpop.f32.mrf.mxu0
      %1386 = vmatprep.mubr.f32.mxu0 0.0
      %1387 = vmatmul.mubr.f32.gmra.mxu0 %v713
      %v1388 = vpop.f32.mrf.mxu0
      %v1389 = vadd.f32 %v370, %v1388
      %v1390 = vpop.f32.mrf.mxu0
      %1391 = vmatprep.mubr.f32.mxu0 0.0
      %1392 = vmatmul.mubr.f32.gmra.mxu0 %v716
      %v1393 = vpop.f32.mrf.mxu0
      %v1394 = vadd.f32 %v370, %v1393
      %v1395 = vpop.f32.mrf.mxu0
      %1396 = vmatprep.mubr.f32.mxu0 0.0
      %1397 = vmatmul.mubr.f32.gmra.mxu0 %v719
      %v1398 = vpop.f32.mrf.mxu0
      %v1399 = vadd.f32 %v370, %v1398
      %v1400 = vpop.f32.mrf.mxu0
      %1401 = vmatprep.mubr.f32.mxu0 0.0
      %1402 = vmatmul.mubr.f32.gmra.mxu0 %v722
      %v1403 = vpop.f32.mrf.mxu0
      %v1404 = vadd.f32 %v370, %v1403
      %v1405 = vpop.f32.mrf.mxu0
      %1406 = vmatprep.mubr.f32.mxu0 0.0
      %1407 = vmatmul.mubr.f32.gmra.mxu0 %v725
      %v1408 = vpop.f32.mrf.mxu0
      %v1409 = vadd.f32 %v370, %v1408
      %v1410 = vpop.f32.mrf.mxu0
      %1411 = vmatprep.mubr.f32.mxu0 0.0
      %1412 = vmatmul.mubr.f32.gmra.mxu0 %v728
      %v1413 = vpop.f32.mrf.mxu0
      %v1414 = vadd.f32 %v370, %v1413
      %v1415 = vpop.f32.mrf.mxu0
      %1416 = vmatprep.mubr.f32.mxu0 0.0
      %1417 = vmatmul.mubr.f32.gmra.mxu0 %v731
      %v1418 = vpop.f32.mrf.mxu0
      %v1419 = vadd.f32 %v370, %v1418
      %v1420 = vpop.f32.mrf.mxu0
      %1421 = vmatprep.mubr.f32.mxu0 0.0
      %1422 = vmatmul.mubr.f32.gmra.mxu0 %v734
      %v1423 = vpop.f32.mrf.mxu0
      %v1424 = vadd.f32 %v370, %v1423
      %v1425 = vpop.f32.mrf.mxu0
      %1426 = vmatprep.mubr.f32.mxu0 0.0
      %1427 = vmatmul.mubr.f32.gmra.mxu0 %v737
      %v1428 = vpop.f32.mrf.mxu0
      %v1429 = vadd.f32 %v370, %v1428
      %v1430 = vpop.f32.mrf.mxu0
      %1431 = vmatprep.mubr.f32.mxu0 0.0
      %1432 = vmatmul.mubr.f32.gmra.mxu0 %v740
      %v1433 = vpop.f32.mrf.mxu0
      %v1434 = vadd.f32 %v370, %v1433
      %v1435 = vpop.f32.mrf.mxu0
      %1436 = vmatprep.mubr.f32.mxu0 0.0
      %1437 = vmatmul.mubr.f32.gmra.mxu0 %v743
      %v1438 = vpop.f32.mrf.mxu0
      %v1439 = vadd.f32 %v370, %v1438
      %v1440 = vpop.f32.mrf.mxu0
      %1441 = vmatprep.mubr.f32.mxu0 0.0
      %1442 = vmatmul.mubr.f32.gmra.mxu0 %v746
      %v1443 = vpop.f32.mrf.mxu0
      %v1444 = vadd.f32 %v370, %v1443
      %v1445 = vpop.f32.mrf.mxu0
      %1446 = vmatprep.mubr.f32.mxu0 0.0
      %1447 = vmatmul.mubr.f32.gmra.mxu0 %v749
      %v1448 = vpop.f32.mrf.mxu0
      %v1449 = vadd.f32 %v370, %v1448
      %v1450 = vpop.f32.mrf.mxu0
      %1451 = vmatprep.mubr.f32.mxu0 0.0
      %1452 = vmatmul.mubr.f32.gmra.mxu0 %v752
      %v1453 = vpop.f32.mrf.mxu0
      %v1454 = vadd.f32 %v370, %v1453
      %v1455 = vpop.f32.mrf.mxu0
      %1456 = vmatprep.mubr.f32.mxu0 0.0
      %1457 = vmatmul.mubr.f32.gmra.mxu0 %v755
      %v1458 = vpop.f32.mrf.mxu0
      %v1459 = vadd.f32 %v370, %v1458
      %v1460 = vpop.f32.mrf.mxu0
      %1461 = vdwg.mxu0
      %v1462 = vmax.f32 %v824, 0.0
      %v1463 = vmax.f32 %v829, 0.0
      %v1464 = vmax.f32 %v834, 0.0
      %v1465 = vmax.f32 %v839, 0.0
      %v1466 = vmax.f32 %v844, 0.0
      %v1467 = vmax.f32 %v849, 0.0
      %v1468 = vmax.f32 %v854, 0.0
      %v1469 = vmax.f32 %v859, 0.0
      %v1470 = vmax.f32 %v864, 0.0
      %v1471 = vmax.f32 %v869, 0.0
      %v1472 = vmax.f32 %v874, 0.0
      %v1473 = vmax.f32 %v879, 0.0
      %v1474 = vmax.f32 %v884, 0.0
      %v1475 = vmax.f32 %v889, 0.0
      %v1476 = vmax.f32 %v894, 0.0
      %v1477 = vmax.f32 %v899, 0.0
      %v1478 = vmax.f32 %v904, 0.0
      %v1479 = vmax.f32 %v909, 0.0
      %v1480 = vmax.f32 %v914, 0.0
      %v1481 = vmax.f32 %v919, 0.0
      %v1482 = vmax.f32 %v924, 0.0
      %v1483 = vmax.f32 %v929, 0.0
      %v1484 = vmax.f32 %v934, 0.0
      %v1485 = vmax.f32 %v939, 0.0
      %v1486 = vmax.f32 %v944, 0.0
      %v1487 = vmax.f32 %v949, 0.0
      %v1488 = vmax.f32 %v954, 0.0
      %v1489 = vmax.f32 %v959, 0.0
      %v1490 = vmax.f32 %v964, 0.0
      %v1491 = vmax.f32 %v969, 0.0
      %v1492 = vmax.f32 %v974, 0.0
      %v1493 = vmax.f32 %v979, 0.0
      %v1494 = vmax.f32 %v984, 0.0
      %v1495 = vmax.f32 %v989, 0.0
      %v1496 = vmax.f32 %v994, 0.0
      %v1497 = vmax.f32 %v999, 0.0
      %v1498 = vmax.f32 %v1004, 0.0
      %v1499 = vmax.f32 %v1009, 0.0
      %v1500 = vmax.f32 %v1014, 0.0
      %v1501 = vmax.f32 %v1019, 0.0
      %v1502 = vmax.f32 %v1024, 0.0
      %v1503 = vmax.f32 %v1029, 0.0
      %v1504 = vmax.f32 %v1034, 0.0
      %v1505 = vmax.f32 %v1039, 0.0
      %v1506 = vmax.f32 %v1044, 0.0
      %v1507 = vmax.f32 %v1049, 0.0
      %v1508 = vmax.f32 %v1054, 0.0
      %v1509 = vmax.f32 %v1059, 0.0
      %v1510 = vmax.f32 %v1064, 0.0
      %v1511 = vmax.f32 %v1069, 0.0
      %v1512 = vmax.f32 %v1074, 0.0
      %v1513 = vmax.f32 %v1079, 0.0
      %v1514 = vmax.f32 %v1084, 0.0
      %v1515 = vmax.f32 %v1089, 0.0
      %v1516 = vmax.f32 %v1094, 0.0
      %v1517 = vmax.f32 %v1099, 0.0
      %v1518 = vmax.f32 %v1104, 0.0
      %v1519 = vmax.f32 %v1109, 0.0
      %v1520 = vmax.f32 %v1114, 0.0
      %v1521 = vmax.f32 %v1119, 0.0
      %v1522 = vmax.f32 %v1124, 0.0
      %v1523 = vmax.f32 %v1129, 0.0
      %v1524 = vmax.f32 %v1134, 0.0
      %v1525 = vmax.f32 %v1139, 0.0
      %v1526 = vmax.f32 %v1144, 0.0
      %v1527 = vmax.f32 %v1149, 0.0
      %v1528 = vmax.f32 %v1154, 0.0
      %v1529 = vmax.f32 %v1159, 0.0
      %v1530 = vmax.f32 %v1164, 0.0
      %v1531 = vmax.f32 %v1169, 0.0
      %v1532 = vmax.f32 %v1174, 0.0
      %v1533 = vmax.f32 %v1179, 0.0
      %v1534 = vmax.f32 %v1184, 0.0
      %v1535 = vmax.f32 %v1189, 0.0
      %v1536 = vmax.f32 %v1194, 0.0
      %v1537 = vmax.f32 %v1199, 0.0
      %v1538 = vmax.f32 %v1204, 0.0
      %v1539 = vmax.f32 %v1209, 0.0
      %v1540 = vmax.f32 %v1214, 0.0
      %v1541 = vmax.f32 %v1219, 0.0
      %v1542 = vmax.f32 %v1224, 0.0
      %v1543 = vmax.f32 %v1229, 0.0
      %v1544 = vmax.f32 %v1234, 0.0
      %v1545 = vmax.f32 %v1239, 0.0
      %v1546 = vmax.f32 %v1244, 0.0
      %v1547 = vmax.f32 %v1249, 0.0
      %v1548 = vmax.f32 %v1254, 0.0
      %v1549 = vmax.f32 %v1259, 0.0
      %v1550 = vmax.f32 %v1264, 0.0
      %v1551 = vmax.f32 %v1269, 0.0
      %v1552 = vmax.f32 %v1274, 0.0
      %v1553 = vmax.f32 %v1279, 0.0
      %v1554 = vmax.f32 %v1284, 0.0
      %v1555 = vmax.f32 %v1289, 0.0
      %v1556 = vmax.f32 %v1294, 0.0
      %v1557 = vmax.f32 %v1299, 0.0
      %v1558 = vmax.f32 %v1304, 0.0
      %v1559 = vmax.f32 %v1309, 0.0
      %v1560 = vmax.f32 %v1314, 0.0
      %v1561 = vmax.f32 %v1319, 0.0
      %v1562 = vmax.f32 %v1324, 0.0
      %v1563 = vmax.f32 %v1329, 0.0
      %v1564 = vmax.f32 %v1334, 0.0
      %v1565 = vmax.f32 %v1339, 0.0
      %v1566 = vmax.f32 %v1344, 0.0
      %v1567 = vmax.f32 %v1349, 0.0
      %v1568 = vmax.f32 %v1354, 0.0
      %v1569 = vmax.f32 %v1359, 0.0
      %v1570 = vmax.f32 %v1364, 0.0
      %v1571 = vmax.f32 %v1369, 0.0
      %v1572 = vmax.f32 %v1374, 0.0
      %v1573 = vmax.f32 %v1379, 0.0
      %v1574 = vmax.f32 %v1384, 0.0
      %v1575 = vmax.f32 %v1389, 0.0
      %v1576 = vmax.f32 %v1394, 0.0
      %v1577 = vmax.f32 %v1399, 0.0
      %v1578 = vmax.f32 %v1404, 0.0
      %v1579 = vmax.f32 %v1409, 0.0
      %v1580 = vmax.f32 %v1414, 0.0
      %v1581 = vmax.f32 %v1419, 0.0
      %v1582 = vmax.f32 %v1424, 0.0
      %v1583 = vmax.f32 %v1429, 0.0
      %v1584 = vmax.f32 %v1434, 0.0
      %v1585 = vmax.f32 %v1439, 0.0
      %v1586 = vmax.f32 %v1444, 0.0
      %v1587 = vmax.f32 %v1449, 0.0
      %v1588 = vmax.f32 %v1454, 0.0
      %v1589 = vmax.f32 %v1459, 0.0
      %v1590 = vld [vmem:[%s3] sm:$0xff]
      %v1591 = vld [vmem:[%s3 + $0x8] sm:$0xff]
      %v1592 = vld [vmem:[%s3 + $0x10] sm:$0xff]
      %v1593 = vld [vmem:[%s3 + $0x18] sm:$0xff]
      %v1594 = vld [vmem:[%s3 + $0x20] sm:$0xff]
      %v1595 = vld [vmem:[%s3 + $0x28] sm:$0xff]
      %v1596 = vld [vmem:[%s3 + $0x30] sm:$0xff]
      %v1597 = vld [vmem:[%s3 + $0x38] sm:$0xff]
      %v1598 = vld [vmem:[%s3 + $0x40] sm:$0xff]
      %v1599 = vld [vmem:[%s3 + $0x48] sm:$0xff]
      %v1600 = vld [vmem:[%s3 + $0x50] sm:$0xff]
      %v1601 = vld [vmem:[%s3 + $0x58] sm:$0xff]
      %v1602 = vld [vmem:[%s3 + $0x60] sm:$0xff]
      %v1603 = vld [vmem:[%s3 + $0x68] sm:$0xff]
      %v1604 = vld [vmem:[%s3 + $0x70] sm:$0xff]
      %v1605 = vld [vmem:[%s3 + $0x78] sm:$0xff]
      %v1606 = vld [vmem:[%s4] sm:$0x1]
      %v1608 = vlaneseq
      %v1609 = vshrl.u32 %v1608, 7
      %v1610 = vsub.s32 0, %v1609
      %v1611 = vrot.slane %v1606, %v1610
      %1613 = vmatprep.subr.mxu0 0.0
      %1614 = vmatpush1.msra.mxu0 %v1605
      %1615 = vmatprep.subr.mxu0 0.0
      %1616 = vmatpush1.msra.mxu0 %v1604
      %1617 = vmatprep.subr.mxu0 0.0
      %1618 = vmatpush1.msra.mxu0 %v1603
      %1619 = vmatprep.subr.mxu0 0.0
      %1620 = vmatpush1.msra.mxu0 %v1602
      %1621 = vmatprep.subr.mxu0 0.0
      %1622 = vmatpush1.msra.mxu0 %v1601
      %1623 = vmatprep.subr.mxu0 0.0
      %1624 = vmatpush1.msra.mxu0 %v1600
      %1625 = vmatprep.subr.mxu0 0.0
      %1626 = vmatpush1.msra.mxu0 %v1599
      %1627 = vmatprep.subr.mxu0 0.0
      %1628 = vmatpush1.msra.mxu0 %v1598
      %1629 = vmatprep.subr.mxu0 0.0
      %1630 = vmatpush1.msra.mxu0 %v1597
      %1631 = vmatprep.subr.mxu0 0.0
      %1632 = vmatpush1.msra.mxu0 %v1596
      %1633 = vmatprep.subr.mxu0 0.0
      %1634 = vmatpush1.msra.mxu0 %v1595
      %1635 = vmatprep.subr.mxu0 0.0
      %1636 = vmatpush1.msra.mxu0 %v1594
      %1637 = vmatprep.subr.mxu0 0.0
      %1638 = vmatpush1.msra.mxu0 %v1593
      %1639 = vmatprep.subr.mxu0 0.0
      %1640 = vmatpush1.msra.mxu0 %v1592
      %1641 = vmatprep.subr.mxu0 0.0
      %1642 = vmatpush1.msra.mxu0 %v1591
      %1643 = vmatprep.subr.mxu0 0.0
      %1644 = vmatpush1.msra.mxu0 %v1590
      %1645 = vmatprep.subr.mxu0 0.0
      %1646 = vmatpush2.msra.mxu0 0.0
      %1647 = vmatprep.subr.mxu0 0.0
      %1648 = vmatpush2.msra.mxu0 0.0
      %1649 = vmatprep.subr.mxu0 0.0
      %1650 = vmatpush2.msra.mxu0 0.0
      %1651 = vmatprep.subr.mxu0 0.0
      %1652 = vmatpush2.msra.mxu0 0.0
      %1653 = vmatprep.subr.mxu0 0.0
      %1654 = vmatpush2.msra.mxu0 0.0
      %1655 = vmatprep.subr.mxu0 0.0
      %1656 = vmatpush2.msra.mxu0 0.0
      %1657 = vmatprep.subr.mxu0 0.0
      %1658 = vmatpush2.msra.mxu0 0.0
      %1659 = vmatprep.subr.mxu0 0.0
      %1660 = vmatpush2.msra.mxu0 0.0
      %1661 = vmatprep.subr.mxu0 0.0
      %1662 = vmatpush2.msra.mxu0 0.0
      %1663 = vmatprep.subr.mxu0 0.0
      %1664 = vmatpush2.msra.mxu0 0.0
      %1665 = vmatprep.subr.mxu0 0.0
      %1666 = vmatpush2.msra.mxu0 0.0
      %1667 = vmatprep.subr.mxu0 0.0
      %1668 = vmatpush2.msra.mxu0 0.0
      %1669 = vmatprep.subr.mxu0 0.0
      %1670 = vmatpush2.msra.mxu0 0.0
      %1671 = vmatprep.subr.mxu0 0.0
      %1672 = vmatpush2.msra.mxu0 0.0
      %1673 = vmatprep.subr.mxu0 0.0
      %1674 = vmatpush2.msra.mxu0 0.0
      %1675 = vmatprep.subr.mxu0 0.0
      %1676 = vmatpush2.msra.mxu0 0.0
      %1677 = vmatprep.mubr.f32.mxu0 0.0
      %1678 = vmatmul.mubr.f32.gmra.mxu0 %v1462
      %v1679 = vpop.f32.mrf.mxu0
      %v1680 = vadd.f32 %v1611, %v1679
      %v1681 = vpop.f32.mrf.mxu0
      %1682 = vmatprep.mubr.f32.mxu0 0.0
      %1683 = vmatmul.mubr.f32.gmra.mxu0 %v1463
      %v1684 = vpop.f32.mrf.mxu0
      %v1685 = vadd.f32 %v1611, %v1684
      %v1686 = vpop.f32.mrf.mxu0
      %1687 = vmatprep.mubr.f32.mxu0 0.0
      %1688 = vmatmul.mubr.f32.gmra.mxu0 %v1464
      %v1689 = vpop.f32.mrf.mxu0
      %v1690 = vadd.f32 %v1611, %v1689
      %v1691 = vpop.f32.mrf.mxu0
      %1692 = vmatprep.mubr.f32.mxu0 0.0
      %1693 = vmatmul.mubr.f32.gmra.mxu0 %v1465
      %v1694 = vpop.f32.mrf.mxu0
      %v1695 = vadd.f32 %v1611, %v1694
      %v1696 = vpop.f32.mrf.mxu0
      %1697 = vmatprep.mubr.f32.mxu0 0.0
      %1698 = vmatmul.mubr.f32.gmra.mxu0 %v1466
      %v1699 = vpop.f32.mrf.mxu0
      %v1700 = vadd.f32 %v1611, %v1699
      %v1701 = vpop.f32.mrf.mxu0
      %1702 = vmatprep.mubr.f32.mxu0 0.0
      %1703 = vmatmul.mubr.f32.gmra.mxu0 %v1467
      %v1704 = vpop.f32.mrf.mxu0
      %v1705 = vadd.f32 %v1611, %v1704
      %v1706 = vpop.f32.mrf.mxu0
      %1707 = vmatprep.mubr.f32.mxu0 0.0
      %1708 = vmatmul.mubr.f32.gmra.mxu0 %v1468
      %v1709 = vpop.f32.mrf.mxu0
      %v1710 = vadd.f32 %v1611, %v1709
      %v1711 = vpop.f32.mrf.mxu0
      %1712 = vmatprep.mubr.f32.mxu0 0.0
      %1713 = vmatmul.mubr.f32.gmra.mxu0 %v1469
      %v1714 = vpop.f32.mrf.mxu0
      %v1715 = vadd.f32 %v1611, %v1714
      %v1716 = vpop.f32.mrf.mxu0
      %1717 = vmatprep.mubr.f32.mxu0 0.0
      %1718 = vmatmul.mubr.f32.gmra.mxu0 %v1470
      %v1719 = vpop.f32.mrf.mxu0
      %v1720 = vadd.f32 %v1611, %v1719
      %v1721 = vpop.f32.mrf.mxu0
      %1722 = vmatprep.mubr.f32.mxu0 0.0
      %1723 = vmatmul.mubr.f32.gmra.mxu0 %v1471
      %v1724 = vpop.f32.mrf.mxu0
      %v1725 = vadd.f32 %v1611, %v1724
      %v1726 = vpop.f32.mrf.mxu0
      %1727 = vmatprep.mubr.f32.mxu0 0.0
      %1728 = vmatmul.mubr.f32.gmra.mxu0 %v1472
      %v1729 = vpop.f32.mrf.mxu0
      %v1730 = vadd.f32 %v1611, %v1729
      %v1731 = vpop.f32.mrf.mxu0
      %1732 = vmatprep.mubr.f32.mxu0 0.0
      %1733 = vmatmul.mubr.f32.gmra.mxu0 %v1473
      %v1734 = vpop.f32.mrf.mxu0
      %v1735 = vadd.f32 %v1611, %v1734
      %v1736 = vpop.f32.mrf.mxu0
      %1737 = vmatprep.mubr.f32.mxu0 0.0
      %1738 = vmatmul.mubr.f32.gmra.mxu0 %v1474
      %v1739 = vpop.f32.mrf.mxu0
      %v1740 = vadd.f32 %v1611, %v1739
      %v1741 = vpop.f32.mrf.mxu0
      %1742 = vmatprep.mubr.f32.mxu0 0.0
      %1743 = vmatmul.mubr.f32.gmra.mxu0 %v1475
      %v1744 = vpop.f32.mrf.mxu0
      %v1745 = vadd.f32 %v1611, %v1744
      %v1746 = vpop.f32.mrf.mxu0
      %1747 = vmatprep.mubr.f32.mxu0 0.0
      %1748 = vmatmul.mubr.f32.gmra.mxu0 %v1476
      %v1749 = vpop.f32.mrf.mxu0
      %v1750 = vadd.f32 %v1611, %v1749
      %v1751 = vpop.f32.mrf.mxu0
      %1752 = vmatprep.mubr.f32.mxu0 0.0
      %1753 = vmatmul.mubr.f32.gmra.mxu0 %v1477
      %v1754 = vpop.f32.mrf.mxu0
      %v1755 = vadd.f32 %v1611, %v1754
      %v1756 = vpop.f32.mrf.mxu0
      %1757 = vmatprep.mubr.f32.mxu0 0.0
      %1758 = vmatmul.mubr.f32.gmra.mxu0 %v1478
      %v1759 = vpop.f32.mrf.mxu0
      %v1760 = vadd.f32 %v1611, %v1759
      %v1761 = vpop.f32.mrf.mxu0
      %1762 = vmatprep.mubr.f32.mxu0 0.0
      %1763 = vmatmul.mubr.f32.gmra.mxu0 %v1479
      %v1764 = vpop.f32.mrf.mxu0
      %v1765 = vadd.f32 %v1611, %v1764
      %v1766 = vpop.f32.mrf.mxu0
      %1767 = vmatprep.mubr.f32.mxu0 0.0
      %1768 = vmatmul.mubr.f32.gmra.mxu0 %v1480
      %v1769 = vpop.f32.mrf.mxu0
      %v1770 = vadd.f32 %v1611, %v1769
      %v1771 = vpop.f32.mrf.mxu0
      %1772 = vmatprep.mubr.f32.mxu0 0.0
      %1773 = vmatmul.mubr.f32.gmra.mxu0 %v1481
      %v1774 = vpop.f32.mrf.mxu0
      %v1775 = vadd.f32 %v1611, %v1774
      %v1776 = vpop.f32.mrf.mxu0
      %1777 = vmatprep.mubr.f32.mxu0 0.0
      %1778 = vmatmul.mubr.f32.gmra.mxu0 %v1482
      %v1779 = vpop.f32.mrf.mxu0
      %v1780 = vadd.f32 %v1611, %v1779
      %v1781 = vpop.f32.mrf.mxu0
      %1782 = vmatprep.mubr.f32.mxu0 0.0
      %1783 = vmatmul.mubr.f32.gmra.mxu0 %v1483
      %v1784 = vpop.f32.mrf.mxu0
      %v1785 = vadd.f32 %v1611, %v1784
      %v1786 = vpop.f32.mrf.mxu0
      %1787 = vmatprep.mubr.f32.mxu0 0.0
      %1788 = vmatmul.mubr.f32.gmra.mxu0 %v1484
      %v1789 = vpop.f32.mrf.mxu0
      %v1790 = vadd.f32 %v1611, %v1789
      %v1791 = vpop.f32.mrf.mxu0
      %1792 = vmatprep.mubr.f32.mxu0 0.0
      %1793 = vmatmul.mubr.f32.gmra.mxu0 %v1485
      %v1794 = vpop.f32.mrf.mxu0
      %v1795 = vadd.f32 %v1611, %v1794
      %v1796 = vpop.f32.mrf.mxu0
      %1797 = vmatprep.mubr.f32.mxu0 0.0
      %1798 = vmatmul.mubr.f32.gmra.mxu0 %v1486
      %v1799 = vpop.f32.mrf.mxu0
      %v1800 = vadd.f32 %v1611, %v1799
      %v1801 = vpop.f32.mrf.mxu0
      %1802 = vmatprep.mubr.f32.mxu0 0.0
      %1803 = vmatmul.mubr.f32.gmra.mxu0 %v1487
      %v1804 = vpop.f32.mrf.mxu0
      %v1805 = vadd.f32 %v1611, %v1804
      %v1806 = vpop.f32.mrf.mxu0
      %1807 = vmatprep.mubr.f32.mxu0 0.0
      %1808 = vmatmul.mubr.f32.gmra.mxu0 %v1488
      %v1809 = vpop.f32.mrf.mxu0
      %v1810 = vadd.f32 %v1611, %v1809
      %v1811 = vpop.f32.mrf.mxu0
      %1812 = vmatprep.mubr.f32.mxu0 0.0
      %1813 = vmatmul.mubr.f32.gmra.mxu0 %v1489
      %v1814 = vpop.f32.mrf.mxu0
      %v1815 = vadd.f32 %v1611, %v1814
      %v1816 = vpop.f32.mrf.mxu0
      %1817 = vmatprep.mubr.f32.mxu0 0.0
      %1818 = vmatmul.mubr.f32.gmra.mxu0 %v1490
      %v1819 = vpop.f32.mrf.mxu0
      %v1820 = vadd.f32 %v1611, %v1819
      %v1821 = vpop.f32.mrf.mxu0
      %1822 = vmatprep.mubr.f32.mxu0 0.0
      %1823 = vmatmul.mubr.f32.gmra.mxu0 %v1491
      %v1824 = vpop.f32.mrf.mxu0
      %v1825 = vadd.f32 %v1611, %v1824
      %v1826 = vpop.f32.mrf.mxu0
      %1827 = vmatprep.mubr.f32.mxu0 0.0
      %1828 = vmatmul.mubr.f32.gmra.mxu0 %v1492
      %v1829 = vpop.f32.mrf.mxu0
      %v1830 = vadd.f32 %v1611, %v1829
      %v1831 = vpop.f32.mrf.mxu0
      %1832 = vmatprep.mubr.f32.mxu0 0.0
      %1833 = vmatmul.mubr.f32.gmra.mxu0 %v1493
      %v1834 = vpop.f32.mrf.mxu0
      %v1835 = vadd.f32 %v1611, %v1834
      %v1836 = vpop.f32.mrf.mxu0
      %1837 = vmatprep.mubr.f32.mxu0 0.0
      %1838 = vmatmul.mubr.f32.gmra.mxu0 %v1494
      %v1839 = vpop.f32.mrf.mxu0
      %v1840 = vadd.f32 %v1611, %v1839
      %v1841 = vpop.f32.mrf.mxu0
      %1842 = vmatprep.mubr.f32.mxu0 0.0
      %1843 = vmatmul.mubr.f32.gmra.mxu0 %v1495
      %v1844 = vpop.f32.mrf.mxu0
      %v1845 = vadd.f32 %v1611, %v1844
      %v1846 = vpop.f32.mrf.mxu0
      %1847 = vmatprep.mubr.f32.mxu0 0.0
      %1848 = vmatmul.mubr.f32.gmra.mxu0 %v1496
      %v1849 = vpop.f32.mrf.mxu0
      %v1850 = vadd.f32 %v1611, %v1849
      %v1851 = vpop.f32.mrf.mxu0
      %1852 = vmatprep.mubr.f32.mxu0 0.0
      %1853 = vmatmul.mubr.f32.gmra.mxu0 %v1497
      %v1854 = vpop.f32.mrf.mxu0
      %v1855 = vadd.f32 %v1611, %v1854
      %v1856 = vpop.f32.mrf.mxu0
      %1857 = vmatprep.mubr.f32.mxu0 0.0
      %1858 = vmatmul.mubr.f32.gmra.mxu0 %v1498
      %v1859 = vpop.f32.mrf.mxu0
      %v1860 = vadd.f32 %v1611, %v1859
      %v1861 = vpop.f32.mrf.mxu0
      %1862 = vmatprep.mubr.f32.mxu0 0.0
      %1863 = vmatmul.mubr.f32.gmra.mxu0 %v1499
      %v1864 = vpop.f32.mrf.mxu0
      %v1865 = vadd.f32 %v1611, %v1864
      %v1866 = vpop.f32.mrf.mxu0
      %1867 = vmatprep.mubr.f32.mxu0 0.0
      %1868 = vmatmul.mubr.f32.gmra.mxu0 %v1500
      %v1869 = vpop.f32.mrf.mxu0
      %v1870 = vadd.f32 %v1611, %v1869
      %v1871 = vpop.f32.mrf.mxu0
      %1872 = vmatprep.mubr.f32.mxu0 0.0
      %1873 = vmatmul.mubr.f32.gmra.mxu0 %v1501
      %v1874 = vpop.f32.mrf.mxu0
      %v1875 = vadd.f32 %v1611, %v1874
      %v1876 = vpop.f32.mrf.mxu0
      %1877 = vmatprep.mubr.f32.mxu0 0.0
      %1878 = vmatmul.mubr.f32.gmra.mxu0 %v1502
      %v1879 = vpop.f32.mrf.mxu0
      %v1880 = vadd.f32 %v1611, %v1879
      %v1881 = vpop.f32.mrf.mxu0
      %1882 = vmatprep.mubr.f32.mxu0 0.0
      %1883 = vmatmul.mubr.f32.gmra.mxu0 %v1503
      %v1884 = vpop.f32.mrf.mxu0
      %v1885 = vadd.f32 %v1611, %v1884
      %v1886 = vpop.f32.mrf.mxu0
      %1887 = vmatprep.mubr.f32.mxu0 0.0
      %1888 = vmatmul.mubr.f32.gmra.mxu0 %v1504
      %v1889 = vpop.f32.mrf.mxu0
      %v1890 = vadd.f32 %v1611, %v1889
      %v1891 = vpop.f32.mrf.mxu0
      %1892 = vmatprep.mubr.f32.mxu0 0.0
      %1893 = vmatmul.mubr.f32.gmra.mxu0 %v1505
      %v1894 = vpop.f32.mrf.mxu0
      %v1895 = vadd.f32 %v1611, %v1894
      %v1896 = vpop.f32.mrf.mxu0
      %1897 = vmatprep.mubr.f32.mxu0 0.0
      %1898 = vmatmul.mubr.f32.gmra.mxu0 %v1506
      %v1899 = vpop.f32.mrf.mxu0
      %v1900 = vadd.f32 %v1611, %v1899
      %v1901 = vpop.f32.mrf.mxu0
      %1902 = vmatprep.mubr.f32.mxu0 0.0
      %1903 = vmatmul.mubr.f32.gmra.mxu0 %v1507
      %v1904 = vpop.f32.mrf.mxu0
      %v1905 = vadd.f32 %v1611, %v1904
      %v1906 = vpop.f32.mrf.mxu0
      %1907 = vmatprep.mubr.f32.mxu0 0.0
      %1908 = vmatmul.mubr.f32.gmra.mxu0 %v1508
      %v1909 = vpop.f32.mrf.mxu0
      %v1910 = vadd.f32 %v1611, %v1909
      %v1911 = vpop.f32.mrf.mxu0
      %1912 = vmatprep.mubr.f32.mxu0 0.0
      %1913 = vmatmul.mubr.f32.gmra.mxu0 %v1509
      %v1914 = vpop.f32.mrf.mxu0
      %v1915 = vadd.f32 %v1611, %v1914
      %v1916 = vpop.f32.mrf.mxu0
      %1917 = vmatprep.mubr.f32.mxu0 0.0
      %1918 = vmatmul.mubr.f32.gmra.mxu0 %v1510
      %v1919 = vpop.f32.mrf.mxu0
      %v1920 = vadd.f32 %v1611, %v1919
      %v1921 = vpop.f32.mrf.mxu0
      %1922 = vmatprep.mubr.f32.mxu0 0.0
      %1923 = vmatmul.mubr.f32.gmra.mxu0 %v1511
      %v1924 = vpop.f32.mrf.mxu0
      %v1925 = vadd.f32 %v1611, %v1924
      %v1926 = vpop.f32.mrf.mxu0
      %1927 = vmatprep.mubr.f32.mxu0 0.0
      %1928 = vmatmul.mubr.f32.gmra.mxu0 %v1512
      %v1929 = vpop.f32.mrf.mxu0
      %v1930 = vadd.f32 %v1611, %v1929
      %v1931 = vpop.f32.mrf.mxu0
      %1932 = vmatprep.mubr.f32.mxu0 0.0
      %1933 = vmatmul.mubr.f32.gmra.mxu0 %v1513
      %v1934 = vpop.f32.mrf.mxu0
      %v1935 = vadd.f32 %v1611, %v1934
      %v1936 = vpop.f32.mrf.mxu0
      %1937 = vmatprep.mubr.f32.mxu0 0.0
      %1938 = vmatmul.mubr.f32.gmra.mxu0 %v1514
      %v1939 = vpop.f32.mrf.mxu0
      %v1940 = vadd.f32 %v1611, %v1939
      %v1941 = vpop.f32.mrf.mxu0
      %1942 = vmatprep.mubr.f32.mxu0 0.0
      %1943 = vmatmul.mubr.f32.gmra.mxu0 %v1515
      %v1944 = vpop.f32.mrf.mxu0
      %v1945 = vadd.f32 %v1611, %v1944
      %v1946 = vpop.f32.mrf.mxu0
      %1947 = vmatprep.mubr.f32.mxu0 0.0
      %1948 = vmatmul.mubr.f32.gmra.mxu0 %v1516
      %v1949 = vpop.f32.mrf.mxu0
      %v1950 = vadd.f32 %v1611, %v1949
      %v1951 = vpop.f32.mrf.mxu0
      %1952 = vmatprep.mubr.f32.mxu0 0.0
      %1953 = vmatmul.mubr.f32.gmra.mxu0 %v1517
      %v1954 = vpop.f32.mrf.mxu0
      %v1955 = vadd.f32 %v1611, %v1954
      %v1956 = vpop.f32.mrf.mxu0
      %1957 = vmatprep.mubr.f32.mxu0 0.0
      %1958 = vmatmul.mubr.f32.gmra.mxu0 %v1518
      %v1959 = vpop.f32.mrf.mxu0
      %v1960 = vadd.f32 %v1611, %v1959
      %v1961 = vpop.f32.mrf.mxu0
      %1962 = vmatprep.mubr.f32.mxu0 0.0
      %1963 = vmatmul.mubr.f32.gmra.mxu0 %v1519
      %v1964 = vpop.f32.mrf.mxu0
      %v1965 = vadd.f32 %v1611, %v1964
      %v1966 = vpop.f32.mrf.mxu0
      %1967 = vmatprep.mubr.f32.mxu0 0.0
      %1968 = vmatmul.mubr.f32.gmra.mxu0 %v1520
      %v1969 = vpop.f32.mrf.mxu0
      %v1970 = vadd.f32 %v1611, %v1969
      %v1971 = vpop.f32.mrf.mxu0
      %1972 = vmatprep.mubr.f32.mxu0 0.0
      %1973 = vmatmul.mubr.f32.gmra.mxu0 %v1521
      %v1974 = vpop.f32.mrf.mxu0
      %v1975 = vadd.f32 %v1611, %v1974
      %v1976 = vpop.f32.mrf.mxu0
      %1977 = vmatprep.mubr.f32.mxu0 0.0
      %1978 = vmatmul.mubr.f32.gmra.mxu0 %v1522
      %v1979 = vpop.f32.mrf.mxu0
      %v1980 = vadd.f32 %v1611, %v1979
      %v1981 = vpop.f32.mrf.mxu0
      %1982 = vmatprep.mubr.f32.mxu0 0.0
      %1983 = vmatmul.mubr.f32.gmra.mxu0 %v1523
      %v1984 = vpop.f32.mrf.mxu0
      %v1985 = vadd.f32 %v1611, %v1984
      %v1986 = vpop.f32.mrf.mxu0
      %1987 = vmatprep.mubr.f32.mxu0 0.0
      %1988 = vmatmul.mubr.f32.gmra.mxu0 %v1524
      %v1989 = vpop.f32.mrf.mxu0
      %v1990 = vadd.f32 %v1611, %v1989
      %v1991 = vpop.f32.mrf.mxu0
      %1992 = vmatprep.mubr.f32.mxu0 0.0
      %1993 = vmatmul.mubr.f32.gmra.mxu0 %v1525
      %v1994 = vpop.f32.mrf.mxu0
      %v1995 = vadd.f32 %v1611, %v1994
      %v1996 = vpop.f32.mrf.mxu0
      %1997 = vmatprep.mubr.f32.mxu0 0.0
      %1998 = vmatmul.mubr.f32.gmra.mxu0 %v1526
      %v1999 = vpop.f32.mrf.mxu0
      %v2000 = vadd.f32 %v1611, %v1999
      %v2001 = vpop.f32.mrf.mxu0
      %2002 = vmatprep.mubr.f32.mxu0 0.0
      %2003 = vmatmul.mubr.f32.gmra.mxu0 %v1527
      %v2004 = vpop.f32.mrf.mxu0
      %v2005 = vadd.f32 %v1611, %v2004
      %v2006 = vpop.f32.mrf.mxu0
      %2007 = vmatprep.mubr.f32.mxu0 0.0
      %2008 = vmatmul.mubr.f32.gmra.mxu0 %v1528
      %v2009 = vpop.f32.mrf.mxu0
      %v2010 = vadd.f32 %v1611, %v2009
      %v2011 = vpop.f32.mrf.mxu0
      %2012 = vmatprep.mubr.f32.mxu0 0.0
      %2013 = vmatmul.mubr.f32.gmra.mxu0 %v1529
      %v2014 = vpop.f32.mrf.mxu0
      %v2015 = vadd.f32 %v1611, %v2014
      %v2016 = vpop.f32.mrf.mxu0
      %2017 = vmatprep.mubr.f32.mxu0 0.0
      %2018 = vmatmul.mubr.f32.gmra.mxu0 %v1530
      %v2019 = vpop.f32.mrf.mxu0
      %v2020 = vadd.f32 %v1611, %v2019
      %v2021 = vpop.f32.mrf.mxu0
      %2022 = vmatprep.mubr.f32.mxu0 0.0
      %2023 = vmatmul.mubr.f32.gmra.mxu0 %v1531
      %v2024 = vpop.f32.mrf.mxu0
      %v2025 = vadd.f32 %v1611, %v2024
      %v2026 = vpop.f32.mrf.mxu0
      %2027 = vmatprep.mubr.f32.mxu0 0.0
      %2028 = vmatmul.mubr.f32.gmra.mxu0 %v1532
      %v2029 = vpop.f32.mrf.mxu0
      %v2030 = vadd.f32 %v1611, %v2029
      %v2031 = vpop.f32.mrf.mxu0
      %2032 = vmatprep.mubr.f32.mxu0 0.0
      %2033 = vmatmul.mubr.f32.gmra.mxu0 %v1533
      %v2034 = vpop.f32.mrf.mxu0
      %v2035 = vadd.f32 %v1611, %v2034
      %v2036 = vpop.f32.mrf.mxu0
      %2037 = vmatprep.mubr.f32.mxu0 0.0
      %2038 = vmatmul.mubr.f32.gmra.mxu0 %v1534
      %v2039 = vpop.f32.mrf.mxu0
      %v2040 = vadd.f32 %v1611, %v2039
      %v2041 = vpop.f32.mrf.mxu0
      %2042 = vmatprep.mubr.f32.mxu0 0.0
      %2043 = vmatmul.mubr.f32.gmra.mxu0 %v1535
      %v2044 = vpop.f32.mrf.mxu0
      %v2045 = vadd.f32 %v1611, %v2044
      %v2046 = vpop.f32.mrf.mxu0
      %2047 = vmatprep.mubr.f32.mxu0 0.0
      %2048 = vmatmul.mubr.f32.gmra.mxu0 %v1536
      %v2049 = vpop.f32.mrf.mxu0
      %v2050 = vadd.f32 %v1611, %v2049
      %v2051 = vpop.f32.mrf.mxu0
      %2052 = vmatprep.mubr.f32.mxu0 0.0
      %2053 = vmatmul.mubr.f32.gmra.mxu0 %v1537
      %v2054 = vpop.f32.mrf.mxu0
      %v2055 = vadd.f32 %v1611, %v2054
      %v2056 = vpop.f32.mrf.mxu0
      %2057 = vmatprep.mubr.f32.mxu0 0.0
      %2058 = vmatmul.mubr.f32.gmra.mxu0 %v1538
      %v2059 = vpop.f32.mrf.mxu0
      %v2060 = vadd.f32 %v1611, %v2059
      %v2061 = vpop.f32.mrf.mxu0
      %2062 = vmatprep.mubr.f32.mxu0 0.0
      %2063 = vmatmul.mubr.f32.gmra.mxu0 %v1539
      %v2064 = vpop.f32.mrf.mxu0
      %v2065 = vadd.f32 %v1611, %v2064
      %v2066 = vpop.f32.mrf.mxu0
      %2067 = vmatprep.mubr.f32.mxu0 0.0
      %2068 = vmatmul.mubr.f32.gmra.mxu0 %v1540
      %v2069 = vpop.f32.mrf.mxu0
      %v2070 = vadd.f32 %v1611, %v2069
      %v2071 = vpop.f32.mrf.mxu0
      %2072 = vmatprep.mubr.f32.mxu0 0.0
      %2073 = vmatmul.mubr.f32.gmra.mxu0 %v1541
      %v2074 = vpop.f32.mrf.mxu0
      %v2075 = vadd.f32 %v1611, %v2074
      %v2076 = vpop.f32.mrf.mxu0
      %2077 = vmatprep.mubr.f32.mxu0 0.0
      %2078 = vmatmul.mubr.f32.gmra.mxu0 %v1542
      %v2079 = vpop.f32.mrf.mxu0
      %v2080 = vadd.f32 %v1611, %v2079
      %v2081 = vpop.f32.mrf.mxu0
      %2082 = vmatprep.mubr.f32.mxu0 0.0
      %2083 = vmatmul.mubr.f32.gmra.mxu0 %v1543
      %v2084 = vpop.f32.mrf.mxu0
      %v2085 = vadd.f32 %v1611, %v2084
      %v2086 = vpop.f32.mrf.mxu0
      %2087 = vmatprep.mubr.f32.mxu0 0.0
      %2088 = vmatmul.mubr.f32.gmra.mxu0 %v1544
      %v2089 = vpop.f32.mrf.mxu0
      %v2090 = vadd.f32 %v1611, %v2089
      %v2091 = vpop.f32.mrf.mxu0
      %2092 = vmatprep.mubr.f32.mxu0 0.0
      %2093 = vmatmul.mubr.f32.gmra.mxu0 %v1545
      %v2094 = vpop.f32.mrf.mxu0
      %v2095 = vadd.f32 %v1611, %v2094
      %v2096 = vpop.f32.mrf.mxu0
      %2097 = vmatprep.mubr.f32.mxu0 0.0
      %2098 = vmatmul.mubr.f32.gmra.mxu0 %v1546
      %v2099 = vpop.f32.mrf.mxu0
      %v2100 = vadd.f32 %v1611, %v2099
      %v2101 = vpop.f32.mrf.mxu0
      %2102 = vmatprep.mubr.f32.mxu0 0.0
      %2103 = vmatmul.mubr.f32.gmra.mxu0 %v1547
      %v2104 = vpop.f32.mrf.mxu0
      %v2105 = vadd.f32 %v1611, %v2104
      %v2106 = vpop.f32.mrf.mxu0
      %2107 = vmatprep.mubr.f32.mxu0 0.0
      %2108 = vmatmul.mubr.f32.gmra.mxu0 %v1548
      %v2109 = vpop.f32.mrf.mxu0
      %v2110 = vadd.f32 %v1611, %v2109
      %v2111 = vpop.f32.mrf.mxu0
      %2112 = vmatprep.mubr.f32.mxu0 0.0
      %2113 = vmatmul.mubr.f32.gmra.mxu0 %v1549
      %v2114 = vpop.f32.mrf.mxu0
      %v2115 = vadd.f32 %v1611, %v2114
      %v2116 = vpop.f32.mrf.mxu0
      %2117 = vmatprep.mubr.f32.mxu0 0.0
      %2118 = vmatmul.mubr.f32.gmra.mxu0 %v1550
      %v2119 = vpop.f32.mrf.mxu0
      %v2120 = vadd.f32 %v1611, %v2119
      %v2121 = vpop.f32.mrf.mxu0
      %2122 = vmatprep.mubr.f32.mxu0 0.0
      %2123 = vmatmul.mubr.f32.gmra.mxu0 %v1551
      %v2124 = vpop.f32.mrf.mxu0
      %v2125 = vadd.f32 %v1611, %v2124
      %v2126 = vpop.f32.mrf.mxu0
      %2127 = vmatprep.mubr.f32.mxu0 0.0
      %2128 = vmatmul.mubr.f32.gmra.mxu0 %v1552
      %v2129 = vpop.f32.mrf.mxu0
      %v2130 = vadd.f32 %v1611, %v2129
      %v2131 = vpop.f32.mrf.mxu0
      %2132 = vmatprep.mubr.f32.mxu0 0.0
      %2133 = vmatmul.mubr.f32.gmra.mxu0 %v1553
      %v2134 = vpop.f32.mrf.mxu0
      %v2135 = vadd.f32 %v1611, %v2134
      %v2136 = vpop.f32.mrf.mxu0
      %2137 = vmatprep.mubr.f32.mxu0 0.0
      %2138 = vmatmul.mubr.f32.gmra.mxu0 %v1554
      %v2139 = vpop.f32.mrf.mxu0
      %v2140 = vadd.f32 %v1611, %v2139
      %v2141 = vpop.f32.mrf.mxu0
      %2142 = vmatprep.mubr.f32.mxu0 0.0
      %2143 = vmatmul.mubr.f32.gmra.mxu0 %v1555
      %v2144 = vpop.f32.mrf.mxu0
      %v2145 = vadd.f32 %v1611, %v2144
      %v2146 = vpop.f32.mrf.mxu0
      %2147 = vmatprep.mubr.f32.mxu0 0.0
      %2148 = vmatmul.mubr.f32.gmra.mxu0 %v1556
      %v2149 = vpop.f32.mrf.mxu0
      %v2150 = vadd.f32 %v1611, %v2149
      %v2151 = vpop.f32.mrf.mxu0
      %2152 = vmatprep.mubr.f32.mxu0 0.0
      %2153 = vmatmul.mubr.f32.gmra.mxu0 %v1557
      %v2154 = vpop.f32.mrf.mxu0
      %v2155 = vadd.f32 %v1611, %v2154
      %v2156 = vpop.f32.mrf.mxu0
      %2157 = vmatprep.mubr.f32.mxu0 0.0
      %2158 = vmatmul.mubr.f32.gmra.mxu0 %v1558
      %v2159 = vpop.f32.mrf.mxu0
      %v2160 = vadd.f32 %v1611, %v2159
      %v2161 = vpop.f32.mrf.mxu0
      %2162 = vmatprep.mubr.f32.mxu0 0.0
      %2163 = vmatmul.mubr.f32.gmra.mxu0 %v1559
      %v2164 = vpop.f32.mrf.mxu0
      %v2165 = vadd.f32 %v1611, %v2164
      %v2166 = vpop.f32.mrf.mxu0
      %2167 = vmatprep.mubr.f32.mxu0 0.0
      %2168 = vmatmul.mubr.f32.gmra.mxu0 %v1560
      %v2169 = vpop.f32.mrf.mxu0
      %v2170 = vadd.f32 %v1611, %v2169
      %v2171 = vpop.f32.mrf.mxu0
      %2172 = vmatprep.mubr.f32.mxu0 0.0
      %2173 = vmatmul.mubr.f32.gmra.mxu0 %v1561
      %v2174 = vpop.f32.mrf.mxu0
      %v2175 = vadd.f32 %v1611, %v2174
      %v2176 = vpop.f32.mrf.mxu0
      %2177 = vmatprep.mubr.f32.mxu0 0.0
      %2178 = vmatmul.mubr.f32.gmra.mxu0 %v1562
      %v2179 = vpop.f32.mrf.mxu0
      %v2180 = vadd.f32 %v1611, %v2179
      %v2181 = vpop.f32.mrf.mxu0
      %2182 = vmatprep.mubr.f32.mxu0 0.0
      %2183 = vmatmul.mubr.f32.gmra.mxu0 %v1563
      %v2184 = vpop.f32.mrf.mxu0
      %v2185 = vadd.f32 %v1611, %v2184
      %v2186 = vpop.f32.mrf.mxu0
      %2187 = vmatprep.mubr.f32.mxu0 0.0
      %2188 = vmatmul.mubr.f32.gmra.mxu0 %v1564
      %v2189 = vpop.f32.mrf.mxu0
      %v2190 = vadd.f32 %v1611, %v2189
      %v2191 = vpop.f32.mrf.mxu0
      %2192 = vmatprep.mubr.f32.mxu0 0.0
      %2193 = vmatmul.mubr.f32.gmra.mxu0 %v1565
      %v2194 = vpop.f32.mrf.mxu0
      %v2195 = vadd.f32 %v1611, %v2194
      %v2196 = vpop.f32.mrf.mxu0
      %2197 = vmatprep.mubr.f32.mxu0 0.0
      %2198 = vmatmul.mubr.f32.gmra.mxu0 %v1566
      %v2199 = vpop.f32.mrf.mxu0
      %v2200 = vadd.f32 %v1611, %v2199
      %v2201 = vpop.f32.mrf.mxu0
      %2202 = vmatprep.mubr.f32.mxu0 0.0
      %2203 = vmatmul.mubr.f32.gmra.mxu0 %v1567
      %v2204 = vpop.f32.mrf.mxu0
      %v2205 = vadd.f32 %v1611, %v2204
      %v2206 = vpop.f32.mrf.mxu0
      %2207 = vmatprep.mubr.f32.mxu0 0.0
      %2208 = vmatmul.mubr.f32.gmra.mxu0 %v1568
      %v2209 = vpop.f32.mrf.mxu0
      %v2210 = vadd.f32 %v1611, %v2209
      %v2211 = vpop.f32.mrf.mxu0
      %2212 = vmatprep.mubr.f32.mxu0 0.0
      %2213 = vmatmul.mubr.f32.gmra.mxu0 %v1569
      %v2214 = vpop.f32.mrf.mxu0
      %v2215 = vadd.f32 %v1611, %v2214
      %v2216 = vpop.f32.mrf.mxu0
      %2217 = vmatprep.mubr.f32.mxu0 0.0
      %2218 = vmatmul.mubr.f32.gmra.mxu0 %v1570
      %v2219 = vpop.f32.mrf.mxu0
      %v2220 = vadd.f32 %v1611, %v2219
      %v2221 = vpop.f32.mrf.mxu0
      %2222 = vmatprep.mubr.f32.mxu0 0.0
      %2223 = vmatmul.mubr.f32.gmra.mxu0 %v1571
      %v2224 = vpop.f32.mrf.mxu0
      %v2225 = vadd.f32 %v1611, %v2224
      %v2226 = vpop.f32.mrf.mxu0
      %2227 = vmatprep.mubr.f32.mxu0 0.0
      %2228 = vmatmul.mubr.f32.gmra.mxu0 %v1572
      %v2229 = vpop.f32.mrf.mxu0
      %v2230 = vadd.f32 %v1611, %v2229
      %v2231 = vpop.f32.mrf.mxu0
      %2232 = vmatprep.mubr.f32.mxu0 0.0
      %2233 = vmatmul.mubr.f32.gmra.mxu0 %v1573
      %v2234 = vpop.f32.mrf.mxu0
      %v2235 = vadd.f32 %v1611, %v2234
      %v2236 = vpop.f32.mrf.mxu0
      %2237 = vmatprep.mubr.f32.mxu0 0.0
      %2238 = vmatmul.mubr.f32.gmra.mxu0 %v1574
      %v2239 = vpop.f32.mrf.mxu0
      %v2240 = vadd.f32 %v1611, %v2239
      %v2241 = vpop.f32.mrf.mxu0
      %2242 = vmatprep.mubr.f32.mxu0 0.0
      %2243 = vmatmul.mubr.f32.gmra.mxu0 %v1575
      %v2244 = vpop.f32.mrf.mxu0
      %v2245 = vadd.f32 %v1611, %v2244
      %v2246 = vpop.f32.mrf.mxu0
      %2247 = vmatprep.mubr.f32.mxu0 0.0
      %2248 = vmatmul.mubr.f32.gmra.mxu0 %v1576
      %v2249 = vpop.f32.mrf.mxu0
      %v2250 = vadd.f32 %v1611, %v2249
      %v2251 = vpop.f32.mrf.mxu0
      %2252 = vmatprep.mubr.f32.mxu0 0.0
      %2253 = vmatmul.mubr.f32.gmra.mxu0 %v1577
      %v2254 = vpop.f32.mrf.mxu0
      %v2255 = vadd.f32 %v1611, %v2254
      %v2256 = vpop.f32.mrf.mxu0
      %2257 = vmatprep.mubr.f32.mxu0 0.0
      %2258 = vmatmul.mubr.f32.gmra.mxu0 %v1578
      %v2259 = vpop.f32.mrf.mxu0
      %v2260 = vadd.f32 %v1611, %v2259
      %v2261 = vpop.f32.mrf.mxu0
      %2262 = vmatprep.mubr.f32.mxu0 0.0
      %2263 = vmatmul.mubr.f32.gmra.mxu0 %v1579
      %v2264 = vpop.f32.mrf.mxu0
      %v2265 = vadd.f32 %v1611, %v2264
      %v2266 = vpop.f32.mrf.mxu0
      %2267 = vmatprep.mubr.f32.mxu0 0.0
      %2268 = vmatmul.mubr.f32.gmra.mxu0 %v1580
      %v2269 = vpop.f32.mrf.mxu0
      %v2270 = vadd.f32 %v1611, %v2269
      %v2271 = vpop.f32.mrf.mxu0
      %2272 = vmatprep.mubr.f32.mxu0 0.0
      %2273 = vmatmul.mubr.f32.gmra.mxu0 %v1581
      %v2274 = vpop.f32.mrf.mxu0
      %v2275 = vadd.f32 %v1611, %v2274
      %v2276 = vpop.f32.mrf.mxu0
      %2277 = vmatprep.mubr.f32.mxu0 0.0
      %2278 = vmatmul.mubr.f32.gmra.mxu0 %v1582
      %v2279 = vpop.f32.mrf.mxu0
      %v2280 = vadd.f32 %v1611, %v2279
      %v2281 = vpop.f32.mrf.mxu0
      %2282 = vmatprep.mubr.f32.mxu0 0.0
      %2283 = vmatmul.mubr.f32.gmra.mxu0 %v1583
      %v2284 = vpop.f32.mrf.mxu0
      %v2285 = vadd.f32 %v1611, %v2284
      %v2286 = vpop.f32.mrf.mxu0
      %2287 = vmatprep.mubr.f32.mxu0 0.0
      %2288 = vmatmul.mubr.f32.gmra.mxu0 %v1584
      %v2289 = vpop.f32.mrf.mxu0
      %v2290 = vadd.f32 %v1611, %v2289
      %v2291 = vpop.f32.mrf.mxu0
      %2292 = vmatprep.mubr.f32.mxu0 0.0
      %2293 = vmatmul.mubr.f32.gmra.mxu0 %v1585
      %v2294 = vpop.f32.mrf.mxu0
      %v2295 = vadd.f32 %v1611, %v2294
      %v2296 = vpop.f32.mrf.mxu0
      %2297 = vmatprep.mubr.f32.mxu0 0.0
      %2298 = vmatmul.mubr.f32.gmra.mxu0 %v1586
      %v2299 = vpop.f32.mrf.mxu0
      %v2300 = vadd.f32 %v1611, %v2299
      %v2301 = vpop.f32.mrf.mxu0
      %2302 = vmatprep.mubr.f32.mxu0 0.0
      %2303 = vmatmul.mubr.f32.gmra.mxu0 %v1587
      %v2304 = vpop.f32.mrf.mxu0
      %v2305 = vadd.f32 %v1611, %v2304
      %v2306 = vpop.f32.mrf.mxu0
      %2307 = vmatprep.mubr.f32.mxu0 0.0
      %2308 = vmatmul.mubr.f32.gmra.mxu0 %v1588
      %v2309 = vpop.f32.mrf.mxu0
      %v2310 = vadd.f32 %v1611, %v2309
      %v2311 = vpop.f32.mrf.mxu0
      %2312 = vmatprep.mubr.f32.mxu0 0.0
      %2313 = vmatmul.mubr.f32.gmra.mxu0 %v1589
      %v2314 = vpop.f32.mrf.mxu0
      %v2315 = vadd.f32 %v1611, %v2314
      %v2316 = vpop.f32.mrf.mxu0
      %2317 = vdwg.mxu0
      %2318 = vst [vmem:[%s226] sm:$0xff] %v1680
      %2319 = vst [vmem:[%s226 + $0x8] sm:$0xff] %v1685
      %2320 = vst [vmem:[%s226 + $0x10] sm:$0xff] %v1690
      %2321 = vst [vmem:[%s226 + $0x18] sm:$0xff] %v1695
      %2322 = vst [vmem:[%s226 + $0x20] sm:$0xff] %v1700
      %2323 = vst [vmem:[%s226 + $0x28] sm:$0xff] %v1705
      %2324 = vst [vmem:[%s226 + $0x30] sm:$0xff] %v1710
      %2325 = vst [vmem:[%s226 + $0x38] sm:$0xff] %v1715
      %2326 = vst [vmem:[%s226 + $0x40] sm:$0xff] %v1720
      %2327 = vst [vmem:[%s226 + $0x48] sm:$0xff] %v1725
      %2328 = vst [vmem:[%s226 + $0x50] sm:$0xff] %v1730
      %2329 = vst [vmem:[%s226 + $0x58] sm:$0xff] %v1735
      %2330 = vst [vmem:[%s226 + $0x60] sm:$0xff] %v1740
      %2331 = vst [vmem:[%s226 + $0x68] sm:$0xff] %v1745
      %2332 = vst [vmem:[%s226 + $0x70] sm:$0xff] %v1750
      %2333 = vst [vmem:[%s226 + $0x78] sm:$0xff] %v1755
      %2334 = vst [vmem:[%s226 + $0x80] sm:$0xff] %v1760
      %2335 = vst [vmem:[%s226 + $0x88] sm:$0xff] %v1765
      %2336 = vst [vmem:[%s226 + $0x90] sm:$0xff] %v1770
      %2337 = vst [vmem:[%s226 + $0x98] sm:$0xff] %v1775
      %2338 = vst [vmem:[%s226 + $0xa0] sm:$0xff] %v1780
      %2339 = vst [vmem:[%s226 + $0xa8] sm:$0xff] %v1785
      %2340 = vst [vmem:[%s226 + $0xb0] sm:$0xff] %v1790
      %2341 = vst [vmem:[%s226 + $0xb8] sm:$0xff] %v1795
      %2342 = vst [vmem:[%s226 + $0xc0] sm:$0xff] %v1800
      %2343 = vst [vmem:[%s226 + $0xc8] sm:$0xff] %v1805
      %2344 = vst [vmem:[%s226 + $0xd0] sm:$0xff] %v1810
      %2345 = vst [vmem:[%s226 + $0xd8] sm:$0xff] %v1815
      %2346 = vst [vmem:[%s226 + $0xe0] sm:$0xff] %v1820
      %2347 = vst [vmem:[%s226 + $0xe8] sm:$0xff] %v1825
      %2348 = vst [vmem:[%s226 + $0xf0] sm:$0xff] %v1830
      %2349 = vst [vmem:[%s226 + $0xf8] sm:$0xff] %v1835
      %2350 = vst [vmem:[%s226 + $0x100] sm:$0xff] %v1840
      %2351 = vst [vmem:[%s226 + $0x108] sm:$0xff] %v1845
      %2352 = vst [vmem:[%s226 + $0x110] sm:$0xff] %v1850
      %2353 = vst [vmem:[%s226 + $0x118] sm:$0xff] %v1855
      %2354 = vst [vmem:[%s226 + $0x120] sm:$0xff] %v1860
      %2355 = vst [vmem:[%s226 + $0x128] sm:$0xff] %v1865
      %2356 = vst [vmem:[%s226 + $0x130] sm:$0xff] %v1870
      %2357 = vst [vmem:[%s226 + $0x138] sm:$0xff] %v1875
      %2358 = vst [vmem:[%s226 + $0x140] sm:$0xff] %v1880
      %2359 = vst [vmem:[%s226 + $0x148] sm:$0xff] %v1885
      %2360 = vst [vmem:[%s226 + $0x150] sm:$0xff] %v1890
      %2361 = vst [vmem:[%s226 + $0x158] sm:$0xff] %v1895
      %2362 = vst [vmem:[%s226 + $0x160] sm:$0xff] %v1900
      %2363 = vst [vmem:[%s226 + $0x168] sm:$0xff] %v1905
      %2364 = vst [vmem:[%s226 + $0x170] sm:$0xff] %v1910
      %2365 = vst [vmem:[%s226 + $0x178] sm:$0xff] %v1915
      %2366 = vst [vmem:[%s226 + $0x180] sm:$0xff] %v1920
      %2367 = vst [vmem:[%s226 + $0x188] sm:$0xff] %v1925
      %2368 = vst [vmem:[%s226 + $0x190] sm:$0xff] %v1930
      %2369 = vst [vmem:[%s226 + $0x198] sm:$0xff] %v1935
      %2370 = vst [vmem:[%s226 + $0x1a0] sm:$0xff] %v1940
      %2371 = vst [vmem:[%s226 + $0x1a8] sm:$0xff] %v1945
      %2372 = vst [vmem:[%s226 + $0x1b0] sm:$0xff] %v1950
      %2373 = vst [vmem:[%s226 + $0x1b8] sm:$0xff] %v1955
      %2374 = vst [vmem:[%s226 + $0x1c0] sm:$0xff] %v1960
      %2375 = vst [vmem:[%s226 + $0x1c8] sm:$0xff] %v1965
      %2376 = vst [vmem:[%s226 + $0x1d0] sm:$0xff] %v1970
      %2377 = vst [vmem:[%s226 + $0x1d8] sm:$0xff] %v1975
      %2378 = vst [vmem:[%s226 + $0x1e0] sm:$0xff] %v1980
      %2379 = vst [vmem:[%s226 + $0x1e8] sm:$0xff] %v1985
      %2380 = vst [vmem:[%s226 + $0x1f0] sm:$0xff] %v1990
      %2381 = vst [vmem:[%s226 + $0x1f8] sm:$0xff] %v1995
      %2382 = vst [vmem:[%s226 + $0x200] sm:$0xff] %v2000
      %2383 = vst [vmem:[%s226 + $0x208] sm:$0xff] %v2005
      %2384 = vst [vmem:[%s226 + $0x210] sm:$0xff] %v2010
      %2385 = vst [vmem:[%s226 + $0x218] sm:$0xff] %v2015
      %2386 = vst [vmem:[%s226 + $0x220] sm:$0xff] %v2020
      %2387 = vst [vmem:[%s226 + $0x228] sm:$0xff] %v2025
      %2388 = vst [vmem:[%s226 + $0x230] sm:$0xff] %v2030
      %2389 = vst [vmem:[%s226 + $0x238] sm:$0xff] %v2035
      %2390 = vst [vmem:[%s226 + $0x240] sm:$0xff] %v2040
      %2391 = vst [vmem:[%s226 + $0x248] sm:$0xff] %v2045
      %2392 = vst [vmem:[%s226 + $0x250] sm:$0xff] %v2050
      %2393 = vst [vmem:[%s226 + $0x258] sm:$0xff] %v2055
      %2394 = vst [vmem:[%s226 + $0x260] sm:$0xff] %v2060
      %2395 = vst [vmem:[%s226 + $0x268] sm:$0xff] %v2065
      %2396 = vst [vmem:[%s226 + $0x270] sm:$0xff] %v2070
      %2397 = vst [vmem:[%s226 + $0x278] sm:$0xff] %v2075
      %2398 = vst [vmem:[%s226 + $0x280] sm:$0xff] %v2080
      %2399 = vst [vmem:[%s226 + $0x288] sm:$0xff] %v2085
      %2400 = vst [vmem:[%s226 + $0x290] sm:$0xff] %v2090
      %2401 = vst [vmem:[%s226 + $0x298] sm:$0xff] %v2095
      %2402 = vst [vmem:[%s226 + $0x2a0] sm:$0xff] %v2100
      %2403 = vst [vmem:[%s226 + $0x2a8] sm:$0xff] %v2105
      %2404 = vst [vmem:[%s226 + $0x2b0] sm:$0xff] %v2110
      %2405 = vst [vmem:[%s226 + $0x2b8] sm:$0xff] %v2115
      %2406 = vst [vmem:[%s226 + $0x2c0] sm:$0xff] %v2120
      %2407 = vst [vmem:[%s226 + $0x2c8] sm:$0xff] %v2125
      %2408 = vst [vmem:[%s226 + $0x2d0] sm:$0xff] %v2130
      %2409 = vst [vmem:[%s226 + $0x2d8] sm:$0xff] %v2135
      %2410 = vst [vmem:[%s226 + $0x2e0] sm:$0xff] %v2140
      %2411 = vst [vmem:[%s226 + $0x2e8] sm:$0xff] %v2145
      %2412 = vst [vmem:[%s226 + $0x2f0] sm:$0xff] %v2150
      %2413 = vst [vmem:[%s226 + $0x2f8] sm:$0xff] %v2155
      %2414 = vst [vmem:[%s226 + $0x300] sm:$0xff] %v2160
      %2415 = vst [vmem:[%s226 + $0x308] sm:$0xff] %v2165
      %2416 = vst [vmem:[%s226 + $0x310] sm:$0xff] %v2170
      %2417 = vst [vmem:[%s226 + $0x318] sm:$0xff] %v2175
      %2418 = vst [vmem:[%s226 + $0x320] sm:$0xff] %v2180
      %2419 = vst [vmem:[%s226 + $0x328] sm:$0xff] %v2185
      %2420 = vst [vmem:[%s226 + $0x330] sm:$0xff] %v2190
      %2421 = vst [vmem:[%s226 + $0x338] sm:$0xff] %v2195
      %2422 = vst [vmem:[%s226 + $0x340] sm:$0xff] %v2200
      %2423 = vst [vmem:[%s226 + $0x348] sm:$0xff] %v2205
      %2424 = vst [vmem:[%s226 + $0x350] sm:$0xff] %v2210
      %2425 = vst [vmem:[%s226 + $0x358] sm:$0xff] %v2215
      %2426 = vst [vmem:[%s226 + $0x360] sm:$0xff] %v2220
      %2427 = vst [vmem:[%s226 + $0x368] sm:$0xff] %v2225
      %2428 = vst [vmem:[%s226 + $0x370] sm:$0xff] %v2230
      %2429 = vst [vmem:[%s226 + $0x378] sm:$0xff] %v2235
      %2430 = vst [vmem:[%s226 + $0x380] sm:$0xff] %v2240
      %2431 = vst [vmem:[%s226 + $0x388] sm:$0xff] %v2245
      %2432 = vst [vmem:[%s226 + $0x390] sm:$0xff] %v2250
      %2433 = vst [vmem:[%s226 + $0x398] sm:$0xff] %v2255
      %2434 = vst [vmem:[%s226 + $0x3a0] sm:$0xff] %v2260
      %2435 = vst [vmem:[%s226 + $0x3a8] sm:$0xff] %v2265
      %2436 = vst [vmem:[%s226 + $0x3b0] sm:$0xff] %v2270
      %2437 = vst [vmem:[%s226 + $0x3b8] sm:$0xff] %v2275
      %2438 = vst [vmem:[%s226 + $0x3c0] sm:$0xff] %v2280
      %2439 = vst [vmem:[%s226 + $0x3c8] sm:$0xff] %v2285
      %2440 = vst [vmem:[%s226 + $0x3d0] sm:$0xff] %v2290
      %2441 = vst [vmem:[%s226 + $0x3d8] sm:$0xff] %v2295
      %2442 = vst [vmem:[%s226 + $0x3e0] sm:$0xff] %v2300
      %2443 = vst [vmem:[%s226 + $0x3e8] sm:$0xff] %v2305
      %2444 = vst [vmem:[%s226 + $0x3f0] sm:$0xff] %v2310
      %2445 = vst [vmem:[%s226 + $0x3f8] sm:$0xff] %v2315
      %s2446 = smul.u32 128, %s16
      %p2447 = scmp.lt.s32.totalorder %s2446, 255
      %s2448 = scalar_select %p2447, %s2446, 255
      %s2449 = smul.addr %s2448, 8
      %s2450 = scalar_lea.vmem %s5, %s2449
      // Predicated region
      $region41: #{generator_forward.9} parent=39 // pred_check
        %p2451 = pneg %p144
      $region42: #{generator_forward.9} parent=39 // pred_check_branch
        %2453 = sbr.rel (%p2451) target = $region44
      $region43: #{generator_forward.9} parent=39 // pred_region
        %s2454 = smul.u32 128, %s16
      $region44: #{generator_forward.9} parent=39 // pred_fallthru
        _
    $region40: #{generator_forward.9} parent=5 // pred_fallthru
      _
    %p2455 = scmp.le.s32.totalorder 2, %s11
    // Predicated region
    $region45: #{generator_forward.9} parent=5 // pred_check
      %p2456 = pneg %p2455
    $region46: #{generator_forward.9} parent=5 // pred_check_branch
      %2458 = sbr.rel (%p2456) target = $region48
    $region47: #{generator_forward.9} parent=5 // pred_region
      %s2459 = ssub.s32 %s11, 2
      // Predicated region
      $region49: #{generator_forward.9} parent=47 // pred_check
        %p2460 = pneg %p150
      $region50: #{generator_forward.9} parent=47 // pred_check_branch
        %2462 = sbr.rel (%p2460) target = $region52
      $region51: #{generator_forward.9} parent=47 // pred_region
        %s2463 = smul.u32 128, %s17
        %p2464 = scmp.lt.s32.totalorder %s2463, 255
        %s2465 = scalar_select %p2464, %s2463, 255
        %s2466 = smul.addr %s2465, 8
        %s2467 = scalar_lea.vmem %s5, %s2466
      $region52: #{generator_forward.9} parent=47 // pred_fallthru
        _
    $region48: #{generator_forward.9} parent=5 // pred_fallthru
      _
  $region6: #{generator_forward.9} parent=0 // loop_footer
    %s15 = sadd.s32 1, %s11
  $region7: #{generator_forward.9} parent=0 // loop_footer_branch
    %10 = sbr.rel target = $region3
  $region8: #{generator_forward.9} parent=0 // loop_exit
    _

</llo_original>
